<compile_context>
chip_gen: v6e
topology: v6e:2x2x1
jax: 0.10.0
libtpu: 0.0.40
codegen_flags: <defaults>
</compile_context>

<pallas_src>
import functools
import math

import jax
import jax.numpy as jnp
from jax.experimental import pallas as pl
from jax.experimental.pallas import tpu as pltpu

LANE = 128
TILE_M = 512    # row tile of A / output
TILE_K = 1024   # reduction (column) tile of A


def _round_up(x, m):
    return ((x + m - 1) // m) * m


def _vmem_budget_bytes():
    """Generation-aware scoped-VMEM budget: ~3/4 of physical, capped at 100 MiB.
    v5e/v6e (128 MiB) -> 96 MiB; v7x (64 MiB) -> 48 MiB.  Falls back to 48 MiB
    (safe on all generations) if the hardware query is unavailable."""
    try:
        cap = int(pltpu.get_tpu_info().vmem_capacity_bytes)
    except Exception:
        cap = 64 * 1024 * 1024
    return min((cap * 3) // 4, 100 * 1024 * 1024)


def plan_tiles(n):
    """Pick (n_pad, tile_m, tile_k) with tile_m | n_pad and tile_k | n_pad."""
    n_pad = _round_up(n, TILE_M)
    tile_m = TILE_M
    tile_k = TILE_K if n_pad % TILE_K == 0 else TILE_M
    return n_pad, tile_m, tile_k


def _layer_vmem_bytes(n_pad, d_pad, dout_pad, tile_m, tile_k, out_itemsize,
                      f_resident):
    """Conservative (double-buffered) VMEM estimate for one layer's pallas_call."""
    a_bufs = 2 * tile_m * tile_k * 2                                   # A tiles, bf16
    f_bufs = (2 * n_pad * d_pad * 2) if f_resident else (2 * tile_k * d_pad * 2)
    w_bufs = 2 * d_pad * dout_pad * 2                                  # W, bf16
    b_bufs = 2 * 8 * max(dout_pad, LANE) * 4                           # bias (padded tile)
    out_bufs = 2 * tile_m * dout_pad * out_itemsize
    acc = tile_m * d_pad * 4                                           # f32 scratch
    return a_bufs + f_bufs + w_bufs + b_bufs + out_bufs + acc


# --------------------------- Pallas kernel ----------------------------------
#
# Computes   epilogue( (A @ F) @ W + b )   tiled over (row tile i, K tile k).
#   A : [N_pad, N_pad]    bf16 (streamed in (tile_m, tile_k) blocks)
#   F : [N_pad, D_pad]    bf16 (VMEM-resident if it fits, else streamed per K tile)
#   W : [D_pad, Dout_pad] bf16 (resident, tiny)
#   b : [1, Dout_pad]     f32  (resident)
#   out : [N_pad, Dout_pad]    (K-invariant output block -> accumulator pattern)

def gcn_layer_kernel(a_ref, f_ref, w_ref, b_ref, out_ref, acc_ref, *,
                     apply_relu, f_resident, tile_k):
    k = pl.program_id(1)

    @pl.when(k == 0)
    def _():
        acc_ref[...] = jnp.zeros_like(acc_ref)

    if f_resident:
        # Whole F lives in VMEM; take the aligned K slice for this step.
        f_blk = f_ref[pl.ds(pl.multiple_of(k * tile_k, tile_k), tile_k), :]
    else:
        f_blk = f_ref[...]

    # O(N^2) aggregation: bf16 inputs, f32 accumulation on the MXU.
    acc_ref[...] += jnp.dot(a_ref[...], f_blk,
                            preferred_element_type=jnp.float32)

    @pl.when(k == pl.num_programs(1) - 1)
    def _():
        # Tiny per-row-tile feature matmul in bf16 (avoids emulated f32 MXU passes),
        # bias/ReLU in f32.
        h = jnp.dot(acc_ref[...].astype(jnp.bfloat16), w_ref[...],
                    preferred_element_type=jnp.float32) + b_ref[...]
        if apply_relu:
            h = jnp.maximum(h, 0.0)
        out_ref[...] = h.astype(out_ref.dtype)


def gcn_layer(adj, feat, w, b, *, apply_relu, out_dtype, tile_m, tile_k,
              vmem_budget):
    n_pad = adj.shape[0]
    d_pad = feat.shape[1]
    dout_pad = w.shape[1]
    assert n_pad % tile_m == 0 and n_pad % tile_k == 0

    grid = (n_pad // tile_m, n_pad // tile_k)
    out_itemsize = jnp.dtype(out_dtype).itemsize

    # Resident F whenever the double-buffered estimate fits the VMEM budget;
    # otherwise fall back to streaming (large tile_m still amortizes the refetch).
    f_resident = _layer_vmem_bytes(n_pad, d_pad, dout_pad, tile_m, tile_k,
                                   out_itemsize, True) <= vmem_budget

    if f_resident:
        f_spec = pl.BlockSpec((n_pad, d_pad), lambda i, k: (0, 0))   # DMA'd once
        f_hbm_bytes = n_pad * d_pad * 2
    else:
        f_spec = pl.BlockSpec((tile_k, d_pad), lambda i, k: (k, 0))  # per row tile
        f_hbm_bytes = grid[0] * n_pad * d_pad * 2

    kernel = functools.partial(gcn_layer_kernel, apply_relu=apply_relu,
                               f_resident=f_resident, tile_k=tile_k)

    flops = 2 * n_pad * n_pad * d_pad + 2 * n_pad * d_pad * dout_pad
    bytes_accessed = (n_pad * n_pad * 2                 # A (bf16)
                      + f_hbm_bytes                     # F, actual scheme
                      + d_pad * dout_pad * 2            # W (bf16)
                      + dout_pad * 4                    # bias
                      + n_pad * dout_pad * out_itemsize)

    return pl.pallas_call(
        kernel,
        out_shape=jax.ShapeDtypeStruct((n_pad, dout_pad), out_dtype),
        grid_spec=pltpu.PrefetchScalarGridSpec(
            num_scalar_prefetch=0,
            grid=grid,
            in_specs=[
                pl.BlockSpec((tile_m, tile_k), lambda i, k: (i, k)),   # A tile
                f_spec,                                                # F
                pl.BlockSpec((d_pad, dout_pad), lambda i, k: (0, 0)),  # W (resident)
                pl.BlockSpec((1, dout_pad), lambda i, k: (0, 0)),      # b (resident)
            ],
            out_specs=pl.BlockSpec((tile_m, dout_pad), lambda i, k: (i, 0)),
            scratch_shapes=[pltpu.VMEM((tile_m, d_pad), jnp.float32)],
        ),
        compiler_params=pltpu.CompilerParams(
            dimension_semantics=("parallel", "arbitrary"),
            vmem_limit_bytes=vmem_budget,
        ),
        cost_estimate=pl.CostEstimate(
            flops=flops, transcendentals=0, bytes_accessed=bytes_accessed),
    )(adj, feat, w, b)


# --------------------------- encoder wrapper --------------------------------

def gcn_encoder(adj_p, x, w1, b1, w2, b2, *, tile_m, tile_k, vmem_budget):
    """Fused two-layer GCN encoder (inference).
    adj_p: pre-built, tile-padded, bf16 symmetrically-normalized adjacency
           (built once via build_norm_adj_padded and reused across calls).
    Weights follow GCNConv layout: W [in, out], bias [out]."""
    n_pad = adj_p.shape[0]
    n, in_dim = x.shape
    hidden = w1.shape[1]
    latent = w2.shape[1]
    assert n_pad % tile_m == 0 and n_pad % tile_k == 0 and n <= n_pad

    in_pad = _round_up(in_dim, LANE)
    hid_pad = _round_up(hidden, LANE)
    lat_pad = _round_up(latent, LANE)

    # Zero-pad features / params to lane-dense shapes (cheap: O(N*128)).
    x_p = jnp.zeros((n_pad, in_pad), jnp.bfloat16).at[:n, :in_dim].set(
        x.astype(jnp.bfloat16))
    w1_p = jnp.zeros((in_pad, hid_pad), jnp.bfloat16).at[:in_dim, :hidden].set(
        w1.astype(jnp.bfloat16))
    b1_p = jnp.zeros((1, hid_pad), jnp.float32).at[0, :hidden].set(b1)
    w2_p = jnp.zeros((hid_pad, lat_pad), jnp.bfloat16).at[:hidden, :latent].set(
        w2.astype(jnp.bfloat16))
    b2_p = jnp.zeros((1, lat_pad), jnp.float32).at[0, :latent].set(b2)

    # Layer 1: H = relu((A @ X) @ W1 + b1)   (dropout = identity, eval mode)
    # NOTE: padded rows of H get relu(b1); harmless because A's padded columns are 0.
    h = gcn_layer(adj_p, x_p, w1_p, b1_p, apply_relu=True,
                  out_dtype=jnp.bfloat16, tile_m=tile_m, tile_k=tile_k,
                  vmem_budget=vmem_budget)
    # Layer 2: out = (A @ H) @ W2 + b2
    out = gcn_layer(adj_p, h, w2_p, b2_p, apply_relu=False,
                    out_dtype=jnp.float32, tile_m=tile_m, tile_k=tile_k,
                    vmem_budget=vmem_budget)
    return out[:n, :latent]


# --------------------------- plain-JAX glue ----------------------------------

def build_norm_adj_padded(edge_index, num_nodes, n_pad, dtype=jnp.bfloat16):
    """Dense symmetric GCN normalization D^-1/2 (A + I) D^-1/2, built directly at
    the tile-padded size and cast once (hoisted out of the per-forward path).
    Binary adjacency (duplicate edges dedup to 1); diagonal forced to exactly 1.0
    to match PyG add_remaining_self_loops.  Padded rows/cols stay exactly zero."""
    src, dst = edge_index[0], edge_index[1]
    adj = jnp.zeros((n_pad, n_pad), jnp.float32)
    adj = adj.at[dst, src].set(1.0)
    diag = jnp.arange(num_nodes)
    adj = adj.at[diag, diag].set(1.0)
    deg = adj.sum(axis=1)
    dinv = jnp.where(deg > 0.0, jax.lax.rsqrt(deg), 0.0)   # padded rows: deg == 0
    return (adj * dinv[:, None] * dinv[None, :]).astype(dtype)


def glorot(key, shape):
    fan_in, fan_out = shape
    limit = jnp.sqrt(6.0 / (fan_in + fan_out))
    return jax.random.uniform(key, shape, jnp.float32, -limit, limit)


def reference_mirrored(adj_bf16, x, w1, b1, w2, b2):
    """Mirrors the kernel's dtype flow (bf16 A/X/H/W, f32 accumulation)."""
    xb = x.astype(jnp.bfloat16)
    ax = jnp.dot(adj_bf16, xb, preferred_element_type=jnp.float32)
    h = jnp.maximum(
        jnp.dot(ax.astype(jnp.bfloat16), w1.astype(jnp.bfloat16),
                preferred_element_type=jnp.float32) + b1, 0.0).astype(jnp.bfloat16)
    ah = jnp.dot(adj_bf16, h, preferred_element_type=jnp.float32)
    return jnp.dot(ah.astype(jnp.bfloat16), w2.astype(jnp.bfloat16),
                   preferred_element_type=jnp.float32) + b2


def reference_f32(adj_f32, x, w1, b1, w2, b2):
    """True f32 (PyTorch-semantics) reference — loose-tolerance sanity check."""
    h = jnp.maximum(adj_f32 @ x @ w1 + b1, 0.0)
    return adj_f32 @ h @ w2 + b2


if __name__ == "__main__":
    # Small deterministic problem (exercises padding + resident-F path).
    num_nodes, in_dim, hidden_dim, latent_dim = 200, 8, 32, 8
    num_edges = 600

    key = jax.random.PRNGKey(0)
    k_x, k_e, k_w1, k_w2 = jax.random.split(key, 4)

    x = jax.random.normal(k_x, (num_nodes, in_dim), jnp.float32)

    # Random directed edges, symmetrized (undirected graph).
    e = jax.random.randint(k_e, (2, num_edges), 0, num_nodes)
    edge_index = jnp.concatenate([e, e[::-1]], axis=1)  # [2, 2*num_edges]

    # Deterministic parameter init (GCNConv: weight [in, out], bias [out]).
    w1 = glorot(k_w1, (in_dim, hidden_dim))
    b1 = jnp.zeros((hidden_dim,), jnp.float32)
    w2 = glorot(k_w2, (hidden_dim, latent_dim))
    b2 = jnp.zeros((latent_dim,), jnp.float32)

    # Tiling plan + generation-aware VMEM budget (static Python values).
    n_pad, tile_m, tile_k = plan_tiles(num_nodes)
    vmem_budget = _vmem_budget_bytes()

    # A_hat: normalized, padded, bf16 — built ONCE, reused by both layers/calls.
    adj_p = build_norm_adj_padded(edge_index, num_nodes, n_pad, dtype=jnp.bfloat16)

    run = jax.jit(functools.partial(gcn_encoder, tile_m=tile_m, tile_k=tile_k,
                                    vmem_budget=vmem_budget))
    out = jax.block_until_ready(run(adj_p, x, w1, b1, w2, b2))
    assert out.shape == (num_nodes, latent_dim)

    # Strict check vs. a reference that mirrors the kernel's bf16 choices.
    a_valid_bf16 = adj_p[:num_nodes, :num_nodes]
    ref_m = reference_mirrored(a_valid_bf16, x, w1, b1, w2, b2)
    assert jnp.allclose(out, ref_m, atol=3e-2, rtol=3e-2), (
        float(jnp.abs(out - ref_m).max()))

    # Loose check vs. the true f32 PyTorch-semantics forward (bf16 quantization
    # of A_hat / weights is the only difference).
    adj_f32 = build_norm_adj_padded(edge_index, num_nodes, num_nodes,
                                    dtype=jnp.float32)
    ref_f = reference_f32(adj_f32, x, w1, b1, w2, b2)
    assert jnp.allclose(out, ref_f, atol=1e-1, rtol=1e-1), (
        float(jnp.abs(out - ref_f).max()))

    print("KERNEL_OK")
</pallas_src>

<mosaic_0001>
module attributes {stable_mosaic.version = 11 : i64} {
  func.func @gcn_layer_kernel(%arg0: i32, %arg1: i32, %arg2: memref<512x512xbf16, #tpu.memory_space<vmem>>, %arg3: memref<512x128xbf16, #tpu.memory_space<vmem>>, %arg4: memref<128x128xbf16, #tpu.memory_space<vmem>>, %arg5: memref<1x128xf32, #tpu.memory_space<vmem>>, %arg6: memref<512x128xbf16, #tpu.memory_space<vmem>>, %arg7: memref<512x128xf32, #tpu.memory_space<vmem>>) attributes {dimension_semantics = [#tpu.dimension_semantics<parallel>, #tpu.dimension_semantics<arbitrary>], iteration_bounds = array<i64: 1, 1>, scalar_prefetch = 0 : i64, scratch_operands = 1 : i64, tpu.core_type = #tpu.core_type<tc>, window_params = [{transform_indices = @transform_0, window_bounds = array<i64: 512, 512>}, {pipeline_mode = #tpu.pipeline_mode<synchronous>, transform_indices = @transform_1, window_bounds = array<i64: 512, 128>}, {pipeline_mode = #tpu.pipeline_mode<synchronous>, transform_indices = @transform_2, window_bounds = array<i64: 128, 128>}, {pipeline_mode = #tpu.pipeline_mode<synchronous>, transform_indices = @transform_3, window_bounds = array<i64: 1, 128>}, {transform_indices = @transform_4, window_bounds = array<i64: 512, 128>}]} {
    %c0_i32 = arith.constant 0 : i32
    %0 = arith.cmpi eq, %arg1, %c0_i32 : i32
    %1 = arith.extui %0 : i1 to i32
    %c0_i32_0 = arith.constant 0 : i32
    %2 = arith.cmpi ne, %1, %c0_i32_0 : i32
    scf.if %2 {
      %cst_9 = arith.constant 0.000000e+00 : f32
      %15 = vector.broadcast %cst_9 : f32 to vector<512x128xf32>
      %c0_10 = arith.constant 0 : index
      %c0_11 = arith.constant 0 : index
      %16 = vector.load %arg7[%c0_10, %c0_11] : memref<512x128xf32, #tpu.memory_space<vmem>>, vector<512x128xf32>
      tpu.vector_store %arg7[%c0_10, %c0_11], %15 {strides = array<i32>} : memref<512x128xf32, #tpu.memory_space<vmem>>, vector<512x128xf32>,
    } else {
    }
    %c512_i32 = arith.constant 512 : i32
    %3 = arith.muli %arg1, %c512_i32 : i32
    %4 = tpu.assume_multiple %3, 512 : i32
    %5 = arith.index_cast %4 : i32 to index
    %c0 = arith.constant 0 : index
    %6 = vector.load %arg3[%5, %c0] : memref<512x128xbf16, #tpu.memory_space<vmem>>, vector<512x128xbf16>
    %c0_1 = arith.constant 0 : index
    %c0_2 = arith.constant 0 : index
    %7 = vector.load %arg7[%c0_1, %c0_2] : memref<512x128xf32, #tpu.memory_space<vmem>>, vector<512x128xf32>
    %c0_3 = arith.constant 0 : index
    %c0_4 = arith.constant 0 : index
    %8 = vector.load %arg2[%c0_3, %c0_4] : memref<512x512xbf16, #tpu.memory_space<vmem>>, vector<512x512xbf16>
    %cst = arith.constant dense<0.000000e+00> : vector<512x128xf32>
    %9 = tpu.matmul %8, %6, %cst {dimension_numbers = #tpu.dot_dimension_numbers<[1], [0], [0], [1], [0, 0, 1, 1], [], []>} : vector<512x512xbf16>, vector<512x128xbf16>, vector<512x128xf32> -> vector<512x128xf32>
    %10 = arith.addf %7, %9 : vector<512x128xf32>
    %c0_5 = arith.constant 0 : index
    %c0_6 = arith.constant 0 : index
    %11 = vector.load %arg7[%c0_5, %c0_6] : memref<512x128xf32, #tpu.memory_space<vmem>>, vector<512x128xf32>
    tpu.vector_store %arg7[%c0_5, %c0_6], %10 {strides = array<i32>} : memref<512x128xf32, #tpu.memory_space<vmem>>, vector<512x128xf32>,
    %c0_i32_7 = arith.constant 0 : i32
    %12 = arith.cmpi eq, %arg1, %c0_i32_7 : i32
    %13 = arith.extui %12 : i1 to i32
    %c0_i32_8 = arith.constant 0 : i32
    %14 = arith.cmpi ne, %13, %c0_i32_8 : i32
    scf.if %14 {
      %c0_9 = arith.constant 0 : index
      %c0_10 = arith.constant 0 : index
      %15 = vector.load %arg7[%c0_9, %c0_10] : memref<512x128xf32, #tpu.memory_space<vmem>>, vector<512x128xf32>
      %16 = arith.truncf %15 : vector<512x128xf32> to vector<512x128xbf16>
      %c0_11 = arith.constant 0 : index
      %c0_12 = arith.constant 0 : index
      %17 = vector.load %arg4[%c0_11, %c0_12] : memref<128x128xbf16, #tpu.memory_space<vmem>>, vector<128x128xbf16>
      %cst_13 = arith.constant dense<0.000000e+00> : vector<512x128xf32>
      %18 = tpu.matmul %16, %17, %cst_13 {dimension_numbers = #tpu.dot_dimension_numbers<[1], [0], [0], [1], [0, 0, 1, 1], [], []>} : vector<512x128xbf16>, vector<128x128xbf16>, vector<512x128xf32> -> vector<512x128xf32>
      %c0_14 = arith.constant 0 : index
      %c0_15 = arith.constant 0 : index
      %19 = vector.load %arg5[%c0_14, %c0_15] : memref<1x128xf32, #tpu.memory_space<vmem>>, vector<1x128xf32>
      %20 = vector.broadcast %19 : vector<1x128xf32> to vector<512x128xf32>
      %21 = arith.addf %18, %20 : vector<512x128xf32>
      %cst_16 = arith.constant 0.000000e+00 : f32
      %22 = vector.broadcast %cst_16 : f32 to vector<512x128xf32>
      %23 = arith.maximumf %21, %22 : vector<512x128xf32>
      %24 = arith.truncf %23 : vector<512x128xf32> to vector<512x128xbf16>
      %c0_17 = arith.constant 0 : index
      %c0_18 = arith.constant 0 : index
      %25 = vector.load %arg6[%c0_17, %c0_18] : memref<512x128xbf16, #tpu.memory_space<vmem>>, vector<512x128xbf16>
      tpu.vector_store %arg6[%c0_17, %c0_18], %24 {strides = array<i32>} : memref<512x128xbf16, #tpu.memory_space<vmem>>, vector<512x128xbf16>,
    } else {
    }
    return
  }
  func.func @transform_0(%arg0: i32, %arg1: i32) -> (i32, i32) {
    %c0_i32 = arith.constant 0 : i32
    return %arg0, %arg1 : i32, i32
  }
  func.func @transform_1(%arg0: i32, %arg1: i32) -> (i32, i32) {
    %c0_i32 = arith.constant 0 : i32
    %c0_i32_0 = arith.constant 0 : i32
    %c0_i32_1 = arith.constant 0 : i32
    return %c0_i32, %c0_i32_0 : i32, i32
  }
  func.func @transform_2(%arg0: i32, %arg1: i32) -> (i32, i32) {
    %c0_i32 = arith.constant 0 : i32
    %c0_i32_0 = arith.constant 0 : i32
    %c0_i32_1 = arith.constant 0 : i32
    return %c0_i32, %c0_i32_0 : i32, i32
  }
  func.func @transform_3(%arg0: i32, %arg1: i32) -> (i32, i32) {
    %c0_i32 = arith.constant 0 : i32
    %c0_i32_0 = arith.constant 0 : i32
    %c0_i32_1 = arith.constant 0 : i32
    return %c0_i32, %c0_i32_0 : i32, i32
  }
  func.func @transform_4(%arg0: i32, %arg1: i32) -> (i32, i32) {
    %c0_i32 = arith.constant 0 : i32
    %c0_i32_0 = arith.constant 0 : i32
    return %arg0, %c0_i32 : i32, i32
  }
}

module attributes {stable_mosaic.version = 11 : i64} {
  func.func @gcn_layer_kernel(%arg0: i32, %arg1: i32, %arg2: memref<512x512xbf16, #tpu.memory_space<vmem>>, %arg3: memref<512x128xbf16, #tpu.memory_space<vmem>>, %arg4: memref<128x128xbf16, #tpu.memory_space<vmem>>, %arg5: memref<1x128xf32, #tpu.memory_space<vmem>>, %arg6: memref<512x128xf32, #tpu.memory_space<vmem>>, %arg7: memref<512x128xf32, #tpu.memory_space<vmem>>) attributes {dimension_semantics = [#tpu.dimension_semantics<parallel>, #tpu.dimension_semantics<arbitrary>], iteration_bounds = array<i64: 1, 1>, scalar_prefetch = 0 : i64, scratch_operands = 1 : i64, tpu.core_type = #tpu.core_type<tc>, window_params = [{transform_indices = @transform_0, window_bounds = array<i64: 512, 512>}, {pipeline_mode = #tpu.pipeline_mode<synchronous>, transform_indices = @transform_1, window_bounds = array<i64: 512, 128>}, {pipeline_mode = #tpu.pipeline_mode<synchronous>, transform_indices = @transform_2, window_bounds = array<i64: 128, 128>}, {pipeline_mode = #tpu.pipeline_mode<synchronous>, transform_indices = @transform_3, window_bounds = array<i64: 1, 128>}, {transform_indices = @transform_4, window_bounds = array<i64: 512, 128>}]} {
    %c0_i32 = arith.constant 0 : i32
    %0 = arith.cmpi eq, %arg1, %c0_i32 : i32
    %1 = arith.extui %0 : i1 to i32
    %c0_i32_0 = arith.constant 0 : i32
    %2 = arith.cmpi ne, %1, %c0_i32_0 : i32
    scf.if %2 {
      %cst_9 = arith.constant 0.000000e+00 : f32
      %15 = vector.broadcast %cst_9 : f32 to vector<512x128xf32>
      %c0_10 = arith.constant 0 : index
      %c0_11 = arith.constant 0 : index
      %16 = vector.load %arg7[%c0_10, %c0_11] : memref<512x128xf32, #tpu.memory_space<vmem>>, vector<512x128xf32>
      tpu.vector_store %arg7[%c0_10, %c0_11], %15 {strides = array<i32>} : memref<512x128xf32, #tpu.memory_space<vmem>>, vector<512x128xf32>,
    } else {
    }
    %c512_i32 = arith.constant 512 : i32
    %3 = arith.muli %arg1, %c512_i32 : i32
    %4 = tpu.assume_multiple %3, 512 : i32
    %5 = arith.index_cast %4 : i32 to index
    %c0 = arith.constant 0 : index
    %6 = vector.load %arg3[%5, %c0] : memref<512x128xbf16, #tpu.memory_space<vmem>>, vector<512x128xbf16>
    %c0_1 = arith.constant 0 : index
    %c0_2 = arith.constant 0 : index
    %7 = vector.load %arg7[%c0_1, %c0_2] : memref<512x128xf32, #tpu.memory_space<vmem>>, vector<512x128xf32>
    %c0_3 = arith.constant 0 : index
    %c0_4 = arith.constant 0 : index
    %8 = vector.load %arg2[%c0_3, %c0_4] : memref<512x512xbf16, #tpu.memory_space<vmem>>, vector<512x512xbf16>
    %cst = arith.constant dense<0.000000e+00> : vector<512x128xf32>
    %9 = tpu.matmul %8, %6, %cst {dimension_numbers = #tpu.dot_dimension_numbers<[1], [0], [0], [1], [0, 0, 1, 1], [], []>} : vector<512x512xbf16>, vector<512x128xbf16>, vector<512x128xf32> -> vector<512x128xf32>
    %10 = arith.addf %7, %9 : vector<512x128xf32>
    %c0_5 = arith.constant 0 : index
    %c0_6 = arith.constant 0 : index
    %11 = vector.load %arg7[%c0_5, %c0_6] : memref<512x128xf32, #tpu.memory_space<vmem>>, vector<512x128xf32>
    tpu.vector_store %arg7[%c0_5, %c0_6], %10 {strides = array<i32>} : memref<512x128xf32, #tpu.memory_space<vmem>>, vector<512x128xf32>,
    %c0_i32_7 = arith.constant 0 : i32
    %12 = arith.cmpi eq, %arg1, %c0_i32_7 : i32
    %13 = arith.extui %12 : i1 to i32
    %c0_i32_8 = arith.constant 0 : i32
    %14 = arith.cmpi ne, %13, %c0_i32_8 : i32
    scf.if %14 {
      %c0_9 = arith.constant 0 : index
      %c0_10 = arith.constant 0 : index
      %15 = vector.load %arg7[%c0_9, %c0_10] : memref<512x128xf32, #tpu.memory_space<vmem>>, vector<512x128xf32>
      %16 = arith.truncf %15 : vector<512x128xf32> to vector<512x128xbf16>
      %c0_11 = arith.constant 0 : index
      %c0_12 = arith.constant 0 : index
      %17 = vector.load %arg4[%c0_11, %c0_12] : memref<128x128xbf16, #tpu.memory_space<vmem>>, vector<128x128xbf16>
      %cst_13 = arith.constant dense<0.000000e+00> : vector<512x128xf32>
      %18 = tpu.matmul %16, %17, %cst_13 {dimension_numbers = #tpu.dot_dimension_numbers<[1], [0], [0], [1], [0, 0, 1, 1], [], []>} : vector<512x128xbf16>, vector<128x128xbf16>, vector<512x128xf32> -> vector<512x128xf32>
      %c0_14 = arith.constant 0 : index
      %c0_15 = arith.constant 0 : index
      %19 = vector.load %arg5[%c0_14, %c0_15] : memref<1x128xf32, #tpu.memory_space<vmem>>, vector<1x128xf32>
      %20 = vector.broadcast %19 : vector<1x128xf32> to vector<512x128xf32>
      %21 = arith.addf %18, %20 : vector<512x128xf32>
      %c0_16 = arith.constant 0 : index
      %c0_17 = arith.constant 0 : index
      %22 = vector.load %arg6[%c0_16, %c0_17] : memref<512x128xf32, #tpu.memory_space<vmem>>, vector<512x128xf32>
      tpu.vector_store %arg6[%c0_16, %c0_17], %21 {strides = array<i32>} : memref<512x128xf32, #tpu.memory_space<vmem>>, vector<512x128xf32>,
    } else {
    }
    return
  }
  func.func @transform_0(%arg0: i32, %arg1: i32) -> (i32, i32) {
    %c0_i32 = arith.constant 0 : i32
    return %arg0, %arg1 : i32, i32
  }
  func.func @transform_1(%arg0: i32, %arg1: i32) -> (i32, i32) {
    %c0_i32 = arith.constant 0 : i32
    %c0_i32_0 = arith.constant 0 : i32
    %c0_i32_1 = arith.constant 0 : i32
    return %c0_i32, %c0_i32_0 : i32, i32
  }
  func.func @transform_2(%arg0: i32, %arg1: i32) -> (i32, i32) {
    %c0_i32 = arith.constant 0 : i32
    %c0_i32_0 = arith.constant 0 : i32
    %c0_i32_1 = arith.constant 0 : i32
    return %c0_i32, %c0_i32_0 : i32, i32
  }
  func.func @transform_3(%arg0: i32, %arg1: i32) -> (i32, i32) {
    %c0_i32 = arith.constant 0 : i32
    %c0_i32_0 = arith.constant 0 : i32
    %c0_i32_1 = arith.constant 0 : i32
    return %c0_i32, %c0_i32_0 : i32, i32
  }
  func.func @transform_4(%arg0: i32, %arg1: i32) -> (i32, i32) {
    %c0_i32 = arith.constant 0 : i32
    %c0_i32_0 = arith.constant 0 : i32
    return %arg0, %c0_i32 : i32, i32
  }
}

</mosaic_0001>

<llo_original>
// kernel: gcn_encoder.3
$region0: #{gcn_encoder.3}
  #allocation0 [shape = 'u32[]', space=smem, size = 0x4, offset = 0x4, fixed_abs, tag = 'smem constant byte address 0x4 - core index']
  #allocation1 [shape = 'u32[144,128]{1,0:T(1,128)}', space=vmem, size = 0x12000, scoped, tag = 'internal scratch']
  #allocation2 [shape = 'f32[512,128]{1,0:T(8,128)}', space=vmem, size = 0x40000, scoped, tag = 'scratch operand']
  %s0 = inlined_call_operand.vmem [shape: bf16[512,512], index: 0, kind: input, shape index: {}]
  %s1 = inlined_call_operand.vmem [shape: bf16[512,128], index: 1, kind: input, shape index: {}]
  %s2 = inlined_call_operand.vmem [shape: bf16[128,128], index: 2, kind: input, shape index: {}]
  %s3 = inlined_call_operand.vmem [shape: f32[1,128], index: 3, kind: input, shape index: {}]
  %s4 = inlined_call_operand.vmem [shape: f32[512,128], index: 4, kind: output, shape index: {}]
  %s5 = sld [smem:[#allocation0]]
  $region34: #{gcn_encoder.3} parent=0
    _
  %s7 = ssub.s32 1, %s5
  %s8 = scalar_select 0, %s7, %s5
  // Predicated region
  $region2: #{gcn_encoder.3} parent=0 // pred_check
    _
  $region3: #{gcn_encoder.3} parent=0 // pred_check_branch
    %10 = sbr.rel (0) target = $region5
  $region4: #{gcn_encoder.3} parent=0 // pred_region
    _
  $region5: #{gcn_encoder.3} parent=0 // pred_fallthru
    _
  // Predicated region
  $region6: #{gcn_encoder.3} parent=0 // pred_check
    _
  $region7: #{gcn_encoder.3} parent=0 // pred_check_branch
    %12 = sbr.rel (0) target = $region9
  $region8: #{gcn_encoder.3} parent=0 // pred_region
    _
  $region9: #{gcn_encoder.3} parent=0 // pred_fallthru
    _
  // Predicated region
  $region10: #{gcn_encoder.3} parent=0 // pred_check
    _
  $region11: #{gcn_encoder.3} parent=0 // pred_check_branch
    %14 = sbr.rel (0) target = $region13
  $region12: #{gcn_encoder.3} parent=0 // pred_region
    _
  $region13: #{gcn_encoder.3} parent=0 // pred_fallthru
    _
  // Predicated region
  $region14: #{gcn_encoder.3} parent=0 // pred_check
    _
  $region15: #{gcn_encoder.3} parent=0 // pred_check_branch
    %16 = sbr.rel (0) target = $region17
  $region16: #{gcn_encoder.3} parent=0 // pred_region
    _
  $region17: #{gcn_encoder.3} parent=0 // pred_fallthru
    _
  %p18 = scmp.eq.s32.totalorder 0, 0
  // Predicated region
  $region18: #{gcn_encoder.3} parent=0 // pred_check
    %p19 = pneg %p18
  $region19: #{gcn_encoder.3} parent=0 // pred_check_branch
    %21 = sbr.rel (%p19) target = $region21
  $region20: #{gcn_encoder.3} parent=0 // pred_region
    %22 = vst [vmem:[#allocation2] sm:$0xff] 0.0
    %23 = vst [vmem:[#allocation2 + $0x8] sm:$0xff] 0.0
    %24 = vst [vmem:[#allocation2 + $0x10] sm:$0xff] 0.0
    %25 = vst [vmem:[#allocation2 + $0x18] sm:$0xff] 0.0
    %26 = vst [vmem:[#allocation2 + $0x20] sm:$0xff] 0.0
    %27 = vst [vmem:[#allocation2 + $0x28] sm:$0xff] 0.0
    %28 = vst [vmem:[#allocation2 + $0x30] sm:$0xff] 0.0
    %29 = vst [vmem:[#allocation2 + $0x38] sm:$0xff] 0.0
    %30 = vst [vmem:[#allocation2 + $0x40] sm:$0xff] 0.0
    %31 = vst [vmem:[#allocation2 + $0x48] sm:$0xff] 0.0
    %32 = vst [vmem:[#allocation2 + $0x50] sm:$0xff] 0.0
    %33 = vst [vmem:[#allocation2 + $0x58] sm:$0xff] 0.0
    %34 = vst [vmem:[#allocation2 + $0x60] sm:$0xff] 0.0
    %35 = vst [vmem:[#allocation2 + $0x68] sm:$0xff] 0.0
    %36 = vst [vmem:[#allocation2 + $0x70] sm:$0xff] 0.0
    %37 = vst [vmem:[#allocation2 + $0x78] sm:$0xff] 0.0
    %38 = vst [vmem:[#allocation2 + $0x80] sm:$0xff] 0.0
    %39 = vst [vmem:[#allocation2 + $0x88] sm:$0xff] 0.0
    %40 = vst [vmem:[#allocation2 + $0x90] sm:$0xff] 0.0
    %41 = vst [vmem:[#allocation2 + $0x98] sm:$0xff] 0.0
    %42 = vst [vmem:[#allocation2 + $0xa0] sm:$0xff] 0.0
    %43 = vst [vmem:[#allocation2 + $0xa8] sm:$0xff] 0.0
    %44 = vst [vmem:[#allocation2 + $0xb0] sm:$0xff] 0.0
    %45 = vst [vmem:[#allocation2 + $0xb8] sm:$0xff] 0.0
    %46 = vst [vmem:[#allocation2 + $0xc0] sm:$0xff] 0.0
    %47 = vst [vmem:[#allocation2 + $0xc8] sm:$0xff] 0.0
    %48 = vst [vmem:[#allocation2 + $0xd0] sm:$0xff] 0.0
    %49 = vst [vmem:[#allocation2 + $0xd8] sm:$0xff] 0.0
    %50 = vst [vmem:[#allocation2 + $0xe0] sm:$0xff] 0.0
    %51 = vst [vmem:[#allocation2 + $0xe8] sm:$0xff] 0.0
    %52 = vst [vmem:[#allocation2 + $0xf0] sm:$0xff] 0.0
    %53 = vst [vmem:[#allocation2 + $0xf8] sm:$0xff] 0.0
    %54 = vst [vmem:[#allocation2 + $0x100] sm:$0xff] 0.0
    %55 = vst [vmem:[#allocation2 + $0x108] sm:$0xff] 0.0
    %56 = vst [vmem:[#allocation2 + $0x110] sm:$0xff] 0.0
    %57 = vst [vmem:[#allocation2 + $0x118] sm:$0xff] 0.0
    %58 = vst [vmem:[#allocation2 + $0x120] sm:$0xff] 0.0
    %59 = vst [vmem:[#allocation2 + $0x128] sm:$0xff] 0.0
    %60 = vst [vmem:[#allocation2 + $0x130] sm:$0xff] 0.0
    %61 = vst [vmem:[#allocation2 + $0x138] sm:$0xff] 0.0
    %62 = vst [vmem:[#allocation2 + $0x140] sm:$0xff] 0.0
    %63 = vst [vmem:[#allocation2 + $0x148] sm:$0xff] 0.0
    %64 = vst [vmem:[#allocation2 + $0x150] sm:$0xff] 0.0
    %65 = vst [vmem:[#allocation2 + $0x158] sm:$0xff] 0.0
    %66 = vst [vmem:[#allocation2 + $0x160] sm:$0xff] 0.0
    %67 = vst [vmem:[#allocation2 + $0x168] sm:$0xff] 0.0
    %68 = vst [vmem:[#allocation2 + $0x170] sm:$0xff] 0.0
    %69 = vst [vmem:[#allocation2 + $0x178] sm:$0xff] 0.0
    %70 = vst [vmem:[#allocation2 + $0x180] sm:$0xff] 0.0
    %71 = vst [vmem:[#allocation2 + $0x188] sm:$0xff] 0.0
    %72 = vst [vmem:[#allocation2 + $0x190] sm:$0xff] 0.0
    %73 = vst [vmem:[#allocation2 + $0x198] sm:$0xff] 0.0
    %74 = vst [vmem:[#allocation2 + $0x1a0] sm:$0xff] 0.0
    %75 = vst [vmem:[#allocation2 + $0x1a8] sm:$0xff] 0.0
    %76 = vst [vmem:[#allocation2 + $0x1b0] sm:$0xff] 0.0
    %77 = vst [vmem:[#allocation2 + $0x1b8] sm:$0xff] 0.0
    %78 = vst [vmem:[#allocation2 + $0x1c0] sm:$0xff] 0.0
    %79 = vst [vmem:[#allocation2 + $0x1c8] sm:$0xff] 0.0
    %80 = vst [vmem:[#allocation2 + $0x1d0] sm:$0xff] 0.0
    %81 = vst [vmem:[#allocation2 + $0x1d8] sm:$0xff] 0.0
    %82 = vst [vmem:[#allocation2 + $0x1e0] sm:$0xff] 0.0
    %83 = vst [vmem:[#allocation2 + $0x1e8] sm:$0xff] 0.0
    %84 = vst [vmem:[#allocation2 + $0x1f0] sm:$0xff] 0.0
    %85 = vst [vmem:[#allocation2 + $0x1f8] sm:$0xff] 0.0
  $region21: #{gcn_encoder.3} parent=0 // pred_fallthru
    _
  %s86 = smul.u32 0, 512
  %s87 = sshra.s32 %s86, 3
  %s88 = sand.u32 %s86, 7
  %s89 = smul.addr %s87, 4
  %s90 = scalar_lea.vmem %s1, %s89
  %v91 = vld [vmem:[%s90] sm:$0xf]
  %v92 = vld [vmem:[%s90 + $0x4] sm:$0xf]
  %v93 = vld [vmem:[%s90 + $0x8] sm:$0xf]
  %v94 = vld [vmem:[%s90 + $0xc] sm:$0xf]
  %v95 = vld [vmem:[%s90 + $0x10] sm:$0xf]
  %v96 = vld [vmem:[%s90 + $0x14] sm:$0xf]
  %v97 = vld [vmem:[%s90 + $0x18] sm:$0xf]
  %v98 = vld [vmem:[%s90 + $0x1c] sm:$0xf]
  %v99 = vld [vmem:[%s90 + $0x20] sm:$0xf]
  %v100 = vld [vmem:[%s90 + $0x24] sm:$0xf]
  %v101 = vld [vmem:[%s90 + $0x28] sm:$0xf]
  %v102 = vld [vmem:[%s90 + $0x2c] sm:$0xf]
  %v103 = vld [vmem:[%s90 + $0x30] sm:$0xf]
  %v104 = vld [vmem:[%s90 + $0x34] sm:$0xf]
  %v105 = vld [vmem:[%s90 + $0x38] sm:$0xf]
  %v106 = vld [vmem:[%s90 + $0x3c] sm:$0xf]
  %v107 = vld [vmem:[%s90 + $0x40] sm:$0xf]
  %v108 = vld [vmem:[%s90 + $0x44] sm:$0xf]
  %v109 = vld [vmem:[%s90 + $0x48] sm:$0xf]
  %v110 = vld [vmem:[%s90 + $0x4c] sm:$0xf]
  %v111 = vld [vmem:[%s90 + $0x50] sm:$0xf]
  %v112 = vld [vmem:[%s90 + $0x54] sm:$0xf]
  %v113 = vld [vmem:[%s90 + $0x58] sm:$0xf]
  %v114 = vld [vmem:[%s90 + $0x5c] sm:$0xf]
  %v115 = vld [vmem:[%s90 + $0x60] sm:$0xf]
  %v116 = vld [vmem:[%s90 + $0x64] sm:$0xf]
  %v117 = vld [vmem:[%s90 + $0x68] sm:$0xf]
  %v118 = vld [vmem:[%s90 + $0x6c] sm:$0xf]
  %v119 = vld [vmem:[%s90 + $0x70] sm:$0xf]
  %v120 = vld [vmem:[%s90 + $0x74] sm:$0xf]
  %v121 = vld [vmem:[%s90 + $0x78] sm:$0xf]
  %v122 = vld [vmem:[%s90 + $0x7c] sm:$0xf]
  %v123 = vld [vmem:[%s90 + $0x80] sm:$0xf]
  %v124 = vld [vmem:[%s90 + $0x84] sm:$0xf]
  %v125 = vld [vmem:[%s90 + $0x88] sm:$0xf]
  %v126 = vld [vmem:[%s90 + $0x8c] sm:$0xf]
  %v127 = vld [vmem:[%s90 + $0x90] sm:$0xf]
  %v128 = vld [vmem:[%s90 + $0x94] sm:$0xf]
  %v129 = vld [vmem:[%s90 + $0x98] sm:$0xf]
  %v130 = vld [vmem:[%s90 + $0x9c] sm:$0xf]
  %v131 = vld [vmem:[%s90 + $0xa0] sm:$0xf]
  %v132 = vld [vmem:[%s90 + $0xa4] sm:$0xf]
  %v133 = vld [vmem:[%s90 + $0xa8] sm:$0xf]
  %v134 = vld [vmem:[%s90 + $0xac] sm:$0xf]
  %v135 = vld [vmem:[%s90 + $0xb0] sm:$0xf]
  %v136 = vld [vmem:[%s90 + $0xb4] sm:$0xf]
  %v137 = vld [vmem:[%s90 + $0xb8] sm:$0xf]
  %v138 = vld [vmem:[%s90 + $0xbc] sm:$0xf]
  %v139 = vld [vmem:[%s90 + $0xc0] sm:$0xf]
  %v140 = vld [vmem:[%s90 + $0xc4] sm:$0xf]
  %v141 = vld [vmem:[%s90 + $0xc8] sm:$0xf]
  %v142 = vld [vmem:[%s90 + $0xcc] sm:$0xf]
  %v143 = vld [vmem:[%s90 + $0xd0] sm:$0xf]
  %v144 = vld [vmem:[%s90 + $0xd4] sm:$0xf]
  %v145 = vld [vmem:[%s90 + $0xd8] sm:$0xf]
  %v146 = vld [vmem:[%s90 + $0xdc] sm:$0xf]
  %v147 = vld [vmem:[%s90 + $0xe0] sm:$0xf]
  %v148 = vld [vmem:[%s90 + $0xe4] sm:$0xf]
  %v149 = vld [vmem:[%s90 + $0xe8] sm:$0xf]
  %v150 = vld [vmem:[%s90 + $0xec] sm:$0xf]
  %v151 = vld [vmem:[%s90 + $0xf0] sm:$0xf]
  %v152 = vld [vmem:[%s90 + $0xf4] sm:$0xf]
  %v153 = vld [vmem:[%s90 + $0xf8] sm:$0xf]
  %v154 = vld [vmem:[%s90 + $0xfc] sm:$0xf]
  %v155 = vld [vmem:[#allocation2] sm:$0xff]
  %v156 = vld [vmem:[#allocation2 + $0x8] sm:$0xff]
  %v157 = vld [vmem:[#allocation2 + $0x10] sm:$0xff]
  %v158 = vld [vmem:[#allocation2 + $0x18] sm:$0xff]
  %v159 = vld [vmem:[#allocation2 + $0x20] sm:$0xff]
  %v160 = vld [vmem:[#allocation2 + $0x28] sm:$0xff]
  %v161 = vld [vmem:[#allocation2 + $0x30] sm:$0xff]
  %v162 = vld [vmem:[#allocation2 + $0x38] sm:$0xff]
  %v163 = vld [vmem:[#allocation2 + $0x40] sm:$0xff]
  %v164 = vld [vmem:[#allocation2 + $0x48] sm:$0xff]
  %v165 = vld [vmem:[#allocation2 + $0x50] sm:$0xff]
  %v166 = vld [vmem:[#allocation2 + $0x58] sm:$0xff]
  %v167 = vld [vmem:[#allocation2 + $0x60] sm:$0xff]
  %v168 = vld [vmem:[#allocation2 + $0x68] sm:$0xff]
  %v169 = vld [vmem:[#allocation2 + $0x70] sm:$0xff]
  %v170 = vld [vmem:[#allocation2 + $0x78] sm:$0xff]
  %v171 = vld [vmem:[#allocation2 + $0x80] sm:$0xff]
  %v172 = vld [vmem:[#allocation2 + $0x88] sm:$0xff]
  %v173 = vld [vmem:[#allocation2 + $0x90] sm:$0xff]
  %v174 = vld [vmem:[#allocation2 + $0x98] sm:$0xff]
  %v175 = vld [vmem:[#allocation2 + $0xa0] sm:$0xff]
  %v176 = vld [vmem:[#allocation2 + $0xa8] sm:$0xff]
  %v177 = vld [vmem:[#allocation2 + $0xb0] sm:$0xff]
  %v178 = vld [vmem:[#allocation2 + $0xb8] sm:$0xff]
  %v179 = vld [vmem:[#allocation2 + $0xc0] sm:$0xff]
  %v180 = vld [vmem:[#allocation2 + $0xc8] sm:$0xff]
  %v181 = vld [vmem:[#allocation2 + $0xd0] sm:$0xff]
  %v182 = vld [vmem:[#allocation2 + $0xd8] sm:$0xff]
  %v183 = vld [vmem:[#allocation2 + $0xe0] sm:$0xff]
  %v184 = vld [vmem:[#allocation2 + $0xe8] sm:$0xff]
  %v185 = vld [vmem:[#allocation2 + $0xf0] sm:$0xff]
  %v186 = vld [vmem:[#allocation2 + $0xf8] sm:$0xff]
  %v187 = vld [vmem:[#allocation2 + $0x100] sm:$0xff]
  %v188 = vld [vmem:[#allocation2 + $0x108] sm:$0xff]
  %v189 = vld [vmem:[#allocation2 + $0x110] sm:$0xff]
  %v190 = vld [vmem:[#allocation2 + $0x118] sm:$0xff]
  %v191 = vld [vmem:[#allocation2 + $0x120] sm:$0xff]
  %v192 = vld [vmem:[#allocation2 + $0x128] sm:$0xff]
  %v193 = vld [vmem:[#allocation2 + $0x130] sm:$0xff]
  %v194 = vld [vmem:[#allocation2 + $0x138] sm:$0xff]
  %v195 = vld [vmem:[#allocation2 + $0x140] sm:$0xff]
  %v196 = vld [vmem:[#allocation2 + $0x148] sm:$0xff]
  %v197 = vld [vmem:[#allocation2 + $0x150] sm:$0xff]
  %v198 = vld [vmem:[#allocation2 + $0x158] sm:$0xff]
  %v199 = vld [vmem:[#allocation2 + $0x160] sm:$0xff]
  %v200 = vld [vmem:[#allocation2 + $0x168] sm:$0xff]
  %v201 = vld [vmem:[#allocation2 + $0x170] sm:$0xff]
  %v202 = vld [vmem:[#allocation2 + $0x178] sm:$0xff]
  %v203 = vld [vmem:[#allocation2 + $0x180] sm:$0xff]
  %v204 = vld [vmem:[#allocation2 + $0x188] sm:$0xff]
  %v205 = vld [vmem:[#allocation2 + $0x190] sm:$0xff]
  %v206 = vld [vmem:[#allocation2 + $0x198] sm:$0xff]
  %v207 = vld [vmem:[#allocation2 + $0x1a0] sm:$0xff]
  %v208 = vld [vmem:[#allocation2 + $0x1a8] sm:$0xff]
  %v209 = vld [vmem:[#allocation2 + $0x1b0] sm:$0xff]
  %v210 = vld [vmem:[#allocation2 + $0x1b8] sm:$0xff]
  %v211 = vld [vmem:[#allocation2 + $0x1c0] sm:$0xff]
  %v212 = vld [vmem:[#allocation2 + $0x1c8] sm:$0xff]
  %v213 = vld [vmem:[#allocation2 + $0x1d0] sm:$0xff]
  %v214 = vld [vmem:[#allocation2 + $0x1d8] sm:$0xff]
  %v215 = vld [vmem:[#allocation2 + $0x1e0] sm:$0xff]
  %v216 = vld [vmem:[#allocation2 + $0x1e8] sm:$0xff]
  %v217 = vld [vmem:[#allocation2 + $0x1f0] sm:$0xff]
  %v218 = vld [vmem:[#allocation2 + $0x1f8] sm:$0xff]
  %v219 = vld [vmem:[%s0] sm:$0xff]
  %v220 = vld [vmem:[%s0 + $0x8] sm:$0xff]
  %v221 = vld [vmem:[%s0 + $0x10] sm:$0xff]
  %v222 = vld [vmem:[%s0 + $0x18] sm:$0xff]
  %v223 = vld [vmem:[%s0 + $0x20] sm:$0xff]
  %v224 = vld [vmem:[%s0 + $0x28] sm:$0xff]
  %v225 = vld [vmem:[%s0 + $0x30] sm:$0xff]
  %v226 = vld [vmem:[%s0 + $0x38] sm:$0xff]
  %v227 = vld [vmem:[%s0 + $0x40] sm:$0xff]
  %v228 = vld [vmem:[%s0 + $0x48] sm:$0xff]
  %v229 = vld [vmem:[%s0 + $0x50] sm:$0xff]
  %v230 = vld [vmem:[%s0 + $0x58] sm:$0xff]
  %v231 = vld [vmem:[%s0 + $0x60] sm:$0xff]
  %v232 = vld [vmem:[%s0 + $0x68] sm:$0xff]
  %v233 = vld [vmem:[%s0 + $0x70] sm:$0xff]
  %v234 = vld [vmem:[%s0 + $0x78] sm:$0xff]
  %v235 = vld [vmem:[%s0 + $0x80] sm:$0xff]
  %v236 = vld [vmem:[%s0 + $0x88] sm:$0xff]
  %v237 = vld [vmem:[%s0 + $0x90] sm:$0xff]
  %v238 = vld [vmem:[%s0 + $0x98] sm:$0xff]
  %v239 = vld [vmem:[%s0 + $0xa0] sm:$0xff]
  %v240 = vld [vmem:[%s0 + $0xa8] sm:$0xff]
  %v241 = vld [vmem:[%s0 + $0xb0] sm:$0xff]
  %v242 = vld [vmem:[%s0 + $0xb8] sm:$0xff]
  %v243 = vld [vmem:[%s0 + $0xc0] sm:$0xff]
  %v244 = vld [vmem:[%s0 + $0xc8] sm:$0xff]
  %v245 = vld [vmem:[%s0 + $0xd0] sm:$0xff]
  %v246 = vld [vmem:[%s0 + $0xd8] sm:$0xff]
  %v247 = vld [vmem:[%s0 + $0xe0] sm:$0xff]
  %v248 = vld [vmem:[%s0 + $0xe8] sm:$0xff]
  %v249 = vld [vmem:[%s0 + $0xf0] sm:$0xff]
  %v250 = vld [vmem:[%s0 + $0xf8] sm:$0xff]
  %v251 = vld [vmem:[%s0 + $0x100] sm:$0xff]
  %v252 = vld [vmem:[%s0 + $0x108] sm:$0xff]
  %v253 = vld [vmem:[%s0 + $0x110] sm:$0xff]
  %v254 = vld [vmem:[%s0 + $0x118] sm:$0xff]
  %v255 = vld [vmem:[%s0 + $0x120] sm:$0xff]
  %v256 = vld [vmem:[%s0 + $0x128] sm:$0xff]
  %v257 = vld [vmem:[%s0 + $0x130] sm:$0xff]
  %v258 = vld [vmem:[%s0 + $0x138] sm:$0xff]
  %v259 = vld [vmem:[%s0 + $0x140] sm:$0xff]
  %v260 = vld [vmem:[%s0 + $0x148] sm:$0xff]
  %v261 = vld [vmem:[%s0 + $0x150] sm:$0xff]
  %v262 = vld [vmem:[%s0 + $0x158] sm:$0xff]
  %v263 = vld [vmem:[%s0 + $0x160] sm:$0xff]
  %v264 = vld [vmem:[%s0 + $0x168] sm:$0xff]
  %v265 = vld [vmem:[%s0 + $0x170] sm:$0xff]
  %v266 = vld [vmem:[%s0 + $0x178] sm:$0xff]
  %v267 = vld [vmem:[%s0 + $0x180] sm:$0xff]
  %v268 = vld [vmem:[%s0 + $0x188] sm:$0xff]
  %v269 = vld [vmem:[%s0 + $0x190] sm:$0xff]
  %v270 = vld [vmem:[%s0 + $0x198] sm:$0xff]
  %v271 = vld [vmem:[%s0 + $0x1a0] sm:$0xff]
  %v272 = vld [vmem:[%s0 + $0x1a8] sm:$0xff]
  %v273 = vld [vmem:[%s0 + $0x1b0] sm:$0xff]
  %v274 = vld [vmem:[%s0 + $0x1b8] sm:$0xff]
  %v275 = vld [vmem:[%s0 + $0x1c0] sm:$0xff]
  %v276 = vld [vmem:[%s0 + $0x1c8] sm:$0xff]
  %v277 = vld [vmem:[%s0 + $0x1d0] sm:$0xff]
  %v278 = vld [vmem:[%s0 + $0x1d8] sm:$0xff]
  %v279 = vld [vmem:[%s0 + $0x1e0] sm:$0xff]
  %v280 = vld [vmem:[%s0 + $0x1e8] sm:$0xff]
  %v281 = vld [vmem:[%s0 + $0x1f0] sm:$0xff]
  %v282 = vld [vmem:[%s0 + $0x1f8] sm:$0xff]
  %v283 = vld [vmem:[%s0 + $0x200] sm:$0xff]
  %v284 = vld [vmem:[%s0 + $0x208] sm:$0xff]
  %v285 = vld [vmem:[%s0 + $0x210] sm:$0xff]
  %v286 = vld [vmem:[%s0 + $0x218] sm:$0xff]
  %v287 = vld [vmem:[%s0 + $0x220] sm:$0xff]
  %v288 = vld [vmem:[%s0 + $0x228] sm:$0xff]
  %v289 = vld [vmem:[%s0 + $0x230] sm:$0xff]
  %v290 = vld [vmem:[%s0 + $0x238] sm:$0xff]
  %v291 = vld [vmem:[%s0 + $0x240] sm:$0xff]
  %v292 = vld [vmem:[%s0 + $0x248] sm:$0xff]
  %v293 = vld [vmem:[%s0 + $0x250] sm:$0xff]
  %v294 = vld [vmem:[%s0 + $0x258] sm:$0xff]
  %v295 = vld [vmem:[%s0 + $0x260] sm:$0xff]
  %v296 = vld [vmem:[%s0 + $0x268] sm:$0xff]
  %v297 = vld [vmem:[%s0 + $0x270] sm:$0xff]
  %v298 = vld [vmem:[%s0 + $0x278] sm:$0xff]
  %v299 = vld [vmem:[%s0 + $0x280] sm:$0xff]
  %v300 = vld [vmem:[%s0 + $0x288] sm:$0xff]
  %v301 = vld [vmem:[%s0 + $0x290] sm:$0xff]
  %v302 = vld [vmem:[%s0 + $0x298] sm:$0xff]
  %v303 = vld [vmem:[%s0 + $0x2a0] sm:$0xff]
  %v304 = vld [vmem:[%s0 + $0x2a8] sm:$0xff]
  %v305 = vld [vmem:[%s0 + $0x2b0] sm:$0xff]
  %v306 = vld [vmem:[%s0 + $0x2b8] sm:$0xff]
  %v307 = vld [vmem:[%s0 + $0x2c0] sm:$0xff]
  %v308 = vld [vmem:[%s0 + $0x2c8] sm:$0xff]
  %v309 = vld [vmem:[%s0 + $0x2d0] sm:$0xff]
  %v310 = vld [vmem:[%s0 + $0x2d8] sm:$0xff]
  %v311 = vld [vmem:[%s0 + $0x2e0] sm:$0xff]
  %v312 = vld [vmem:[%s0 + $0x2e8] sm:$0xff]
  %v313 = vld [vmem:[%s0 + $0x2f0] sm:$0xff]
  %v314 = vld [vmem:[%s0 + $0x2f8] sm:$0xff]
  %v315 = vld [vmem:[%s0 + $0x300] sm:$0xff]
  %v316 = vld [vmem:[%s0 + $0x308] sm:$0xff]
  %v317 = vld [vmem:[%s0 + $0x310] sm:$0xff]
  %v318 = vld [vmem:[%s0 + $0x318] sm:$0xff]
  %v319 = vld [vmem:[%s0 + $0x320] sm:$0xff]
  %v320 = vld [vmem:[%s0 + $0x328] sm:$0xff]
  %v321 = vld [vmem:[%s0 + $0x330] sm:$0xff]
  %v322 = vld [vmem:[%s0 + $0x338] sm:$0xff]
  %v323 = vld [vmem:[%s0 + $0x340] sm:$0xff]
  %v324 = vld [vmem:[%s0 + $0x348] sm:$0xff]
  %v325 = vld [vmem:[%s0 + $0x350] sm:$0xff]
  %v326 = vld [vmem:[%s0 + $0x358] sm:$0xff]
  %v327 = vld [vmem:[%s0 + $0x360] sm:$0xff]
  %v328 = vld [vmem:[%s0 + $0x368] sm:$0xff]
  %v329 = vld [vmem:[%s0 + $0x370] sm:$0xff]
  %v330 = vld [vmem:[%s0 + $0x378] sm:$0xff]
  %v331 = vld [vmem:[%s0 + $0x380] sm:$0xff]
  %v332 = vld [vmem:[%s0 + $0x388] sm:$0xff]
  %v333 = vld [vmem:[%s0 + $0x390] sm:$0xff]
  %v334 = vld [vmem:[%s0 + $0x398] sm:$0xff]
  %v335 = vld [vmem:[%s0 + $0x3a0] sm:$0xff]
  %v336 = vld [vmem:[%s0 + $0x3a8] sm:$0xff]
  %v337 = vld [vmem:[%s0 + $0x3b0] sm:$0xff]
  %v338 = vld [vmem:[%s0 + $0x3b8] sm:$0xff]
  %v339 = vld [vmem:[%s0 + $0x3c0] sm:$0xff]
  %v340 = vld [vmem:[%s0 + $0x3c8] sm:$0xff]
  %v341 = vld [vmem:[%s0 + $0x3d0] sm:$0xff]
  %v342 = vld [vmem:[%s0 + $0x3d8] sm:$0xff]
  %v343 = vld [vmem:[%s0 + $0x3e0] sm:$0xff]
  %v344 = vld [vmem:[%s0 + $0x3e8] sm:$0xff]
  %v345 = vld [vmem:[%s0 + $0x3f0] sm:$0xff]
  %v346 = vld [vmem:[%s0 + $0x3f8] sm:$0xff]
  %v475 = vunpack.c.l.b16 %v219
  %v476 = vunpack.c.h.b16 %v219
  %v477 = vunpack.c.l.b16 %v220
  %v478 = vunpack.c.h.b16 %v220
  %v479 = vunpack.c.l.b16 %v221
  %v480 = vunpack.c.h.b16 %v221
  %v481 = vunpack.c.l.b16 %v222
  %v482 = vunpack.c.h.b16 %v222
  %v483 = vunpack.c.l.b16 %v223
  %v484 = vunpack.c.h.b16 %v223
  %v485 = vunpack.c.l.b16 %v224
  %v486 = vunpack.c.h.b16 %v224
  %v487 = vunpack.c.l.b16 %v225
  %v488 = vunpack.c.h.b16 %v225
  %v489 = vunpack.c.l.b16 %v226
  %v490 = vunpack.c.h.b16 %v226
  %v491 = vunpack.c.l.b16 %v227
  %v492 = vunpack.c.h.b16 %v227
  %v493 = vunpack.c.l.b16 %v228
  %v494 = vunpack.c.h.b16 %v228
  %v495 = vunpack.c.l.b16 %v229
  %v496 = vunpack.c.h.b16 %v229
  %v497 = vunpack.c.l.b16 %v230
  %v498 = vunpack.c.h.b16 %v230
  %v499 = vunpack.c.l.b16 %v231
  %v500 = vunpack.c.h.b16 %v231
  %v501 = vunpack.c.l.b16 %v232
  %v502 = vunpack.c.h.b16 %v232
  %v503 = vunpack.c.l.b16 %v233
  %v504 = vunpack.c.h.b16 %v233
  %v505 = vunpack.c.l.b16 %v234
  %v506 = vunpack.c.h.b16 %v234
  %v507 = vunpack.c.l.b16 %v235
  %v508 = vunpack.c.h.b16 %v235
  %v509 = vunpack.c.l.b16 %v236
  %v510 = vunpack.c.h.b16 %v236
  %v511 = vunpack.c.l.b16 %v237
  %v512 = vunpack.c.h.b16 %v237
  %v513 = vunpack.c.l.b16 %v238
  %v514 = vunpack.c.h.b16 %v238
  %v515 = vunpack.c.l.b16 %v239
  %v516 = vunpack.c.h.b16 %v239
  %v517 = vunpack.c.l.b16 %v240
  %v518 = vunpack.c.h.b16 %v240
  %v519 = vunpack.c.l.b16 %v241
  %v520 = vunpack.c.h.b16 %v241
  %v521 = vunpack.c.l.b16 %v242
  %v522 = vunpack.c.h.b16 %v242
  %v523 = vunpack.c.l.b16 %v243
  %v524 = vunpack.c.h.b16 %v243
  %v525 = vunpack.c.l.b16 %v244
  %v526 = vunpack.c.h.b16 %v244
  %v527 = vunpack.c.l.b16 %v245
  %v528 = vunpack.c.h.b16 %v245
  %v529 = vunpack.c.l.b16 %v246
  %v530 = vunpack.c.h.b16 %v246
  %v531 = vunpack.c.l.b16 %v247
  %v532 = vunpack.c.h.b16 %v247
  %v533 = vunpack.c.l.b16 %v248
  %v534 = vunpack.c.h.b16 %v248
  %v535 = vunpack.c.l.b16 %v249
  %v536 = vunpack.c.h.b16 %v249
  %v537 = vunpack.c.l.b16 %v250
  %v538 = vunpack.c.h.b16 %v250
  %v539 = vunpack.c.l.b16 %v251
  %v540 = vunpack.c.h.b16 %v251
  %v541 = vunpack.c.l.b16 %v252
  %v542 = vunpack.c.h.b16 %v252
  %v543 = vunpack.c.l.b16 %v253
  %v544 = vunpack.c.h.b16 %v253
  %v545 = vunpack.c.l.b16 %v254
  %v546 = vunpack.c.h.b16 %v254
  %v547 = vunpack.c.l.b16 %v255
  %v548 = vunpack.c.h.b16 %v255
  %v549 = vunpack.c.l.b16 %v256
  %v550 = vunpack.c.h.b16 %v256
  %v551 = vunpack.c.l.b16 %v257
  %v552 = vunpack.c.h.b16 %v257
  %v553 = vunpack.c.l.b16 %v258
  %v554 = vunpack.c.h.b16 %v258
  %v555 = vunpack.c.l.b16 %v259
  %v556 = vunpack.c.h.b16 %v259
  %v557 = vunpack.c.l.b16 %v260
  %v558 = vunpack.c.h.b16 %v260
  %v559 = vunpack.c.l.b16 %v261
  %v560 = vunpack.c.h.b16 %v261
  %v561 = vunpack.c.l.b16 %v262
  %v562 = vunpack.c.h.b16 %v262
  %v563 = vunpack.c.l.b16 %v263
  %v564 = vunpack.c.h.b16 %v263
  %v565 = vunpack.c.l.b16 %v264
  %v566 = vunpack.c.h.b16 %v264
  %v567 = vunpack.c.l.b16 %v265
  %v568 = vunpack.c.h.b16 %v265
  %v569 = vunpack.c.l.b16 %v266
  %v570 = vunpack.c.h.b16 %v266
  %v571 = vunpack.c.l.b16 %v267
  %v572 = vunpack.c.h.b16 %v267
  %v573 = vunpack.c.l.b16 %v268
  %v574 = vunpack.c.h.b16 %v268
  %v575 = vunpack.c.l.b16 %v269
  %v576 = vunpack.c.h.b16 %v269
  %v577 = vunpack.c.l.b16 %v270
  %v578 = vunpack.c.h.b16 %v270
  %v579 = vunpack.c.l.b16 %v271
  %v580 = vunpack.c.h.b16 %v271
  %v581 = vunpack.c.l.b16 %v272
  %v582 = vunpack.c.h.b16 %v272
  %v583 = vunpack.c.l.b16 %v273
  %v584 = vunpack.c.h.b16 %v273
  %v585 = vunpack.c.l.b16 %v274
  %v586 = vunpack.c.h.b16 %v274
  %v587 = vunpack.c.l.b16 %v275
  %v588 = vunpack.c.h.b16 %v275
  %v589 = vunpack.c.l.b16 %v276
  %v590 = vunpack.c.h.b16 %v276
  %v591 = vunpack.c.l.b16 %v277
  %v592 = vunpack.c.h.b16 %v277
  %v593 = vunpack.c.l.b16 %v278
  %v594 = vunpack.c.h.b16 %v278
  %v595 = vunpack.c.l.b16 %v279
  %v596 = vunpack.c.h.b16 %v279
  %v597 = vunpack.c.l.b16 %v280
  %v598 = vunpack.c.h.b16 %v280
  %v599 = vunpack.c.l.b16 %v281
  %v600 = vunpack.c.h.b16 %v281
  %v601 = vunpack.c.l.b16 %v282
  %v602 = vunpack.c.h.b16 %v282
  %v603 = vunpack.c.l.b16 %v283
  %v604 = vunpack.c.h.b16 %v283
  %v605 = vunpack.c.l.b16 %v284
  %v606 = vunpack.c.h.b16 %v284
  %v607 = vunpack.c.l.b16 %v285
  %v608 = vunpack.c.h.b16 %v285
  %v609 = vunpack.c.l.b16 %v286
  %v610 = vunpack.c.h.b16 %v286
  %v611 = vunpack.c.l.b16 %v287
  %v612 = vunpack.c.h.b16 %v287
  %v613 = vunpack.c.l.b16 %v288
  %v614 = vunpack.c.h.b16 %v288
  %v615 = vunpack.c.l.b16 %v289
  %v616 = vunpack.c.h.b16 %v289
  %v617 = vunpack.c.l.b16 %v290
  %v618 = vunpack.c.h.b16 %v290
  %v619 = vunpack.c.l.b16 %v291
  %v620 = vunpack.c.h.b16 %v291
  %v621 = vunpack.c.l.b16 %v292
  %v622 = vunpack.c.h.b16 %v292
  %v623 = vunpack.c.l.b16 %v293
  %v624 = vunpack.c.h.b16 %v293
  %v625 = vunpack.c.l.b16 %v294
  %v626 = vunpack.c.h.b16 %v294
  %v627 = vunpack.c.l.b16 %v295
  %v628 = vunpack.c.h.b16 %v295
  %v629 = vunpack.c.l.b16 %v296
  %v630 = vunpack.c.h.b16 %v296
  %v631 = vunpack.c.l.b16 %v297
  %v632 = vunpack.c.h.b16 %v297
  %v633 = vunpack.c.l.b16 %v298
  %v634 = vunpack.c.h.b16 %v298
  %v635 = vunpack.c.l.b16 %v299
  %v636 = vunpack.c.h.b16 %v299
  %v637 = vunpack.c.l.b16 %v300
  %v638 = vunpack.c.h.b16 %v300
  %v639 = vunpack.c.l.b16 %v301
  %v640 = vunpack.c.h.b16 %v301
  %v641 = vunpack.c.l.b16 %v302
  %v642 = vunpack.c.h.b16 %v302
  %v643 = vunpack.c.l.b16 %v303
  %v644 = vunpack.c.h.b16 %v303
  %v645 = vunpack.c.l.b16 %v304
  %v646 = vunpack.c.h.b16 %v304
  %v647 = vunpack.c.l.b16 %v305
  %v648 = vunpack.c.h.b16 %v305
  %v649 = vunpack.c.l.b16 %v306
  %v650 = vunpack.c.h.b16 %v306
  %v651 = vunpack.c.l.b16 %v307
  %v652 = vunpack.c.h.b16 %v307
  %v653 = vunpack.c.l.b16 %v308
  %v654 = vunpack.c.h.b16 %v308
  %v655 = vunpack.c.l.b16 %v309
  %v656 = vunpack.c.h.b16 %v309
  %v657 = vunpack.c.l.b16 %v310
  %v658 = vunpack.c.h.b16 %v310
  %v659 = vunpack.c.l.b16 %v311
  %v660 = vunpack.c.h.b16 %v311
  %v661 = vunpack.c.l.b16 %v312
  %v662 = vunpack.c.h.b16 %v312
  %v663 = vunpack.c.l.b16 %v313
  %v664 = vunpack.c.h.b16 %v313
  %v665 = vunpack.c.l.b16 %v314
  %v666 = vunpack.c.h.b16 %v314
  %v667 = vunpack.c.l.b16 %v315
  %v668 = vunpack.c.h.b16 %v315
  %v669 = vunpack.c.l.b16 %v316
  %v670 = vunpack.c.h.b16 %v316
  %v671 = vunpack.c.l.b16 %v317
  %v672 = vunpack.c.h.b16 %v317
  %v673 = vunpack.c.l.b16 %v318
  %v674 = vunpack.c.h.b16 %v318
  %v675 = vunpack.c.l.b16 %v319
  %v676 = vunpack.c.h.b16 %v319
  %v677 = vunpack.c.l.b16 %v320
  %v678 = vunpack.c.h.b16 %v320
  %v679 = vunpack.c.l.b16 %v321
  %v680 = vunpack.c.h.b16 %v321
  %v681 = vunpack.c.l.b16 %v322
  %v682 = vunpack.c.h.b16 %v322
  %v683 = vunpack.c.l.b16 %v323
  %v684 = vunpack.c.h.b16 %v323
  %v685 = vunpack.c.l.b16 %v324
  %v686 = vunpack.c.h.b16 %v324
  %v687 = vunpack.c.l.b16 %v325
  %v688 = vunpack.c.h.b16 %v325
  %v689 = vunpack.c.l.b16 %v326
  %v690 = vunpack.c.h.b16 %v326
  %v691 = vunpack.c.l.b16 %v327
  %v692 = vunpack.c.h.b16 %v327
  %v693 = vunpack.c.l.b16 %v328
  %v694 = vunpack.c.h.b16 %v328
  %v695 = vunpack.c.l.b16 %v329
  %v696 = vunpack.c.h.b16 %v329
  %v697 = vunpack.c.l.b16 %v330
  %v698 = vunpack.c.h.b16 %v330
  %v699 = vunpack.c.l.b16 %v331
  %v700 = vunpack.c.h.b16 %v331
  %v701 = vunpack.c.l.b16 %v332
  %v702 = vunpack.c.h.b16 %v332
  %v703 = vunpack.c.l.b16 %v333
  %v704 = vunpack.c.h.b16 %v333
  %v705 = vunpack.c.l.b16 %v334
  %v706 = vunpack.c.h.b16 %v334
  %v707 = vunpack.c.l.b16 %v335
  %v708 = vunpack.c.h.b16 %v335
  %v709 = vunpack.c.l.b16 %v336
  %v710 = vunpack.c.h.b16 %v336
  %v711 = vunpack.c.l.b16 %v337
  %v712 = vunpack.c.h.b16 %v337
  %v713 = vunpack.c.l.b16 %v338
  %v714 = vunpack.c.h.b16 %v338
  %v715 = vunpack.c.l.b16 %v339
  %v716 = vunpack.c.h.b16 %v339
  %v717 = vunpack.c.l.b16 %v340
  %v718 = vunpack.c.h.b16 %v340
  %v719 = vunpack.c.l.b16 %v341
  %v720 = vunpack.c.h.b16 %v341
  %v721 = vunpack.c.l.b16 %v342
  %v722 = vunpack.c.h.b16 %v342
  %v723 = vunpack.c.l.b16 %v343
  %v724 = vunpack.c.h.b16 %v343
  %v725 = vunpack.c.l.b16 %v344
  %v726 = vunpack.c.h.b16 %v344
  %v727 = vunpack.c.l.b16 %v345
  %v728 = vunpack.c.h.b16 %v345
  %v729 = vunpack.c.l.b16 %v346
  %v730 = vunpack.c.h.b16 %v346
  %v731 = vpack.c.b16 %v479, %v475
  %v732 = vpack.c.b16 %v480, %v476
  %v733 = vpack.c.b16 %v481, %v477
  %v734 = vpack.c.b16 %v482, %v478
  %v735 = vpack.c.b16 %v487, %v483
  %v736 = vpack.c.b16 %v488, %v484
  %v737 = vpack.c.b16 %v489, %v485
  %v738 = vpack.c.b16 %v490, %v486
  %v739 = vpack.c.b16 %v495, %v491
  %v740 = vpack.c.b16 %v496, %v492
  %v741 = vpack.c.b16 %v497, %v493
  %v742 = vpack.c.b16 %v498, %v494
  %v743 = vpack.c.b16 %v503, %v499
  %v744 = vpack.c.b16 %v504, %v500
  %v745 = vpack.c.b16 %v505, %v501
  %v746 = vpack.c.b16 %v506, %v502
  %v747 = vpack.c.b16 %v511, %v507
  %v748 = vpack.c.b16 %v512, %v508
  %v749 = vpack.c.b16 %v513, %v509
  %v750 = vpack.c.b16 %v514, %v510
  %v751 = vpack.c.b16 %v519, %v515
  %v752 = vpack.c.b16 %v520, %v516
  %v753 = vpack.c.b16 %v521, %v517
  %v754 = vpack.c.b16 %v522, %v518
  %v755 = vpack.c.b16 %v527, %v523
  %v756 = vpack.c.b16 %v528, %v524
  %v757 = vpack.c.b16 %v529, %v525
  %v758 = vpack.c.b16 %v530, %v526
  %v759 = vpack.c.b16 %v535, %v531
  %v760 = vpack.c.b16 %v536, %v532
  %v761 = vpack.c.b16 %v537, %v533
  %v762 = vpack.c.b16 %v538, %v534
  %v763 = vpack.c.b16 %v543, %v539
  %v764 = vpack.c.b16 %v544, %v540
  %v765 = vpack.c.b16 %v545, %v541
  %v766 = vpack.c.b16 %v546, %v542
  %v767 = vpack.c.b16 %v551, %v547
  %v768 = vpack.c.b16 %v552, %v548
  %v769 = vpack.c.b16 %v553, %v549
  %v770 = vpack.c.b16 %v554, %v550
  %v771 = vpack.c.b16 %v559, %v555
  %v772 = vpack.c.b16 %v560, %v556
  %v773 = vpack.c.b16 %v561, %v557
  %v774 = vpack.c.b16 %v562, %v558
  %v775 = vpack.c.b16 %v567, %v563
  %v776 = vpack.c.b16 %v568, %v564
  %v777 = vpack.c.b16 %v569, %v565
  %v778 = vpack.c.b16 %v570, %v566
  %v779 = vpack.c.b16 %v575, %v571
  %v780 = vpack.c.b16 %v576, %v572
  %v781 = vpack.c.b16 %v577, %v573
  %v782 = vpack.c.b16 %v578, %v574
  %v783 = vpack.c.b16 %v583, %v579
  %v784 = vpack.c.b16 %v584, %v580
  %v785 = vpack.c.b16 %v585, %v581
  %v786 = vpack.c.b16 %v586, %v582
  %v787 = vpack.c.b16 %v591, %v587
  %v788 = vpack.c.b16 %v592, %v588
  %v789 = vpack.c.b16 %v593, %v589
  %v790 = vpack.c.b16 %v594, %v590
  %v791 = vpack.c.b16 %v599, %v595
  %v792 = vpack.c.b16 %v600, %v596
  %v793 = vpack.c.b16 %v601, %v597
  %v794 = vpack.c.b16 %v602, %v598
  %v795 = vpack.c.b16 %v607, %v603
  %v796 = vpack.c.b16 %v608, %v604
  %v797 = vpack.c.b16 %v609, %v605
  %v798 = vpack.c.b16 %v610, %v606
  %v799 = vpack.c.b16 %v615, %v611
  %v800 = vpack.c.b16 %v616, %v612
  %v801 = vpack.c.b16 %v617, %v613
  %v802 = vpack.c.b16 %v618, %v614
  %v803 = vpack.c.b16 %v623, %v619
  %v804 = vpack.c.b16 %v624, %v620
  %v805 = vpack.c.b16 %v625, %v621
  %v806 = vpack.c.b16 %v626, %v622
  %v807 = vpack.c.b16 %v631, %v627
  %v808 = vpack.c.b16 %v632, %v628
  %v809 = vpack.c.b16 %v633, %v629
  %v810 = vpack.c.b16 %v634, %v630
  %v811 = vpack.c.b16 %v639, %v635
  %v812 = vpack.c.b16 %v640, %v636
  %v813 = vpack.c.b16 %v641, %v637
  %v814 = vpack.c.b16 %v642, %v638
  %v815 = vpack.c.b16 %v647, %v643
  %v816 = vpack.c.b16 %v648, %v644
  %v817 = vpack.c.b16 %v649, %v645
  %v818 = vpack.c.b16 %v650, %v646
  %v819 = vpack.c.b16 %v655, %v651
  %v820 = vpack.c.b16 %v656, %v652
  %v821 = vpack.c.b16 %v657, %v653
  %v822 = vpack.c.b16 %v658, %v654
  %v823 = vpack.c.b16 %v663, %v659
  %v824 = vpack.c.b16 %v664, %v660
  %v825 = vpack.c.b16 %v665, %v661
  %v826 = vpack.c.b16 %v666, %v662
  %v827 = vpack.c.b16 %v671, %v667
  %v828 = vpack.c.b16 %v672, %v668
  %v829 = vpack.c.b16 %v673, %v669
  %v830 = vpack.c.b16 %v674, %v670
  %v831 = vpack.c.b16 %v679, %v675
  %v832 = vpack.c.b16 %v680, %v676
  %v833 = vpack.c.b16 %v681, %v677
  %v834 = vpack.c.b16 %v682, %v678
  %v835 = vpack.c.b16 %v687, %v683
  %v836 = vpack.c.b16 %v688, %v684
  %v837 = vpack.c.b16 %v689, %v685
  %v838 = vpack.c.b16 %v690, %v686
  %v839 = vpack.c.b16 %v695, %v691
  %v840 = vpack.c.b16 %v696, %v692
  %v841 = vpack.c.b16 %v697, %v693
  %v842 = vpack.c.b16 %v698, %v694
  %v843 = vpack.c.b16 %v703, %v699
  %v844 = vpack.c.b16 %v704, %v700
  %v845 = vpack.c.b16 %v705, %v701
  %v846 = vpack.c.b16 %v706, %v702
  %v847 = vpack.c.b16 %v711, %v707
  %v848 = vpack.c.b16 %v712, %v708
  %v849 = vpack.c.b16 %v713, %v709
  %v850 = vpack.c.b16 %v714, %v710
  %v851 = vpack.c.b16 %v719, %v715
  %v852 = vpack.c.b16 %v720, %v716
  %v853 = vpack.c.b16 %v721, %v717
  %v854 = vpack.c.b16 %v722, %v718
  %v855 = vpack.c.b16 %v727, %v723
  %v856 = vpack.c.b16 %v728, %v724
  %v857 = vpack.c.b16 %v729, %v725
  %v858 = vpack.c.b16 %v730, %v726
  %v1051 = vunpack.c.l.b16 %v91
  %v1052 = vunpack.c.l.b16 %v92
  %v1053 = vunpack.c.l.b16 %v93
  %v1054 = vunpack.c.l.b16 %v94
  %v1055 = vunpack.c.l.b16 %v95
  %v1056 = vunpack.c.l.b16 %v96
  %v1057 = vunpack.c.l.b16 %v97
  %v1058 = vunpack.c.l.b16 %v98
  %v1059 = vunpack.c.l.b16 %v99
  %v1060 = vunpack.c.l.b16 %v100
  %v1061 = vunpack.c.l.b16 %v101
  %v1062 = vunpack.c.l.b16 %v102
  %v1063 = vunpack.c.l.b16 %v103
  %v1064 = vunpack.c.l.b16 %v104
  %v1065 = vunpack.c.l.b16 %v105
  %v1066 = vunpack.c.l.b16 %v106
  %v1067 = vunpack.c.l.b16 %v107
  %v1068 = vunpack.c.l.b16 %v108
  %v1069 = vunpack.c.l.b16 %v109
  %v1070 = vunpack.c.l.b16 %v110
  %v1071 = vunpack.c.l.b16 %v111
  %v1072 = vunpack.c.l.b16 %v112
  %v1073 = vunpack.c.l.b16 %v113
  %v1074 = vunpack.c.l.b16 %v114
  %v1075 = vunpack.c.l.b16 %v115
  %v1076 = vunpack.c.l.b16 %v116
  %v1077 = vunpack.c.l.b16 %v117
  %v1078 = vunpack.c.l.b16 %v118
  %v1079 = vunpack.c.l.b16 %v119
  %v1080 = vunpack.c.l.b16 %v120
  %v1081 = vunpack.c.l.b16 %v121
  %v1082 = vunpack.c.l.b16 %v122
  %v1083 = vunpack.c.l.b16 %v123
  %v1084 = vunpack.c.l.b16 %v124
  %v1085 = vunpack.c.l.b16 %v125
  %v1086 = vunpack.c.l.b16 %v126
  %v1087 = vunpack.c.l.b16 %v127
  %v1088 = vunpack.c.l.b16 %v128
  %v1089 = vunpack.c.l.b16 %v129
  %v1090 = vunpack.c.l.b16 %v130
  %v1091 = vunpack.c.l.b16 %v131
  %v1092 = vunpack.c.l.b16 %v132
  %v1093 = vunpack.c.l.b16 %v133
  %v1094 = vunpack.c.l.b16 %v134
  %v1095 = vunpack.c.l.b16 %v135
  %v1096 = vunpack.c.l.b16 %v136
  %v1097 = vunpack.c.l.b16 %v137
  %v1098 = vunpack.c.l.b16 %v138
  %v1099 = vunpack.c.l.b16 %v139
  %v1100 = vunpack.c.l.b16 %v140
  %v1101 = vunpack.c.l.b16 %v141
  %v1102 = vunpack.c.l.b16 %v142
  %v1103 = vunpack.c.l.b16 %v143
  %v1104 = vunpack.c.l.b16 %v144
  %v1105 = vunpack.c.l.b16 %v145
  %v1106 = vunpack.c.l.b16 %v146
  %v1107 = vunpack.c.l.b16 %v147
  %v1108 = vunpack.c.l.b16 %v148
  %v1109 = vunpack.c.l.b16 %v149
  %v1110 = vunpack.c.l.b16 %v150
  %v1111 = vunpack.c.l.b16 %v151
  %v1112 = vunpack.c.l.b16 %v152
  %v1113 = vunpack.c.l.b16 %v153
  %v1114 = vunpack.c.l.b16 %v154
  %v1115 = vpack.c.b16 %v1052, %v1051
  %v1116 = vpack.c.b16 %v1054, %v1053
  %v1117 = vpack.c.b16 %v1056, %v1055
  %v1118 = vpack.c.b16 %v1058, %v1057
  %v1119 = vpack.c.b16 %v1060, %v1059
  %v1120 = vpack.c.b16 %v1062, %v1061
  %v1121 = vpack.c.b16 %v1064, %v1063
  %v1122 = vpack.c.b16 %v1066, %v1065
  %v1123 = vpack.c.b16 %v1068, %v1067
  %v1124 = vpack.c.b16 %v1070, %v1069
  %v1125 = vpack.c.b16 %v1072, %v1071
  %v1126 = vpack.c.b16 %v1074, %v1073
  %v1127 = vpack.c.b16 %v1076, %v1075
  %v1128 = vpack.c.b16 %v1078, %v1077
  %v1129 = vpack.c.b16 %v1080, %v1079
  %v1130 = vpack.c.b16 %v1082, %v1081
  %v1131 = vpack.c.b16 %v1084, %v1083
  %v1132 = vpack.c.b16 %v1086, %v1085
  %v1133 = vpack.c.b16 %v1088, %v1087
  %v1134 = vpack.c.b16 %v1090, %v1089
  %v1135 = vpack.c.b16 %v1092, %v1091
  %v1136 = vpack.c.b16 %v1094, %v1093
  %v1137 = vpack.c.b16 %v1096, %v1095
  %v1138 = vpack.c.b16 %v1098, %v1097
  %v1139 = vpack.c.b16 %v1100, %v1099
  %v1140 = vpack.c.b16 %v1102, %v1101
  %v1141 = vpack.c.b16 %v1104, %v1103
  %v1142 = vpack.c.b16 %v1106, %v1105
  %v1143 = vpack.c.b16 %v1108, %v1107
  %v1144 = vpack.c.b16 %v1110, %v1109
  %v1145 = vpack.c.b16 %v1112, %v1111
  %v1146 = vpack.c.b16 %v1114, %v1113
  %1179 = vmatprep.subr.bf16.mxu0 0
  %1180 = vmatpush1.bf16.msra.mxu0 %v1122
  %1181 = vmatprep.subr.bf16.mxu0 0
  %1182 = vmatpush1.bf16.msra.mxu0 %v1121
  %1183 = vmatprep.subr.bf16.mxu0 0
  %1184 = vmatpush1.bf16.msra.mxu0 %v1120
  %1185 = vmatprep.subr.bf16.mxu0 0
  %1186 = vmatpush1.bf16.msra.mxu0 %v1119
  %1187 = vmatprep.subr.bf16.mxu0 0
  %1188 = vmatpush1.bf16.msra.mxu0 %v1118
  %1189 = vmatprep.subr.bf16.mxu0 0
  %1190 = vmatpush1.bf16.msra.mxu0 %v1117
  %1191 = vmatprep.subr.bf16.mxu0 0
  %1192 = vmatpush1.bf16.msra.mxu0 %v1116
  %1193 = vmatprep.subr.bf16.mxu0 0
  %1194 = vmatpush1.bf16.msra.mxu0 %v1115
  %1195 = vmatprep.subr.bf16.mxu0 0
  %1196 = vmatpush2.bf16.msra.mxu0 %v1130
  %1197 = vmatprep.subr.bf16.mxu0 0
  %1198 = vmatpush2.bf16.msra.mxu0 %v1129
  %1199 = vmatprep.subr.bf16.mxu0 0
  %1200 = vmatpush2.bf16.msra.mxu0 %v1128
  %1201 = vmatprep.subr.bf16.mxu0 0
  %1202 = vmatpush2.bf16.msra.mxu0 %v1127
  %1203 = vmatprep.subr.bf16.mxu0 0
  %1204 = vmatpush2.bf16.msra.mxu0 %v1126
  %1205 = vmatprep.subr.bf16.mxu0 0
  %1206 = vmatpush2.bf16.msra.mxu0 %v1125
  %1207 = vmatprep.subr.bf16.mxu0 0
  %1208 = vmatpush2.bf16.msra.mxu0 %v1124
  %1209 = vmatprep.subr.bf16.mxu0 0
  %1210 = vmatpush2.bf16.msra.mxu0 %v1123
  %1211 = vmatprep.mubr.bf16.mxu0 %v732
  %1212 = vmatmul.mubr.bf16.gmra.mxu0 %v731
  %v1213 = vpop.f32.mrf.mxu0
  %v1214 = vadd.f32 0.0, %v1213
  %v1215 = vpop.f32.mrf.mxu0
  %v1216 = vpop.f32.mrf.mxu0
  %v1217 = vadd.f32 0.0, %v1216
  %v1218 = vpop.f32.mrf.mxu0
  %1219 = vmatprep.mubr.bf16.mxu0 %v736
  %1220 = vmatmul.mubr.bf16.gmra.mxu0 %v735
  %v1221 = vpop.f32.mrf.mxu0
  %v1222 = vadd.f32 0.0, %v1221
  %v1223 = vpop.f32.mrf.mxu0
  %v1224 = vpop.f32.mrf.mxu0
  %v1225 = vadd.f32 0.0, %v1224
  %v1226 = vpop.f32.mrf.mxu0
  %1227 = vmatprep.mubr.bf16.mxu0 %v740
  %1228 = vmatmul.mubr.bf16.gmra.mxu0 %v739
  %v1229 = vpop.f32.mrf.mxu0
  %v1230 = vadd.f32 0.0, %v1229
  %v1231 = vpop.f32.mrf.mxu0
  %v1232 = vpop.f32.mrf.mxu0
  %v1233 = vadd.f32 0.0, %v1232
  %v1234 = vpop.f32.mrf.mxu0
  %1235 = vmatprep.mubr.bf16.mxu0 %v744
  %1236 = vmatmul.mubr.bf16.gmra.mxu0 %v743
  %v1237 = vpop.f32.mrf.mxu0
  %v1238 = vadd.f32 0.0, %v1237
  %v1239 = vpop.f32.mrf.mxu0
  %v1240 = vpop.f32.mrf.mxu0
  %v1241 = vadd.f32 0.0, %v1240
  %v1242 = vpop.f32.mrf.mxu0
  %1243 = vmatprep.mubr.bf16.mxu0 %v748
  %1244 = vmatmul.mubr.bf16.gmra.mxu0 %v747
  %v1245 = vpop.f32.mrf.mxu0
  %v1246 = vadd.f32 0.0, %v1245
  %v1247 = vpop.f32.mrf.mxu0
  %v1248 = vpop.f32.mrf.mxu0
  %v1249 = vadd.f32 0.0, %v1248
  %v1250 = vpop.f32.mrf.mxu0
  %1251 = vmatprep.mubr.bf16.mxu0 %v752
  %1252 = vmatmul.mubr.bf16.gmra.mxu0 %v751
  %v1253 = vpop.f32.mrf.mxu0
  %v1254 = vadd.f32 0.0, %v1253
  %v1255 = vpop.f32.mrf.mxu0
  %v1256 = vpop.f32.mrf.mxu0
  %v1257 = vadd.f32 0.0, %v1256
  %v1258 = vpop.f32.mrf.mxu0
  %1259 = vmatprep.mubr.bf16.mxu0 %v756
  %1260 = vmatmul.mubr.bf16.gmra.mxu0 %v755
  %v1261 = vpop.f32.mrf.mxu0
  %v1262 = vadd.f32 0.0, %v1261
  %v1263 = vpop.f32.mrf.mxu0
  %v1264 = vpop.f32.mrf.mxu0
  %v1265 = vadd.f32 0.0, %v1264
  %v1266 = vpop.f32.mrf.mxu0
  %1267 = vmatprep.mubr.bf16.mxu0 %v760
  %1268 = vmatmul.mubr.bf16.gmra.mxu0 %v759
  %v1269 = vpop.f32.mrf.mxu0
  %v1270 = vadd.f32 0.0, %v1269
  %v1271 = vpop.f32.mrf.mxu0
  %v1272 = vpop.f32.mrf.mxu0
  %v1273 = vadd.f32 0.0, %v1272
  %v1274 = vpop.f32.mrf.mxu0
  %1275 = vmatprep.mubr.bf16.mxu0 %v764
  %1276 = vmatmul.mubr.bf16.gmra.mxu0 %v763
  %v1277 = vpop.f32.mrf.mxu0
  %v1278 = vadd.f32 0.0, %v1277
  %v1279 = vpop.f32.mrf.mxu0
  %v1280 = vpop.f32.mrf.mxu0
  %v1281 = vadd.f32 0.0, %v1280
  %v1282 = vpop.f32.mrf.mxu0
  %1283 = vmatprep.mubr.bf16.mxu0 %v768
  %1284 = vmatmul.mubr.bf16.gmra.mxu0 %v767
  %v1285 = vpop.f32.mrf.mxu0
  %v1286 = vadd.f32 0.0, %v1285
  %v1287 = vpop.f32.mrf.mxu0
  %v1288 = vpop.f32.mrf.mxu0
  %v1289 = vadd.f32 0.0, %v1288
  %v1290 = vpop.f32.mrf.mxu0
  %1291 = vmatprep.mubr.bf16.mxu0 %v772
  %1292 = vmatmul.mubr.bf16.gmra.mxu0 %v771
  %v1293 = vpop.f32.mrf.mxu0
  %v1294 = vadd.f32 0.0, %v1293
  %v1295 = vpop.f32.mrf.mxu0
  %v1296 = vpop.f32.mrf.mxu0
  %v1297 = vadd.f32 0.0, %v1296
  %v1298 = vpop.f32.mrf.mxu0
  %1299 = vmatprep.mubr.bf16.mxu0 %v776
  %1300 = vmatmul.mubr.bf16.gmra.mxu0 %v775
  %v1301 = vpop.f32.mrf.mxu0
  %v1302 = vadd.f32 0.0, %v1301
  %v1303 = vpop.f32.mrf.mxu0
  %v1304 = vpop.f32.mrf.mxu0
  %v1305 = vadd.f32 0.0, %v1304
  %v1306 = vpop.f32.mrf.mxu0
  %1307 = vmatprep.mubr.bf16.mxu0 %v780
  %1308 = vmatmul.mubr.bf16.gmra.mxu0 %v779
  %v1309 = vpop.f32.mrf.mxu0
  %v1310 = vadd.f32 0.0, %v1309
  %v1311 = vpop.f32.mrf.mxu0
  %v1312 = vpop.f32.mrf.mxu0
  %v1313 = vadd.f32 0.0, %v1312
  %v1314 = vpop.f32.mrf.mxu0
  %1315 = vmatprep.mubr.bf16.mxu0 %v784
  %1316 = vmatmul.mubr.bf16.gmra.mxu0 %v783
  %v1317 = vpop.f32.mrf.mxu0
  %v1318 = vadd.f32 0.0, %v1317
  %v1319 = vpop.f32.mrf.mxu0
  %v1320 = vpop.f32.mrf.mxu0
  %v1321 = vadd.f32 0.0, %v1320
  %v1322 = vpop.f32.mrf.mxu0
  %1323 = vmatprep.mubr.bf16.mxu0 %v788
  %1324 = vmatmul.mubr.bf16.gmra.mxu0 %v787
  %v1325 = vpop.f32.mrf.mxu0
  %v1326 = vadd.f32 0.0, %v1325
  %v1327 = vpop.f32.mrf.mxu0
  %v1328 = vpop.f32.mrf.mxu0
  %v1329 = vadd.f32 0.0, %v1328
  %v1330 = vpop.f32.mrf.mxu0
  %1331 = vmatprep.mubr.bf16.mxu0 %v792
  %1332 = vmatmul.mubr.bf16.gmra.mxu0 %v791
  %v1333 = vpop.f32.mrf.mxu0
  %v1334 = vadd.f32 0.0, %v1333
  %v1335 = vpop.f32.mrf.mxu0
  %v1336 = vpop.f32.mrf.mxu0
  %v1337 = vadd.f32 0.0, %v1336
  %v1338 = vpop.f32.mrf.mxu0
  %1339 = vmatprep.mubr.bf16.mxu0 %v796
  %1340 = vmatmul.mubr.bf16.gmra.mxu0 %v795
  %v1341 = vpop.f32.mrf.mxu0
  %v1342 = vadd.f32 0.0, %v1341
  %v1343 = vpop.f32.mrf.mxu0
  %v1344 = vpop.f32.mrf.mxu0
  %v1345 = vadd.f32 0.0, %v1344
  %v1346 = vpop.f32.mrf.mxu0
  %1347 = vmatprep.mubr.bf16.mxu0 %v800
  %1348 = vmatmul.mubr.bf16.gmra.mxu0 %v799
  %v1349 = vpop.f32.mrf.mxu0
  %v1350 = vadd.f32 0.0, %v1349
  %v1351 = vpop.f32.mrf.mxu0
  %v1352 = vpop.f32.mrf.mxu0
  %v1353 = vadd.f32 0.0, %v1352
  %v1354 = vpop.f32.mrf.mxu0
  %1355 = vmatprep.mubr.bf16.mxu0 %v804
  %1356 = vmatmul.mubr.bf16.gmra.mxu0 %v803
  %v1357 = vpop.f32.mrf.mxu0
  %v1358 = vadd.f32 0.0, %v1357
  %v1359 = vpop.f32.mrf.mxu0
  %v1360 = vpop.f32.mrf.mxu0
  %v1361 = vadd.f32 0.0, %v1360
  %v1362 = vpop.f32.mrf.mxu0
  %1363 = vmatprep.mubr.bf16.mxu0 %v808
  %1364 = vmatmul.mubr.bf16.gmra.mxu0 %v807
  %v1365 = vpop.f32.mrf.mxu0
  %v1366 = vadd.f32 0.0, %v1365
  %v1367 = vpop.f32.mrf.mxu0
  %v1368 = vpop.f32.mrf.mxu0
  %v1369 = vadd.f32 0.0, %v1368
  %v1370 = vpop.f32.mrf.mxu0
  %1371 = vmatprep.mubr.bf16.mxu0 %v812
  %1372 = vmatmul.mubr.bf16.gmra.mxu0 %v811
  %v1373 = vpop.f32.mrf.mxu0
  %v1374 = vadd.f32 0.0, %v1373
  %v1375 = vpop.f32.mrf.mxu0
  %v1376 = vpop.f32.mrf.mxu0
  %v1377 = vadd.f32 0.0, %v1376
  %v1378 = vpop.f32.mrf.mxu0
  %1379 = vmatprep.mubr.bf16.mxu0 %v816
  %1380 = vmatmul.mubr.bf16.gmra.mxu0 %v815
  %v1381 = vpop.f32.mrf.mxu0
  %v1382 = vadd.f32 0.0, %v1381
  %v1383 = vpop.f32.mrf.mxu0
  %v1384 = vpop.f32.mrf.mxu0
  %v1385 = vadd.f32 0.0, %v1384
  %v1386 = vpop.f32.mrf.mxu0
  %1387 = vmatprep.mubr.bf16.mxu0 %v820
  %1388 = vmatmul.mubr.bf16.gmra.mxu0 %v819
  %v1389 = vpop.f32.mrf.mxu0
  %v1390 = vadd.f32 0.0, %v1389
  %v1391 = vpop.f32.mrf.mxu0
  %v1392 = vpop.f32.mrf.mxu0
  %v1393 = vadd.f32 0.0, %v1392
  %v1394 = vpop.f32.mrf.mxu0
  %1395 = vmatprep.mubr.bf16.mxu0 %v824
  %1396 = vmatmul.mubr.bf16.gmra.mxu0 %v823
  %v1397 = vpop.f32.mrf.mxu0
  %v1398 = vadd.f32 0.0, %v1397
  %v1399 = vpop.f32.mrf.mxu0
  %v1400 = vpop.f32.mrf.mxu0
  %v1401 = vadd.f32 0.0, %v1400
  %v1402 = vpop.f32.mrf.mxu0
  %1403 = vmatprep.mubr.bf16.mxu0 %v828
  %1404 = vmatmul.mubr.bf16.gmra.mxu0 %v827
  %v1405 = vpop.f32.mrf.mxu0
  %v1406 = vadd.f32 0.0, %v1405
  %v1407 = vpop.f32.mrf.mxu0
  %v1408 = vpop.f32.mrf.mxu0
  %v1409 = vadd.f32 0.0, %v1408
  %v1410 = vpop.f32.mrf.mxu0
  %1411 = vmatprep.mubr.bf16.mxu0 %v832
  %1412 = vmatmul.mubr.bf16.gmra.mxu0 %v831
  %v1413 = vpop.f32.mrf.mxu0
  %v1414 = vadd.f32 0.0, %v1413
  %v1415 = vpop.f32.mrf.mxu0
  %v1416 = vpop.f32.mrf.mxu0
  %v1417 = vadd.f32 0.0, %v1416
  %v1418 = vpop.f32.mrf.mxu0
  %1419 = vmatprep.mubr.bf16.mxu0 %v836
  %1420 = vmatmul.mubr.bf16.gmra.mxu0 %v835
  %v1421 = vpop.f32.mrf.mxu0
  %v1422 = vadd.f32 0.0, %v1421
  %v1423 = vpop.f32.mrf.mxu0
  %v1424 = vpop.f32.mrf.mxu0
  %v1425 = vadd.f32 0.0, %v1424
  %v1426 = vpop.f32.mrf.mxu0
  %1427 = vmatprep.mubr.bf16.mxu0 %v840
  %1428 = vmatmul.mubr.bf16.gmra.mxu0 %v839
  %v1429 = vpop.f32.mrf.mxu0
  %v1430 = vadd.f32 0.0, %v1429
  %v1431 = vpop.f32.mrf.mxu0
  %v1432 = vpop.f32.mrf.mxu0
  %v1433 = vadd.f32 0.0, %v1432
  %v1434 = vpop.f32.mrf.mxu0
  %1435 = vmatprep.mubr.bf16.mxu0 %v844
  %1436 = vmatmul.mubr.bf16.gmra.mxu0 %v843
  %v1437 = vpop.f32.mrf.mxu0
  %v1438 = vadd.f32 0.0, %v1437
  %v1439 = vpop.f32.mrf.mxu0
  %v1440 = vpop.f32.mrf.mxu0
  %v1441 = vadd.f32 0.0, %v1440
  %v1442 = vpop.f32.mrf.mxu0
  %1443 = vmatprep.mubr.bf16.mxu0 %v848
  %1444 = vmatmul.mubr.bf16.gmra.mxu0 %v847
  %v1445 = vpop.f32.mrf.mxu0
  %v1446 = vadd.f32 0.0, %v1445
  %v1447 = vpop.f32.mrf.mxu0
  %v1448 = vpop.f32.mrf.mxu0
  %v1449 = vadd.f32 0.0, %v1448
  %v1450 = vpop.f32.mrf.mxu0
  %1451 = vmatprep.mubr.bf16.mxu0 %v852
  %1452 = vmatmul.mubr.bf16.gmra.mxu0 %v851
  %v1453 = vpop.f32.mrf.mxu0
  %v1454 = vadd.f32 0.0, %v1453
  %v1455 = vpop.f32.mrf.mxu0
  %v1456 = vpop.f32.mrf.mxu0
  %v1457 = vadd.f32 0.0, %v1456
  %v1458 = vpop.f32.mrf.mxu0
  %1459 = vmatprep.mubr.bf16.mxu0 %v856
  %1460 = vmatmul.mubr.bf16.gmra.mxu0 %v855
  %v1461 = vpop.f32.mrf.mxu0
  %v1462 = vadd.f32 0.0, %v1461
  %v1463 = vpop.f32.mrf.mxu0
  %v1464 = vpop.f32.mrf.mxu0
  %v1465 = vadd.f32 0.0, %v1464
  %v1466 = vpop.f32.mrf.mxu0
  %1467 = vdwg.mxu0
  %1468 = vmatprep.subr.bf16.mxu0 0
  %1469 = vmatpush1.bf16.msra.mxu0 %v1138
  %1470 = vmatprep.subr.bf16.mxu0 0
  %1471 = vmatpush1.bf16.msra.mxu0 %v1137
  %1472 = vmatprep.subr.bf16.mxu0 0
  %1473 = vmatpush1.bf16.msra.mxu0 %v1136
  %1474 = vmatprep.subr.bf16.mxu0 0
  %1475 = vmatpush1.bf16.msra.mxu0 %v1135
  %1476 = vmatprep.subr.bf16.mxu0 0
  %1477 = vmatpush1.bf16.msra.mxu0 %v1134
  %1478 = vmatprep.subr.bf16.mxu0 0
  %1479 = vmatpush1.bf16.msra.mxu0 %v1133
  %1480 = vmatprep.subr.bf16.mxu0 0
  %1481 = vmatpush1.bf16.msra.mxu0 %v1132
  %1482 = vmatprep.subr.bf16.mxu0 0
  %1483 = vmatpush1.bf16.msra.mxu0 %v1131
  %1484 = vmatprep.subr.bf16.mxu0 0
  %1485 = vmatpush2.bf16.msra.mxu0 %v1146
  %1486 = vmatprep.subr.bf16.mxu0 0
  %1487 = vmatpush2.bf16.msra.mxu0 %v1145
  %1488 = vmatprep.subr.bf16.mxu0 0
  %1489 = vmatpush2.bf16.msra.mxu0 %v1144
  %1490 = vmatprep.subr.bf16.mxu0 0
  %1491 = vmatpush2.bf16.msra.mxu0 %v1143
  %1492 = vmatprep.subr.bf16.mxu0 0
  %1493 = vmatpush2.bf16.msra.mxu0 %v1142
  %1494 = vmatprep.subr.bf16.mxu0 0
  %1495 = vmatpush2.bf16.msra.mxu0 %v1141
  %1496 = vmatprep.subr.bf16.mxu0 0
  %1497 = vmatpush2.bf16.msra.mxu0 %v1140
  %1498 = vmatprep.subr.bf16.mxu0 0
  %1499 = vmatpush2.bf16.msra.mxu0 %v1139
  %1500 = vmatprep.mubr.bf16.mxu0 %v734
  %1501 = vmatmul.mubr.bf16.gmra.mxu0 %v733
  %v1502 = vpop.f32.mrf.mxu0
  %v1503 = vadd.f32 %v1214, %v1502
  %v1504 = vpop.f32.mrf.mxu0
  %v1505 = vpop.f32.mrf.mxu0
  %v1506 = vadd.f32 %v1217, %v1505
  %v1507 = vpop.f32.mrf.mxu0
  %1508 = vmatprep.mubr.bf16.mxu0 %v738
  %1509 = vmatmul.mubr.bf16.gmra.mxu0 %v737
  %v1510 = vpop.f32.mrf.mxu0
  %v1511 = vadd.f32 %v1222, %v1510
  %v1512 = vpop.f32.mrf.mxu0
  %v1513 = vpop.f32.mrf.mxu0
  %v1514 = vadd.f32 %v1225, %v1513
  %v1515 = vpop.f32.mrf.mxu0
  %1516 = vmatprep.mubr.bf16.mxu0 %v742
  %1517 = vmatmul.mubr.bf16.gmra.mxu0 %v741
  %v1518 = vpop.f32.mrf.mxu0
  %v1519 = vadd.f32 %v1230, %v1518
  %v1520 = vpop.f32.mrf.mxu0
  %v1521 = vpop.f32.mrf.mxu0
  %v1522 = vadd.f32 %v1233, %v1521
  %v1523 = vpop.f32.mrf.mxu0
  %1524 = vmatprep.mubr.bf16.mxu0 %v746
  %1525 = vmatmul.mubr.bf16.gmra.mxu0 %v745
  %v1526 = vpop.f32.mrf.mxu0
  %v1527 = vadd.f32 %v1238, %v1526
  %v1528 = vpop.f32.mrf.mxu0
  %v1529 = vpop.f32.mrf.mxu0
  %v1530 = vadd.f32 %v1241, %v1529
  %v1531 = vpop.f32.mrf.mxu0
  %1532 = vmatprep.mubr.bf16.mxu0 %v750
  %1533 = vmatmul.mubr.bf16.gmra.mxu0 %v749
  %v1534 = vpop.f32.mrf.mxu0
  %v1535 = vadd.f32 %v1246, %v1534
  %v1536 = vpop.f32.mrf.mxu0
  %v1537 = vpop.f32.mrf.mxu0
  %v1538 = vadd.f32 %v1249, %v1537
  %v1539 = vpop.f32.mrf.mxu0
  %1540 = vmatprep.mubr.bf16.mxu0 %v754
  %1541 = vmatmul.mubr.bf16.gmra.mxu0 %v753
  %v1542 = vpop.f32.mrf.mxu0
  %v1543 = vadd.f32 %v1254, %v1542
  %v1544 = vpop.f32.mrf.mxu0
  %v1545 = vpop.f32.mrf.mxu0
  %v1546 = vadd.f32 %v1257, %v1545
  %v1547 = vpop.f32.mrf.mxu0
  %1548 = vmatprep.mubr.bf16.mxu0 %v758
  %1549 = vmatmul.mubr.bf16.gmra.mxu0 %v757
  %v1550 = vpop.f32.mrf.mxu0
  %v1551 = vadd.f32 %v1262, %v1550
  %v1552 = vpop.f32.mrf.mxu0
  %v1553 = vpop.f32.mrf.mxu0
  %v1554 = vadd.f32 %v1265, %v1553
  %v1555 = vpop.f32.mrf.mxu0
  %1556 = vmatprep.mubr.bf16.mxu0 %v762
  %1557 = vmatmul.mubr.bf16.gmra.mxu0 %v761
  %v1558 = vpop.f32.mrf.mxu0
  %v1559 = vadd.f32 %v1270, %v1558
  %v1560 = vpop.f32.mrf.mxu0
  %v1561 = vpop.f32.mrf.mxu0
  %v1562 = vadd.f32 %v1273, %v1561
  %v1563 = vpop.f32.mrf.mxu0
  %1564 = vmatprep.mubr.bf16.mxu0 %v766
  %1565 = vmatmul.mubr.bf16.gmra.mxu0 %v765
  %v1566 = vpop.f32.mrf.mxu0
  %v1567 = vadd.f32 %v1278, %v1566
  %v1568 = vpop.f32.mrf.mxu0
  %v1569 = vpop.f32.mrf.mxu0
  %v1570 = vadd.f32 %v1281, %v1569
  %v1571 = vpop.f32.mrf.mxu0
  %1572 = vmatprep.mubr.bf16.mxu0 %v770
  %1573 = vmatmul.mubr.bf16.gmra.mxu0 %v769
  %v1574 = vpop.f32.mrf.mxu0
  %v1575 = vadd.f32 %v1286, %v1574
  %v1576 = vpop.f32.mrf.mxu0
  %v1577 = vpop.f32.mrf.mxu0
  %v1578 = vadd.f32 %v1289, %v1577
  %v1579 = vpop.f32.mrf.mxu0
  %1580 = vmatprep.mubr.bf16.mxu0 %v774
  %1581 = vmatmul.mubr.bf16.gmra.mxu0 %v773
  %v1582 = vpop.f32.mrf.mxu0
  %v1583 = vadd.f32 %v1294, %v1582
  %v1584 = vpop.f32.mrf.mxu0
  %v1585 = vpop.f32.mrf.mxu0
  %v1586 = vadd.f32 %v1297, %v1585
  %v1587 = vpop.f32.mrf.mxu0
  %1588 = vmatprep.mubr.bf16.mxu0 %v778
  %1589 = vmatmul.mubr.bf16.gmra.mxu0 %v777
  %v1590 = vpop.f32.mrf.mxu0
  %v1591 = vadd.f32 %v1302, %v1590
  %v1592 = vpop.f32.mrf.mxu0
  %v1593 = vpop.f32.mrf.mxu0
  %v1594 = vadd.f32 %v1305, %v1593
  %v1595 = vpop.f32.mrf.mxu0
  %1596 = vmatprep.mubr.bf16.mxu0 %v782
  %1597 = vmatmul.mubr.bf16.gmra.mxu0 %v781
  %v1598 = vpop.f32.mrf.mxu0
  %v1599 = vadd.f32 %v1310, %v1598
  %v1600 = vpop.f32.mrf.mxu0
  %v1601 = vpop.f32.mrf.mxu0
  %v1602 = vadd.f32 %v1313, %v1601
  %v1603 = vpop.f32.mrf.mxu0
  %1604 = vmatprep.mubr.bf16.mxu0 %v786
  %1605 = vmatmul.mubr.bf16.gmra.mxu0 %v785
  %v1606 = vpop.f32.mrf.mxu0
  %v1607 = vadd.f32 %v1318, %v1606
  %v1608 = vpop.f32.mrf.mxu0
  %v1609 = vpop.f32.mrf.mxu0
  %v1610 = vadd.f32 %v1321, %v1609
  %v1611 = vpop.f32.mrf.mxu0
  %1612 = vmatprep.mubr.bf16.mxu0 %v790
  %1613 = vmatmul.mubr.bf16.gmra.mxu0 %v789
  %v1614 = vpop.f32.mrf.mxu0
  %v1615 = vadd.f32 %v1326, %v1614
  %v1616 = vpop.f32.mrf.mxu0
  %v1617 = vpop.f32.mrf.mxu0
  %v1618 = vadd.f32 %v1329, %v1617
  %v1619 = vpop.f32.mrf.mxu0
  %1620 = vmatprep.mubr.bf16.mxu0 %v794
  %1621 = vmatmul.mubr.bf16.gmra.mxu0 %v793
  %v1622 = vpop.f32.mrf.mxu0
  %v1623 = vadd.f32 %v1334, %v1622
  %v1624 = vpop.f32.mrf.mxu0
  %v1625 = vpop.f32.mrf.mxu0
  %v1626 = vadd.f32 %v1337, %v1625
  %v1627 = vpop.f32.mrf.mxu0
  %1628 = vmatprep.mubr.bf16.mxu0 %v798
  %1629 = vmatmul.mubr.bf16.gmra.mxu0 %v797
  %v1630 = vpop.f32.mrf.mxu0
  %v1631 = vadd.f32 %v1342, %v1630
  %v1632 = vpop.f32.mrf.mxu0
  %v1633 = vpop.f32.mrf.mxu0
  %v1634 = vadd.f32 %v1345, %v1633
  %v1635 = vpop.f32.mrf.mxu0
  %1636 = vmatprep.mubr.bf16.mxu0 %v802
  %1637 = vmatmul.mubr.bf16.gmra.mxu0 %v801
  %v1638 = vpop.f32.mrf.mxu0
  %v1639 = vadd.f32 %v1350, %v1638
  %v1640 = vpop.f32.mrf.mxu0
  %v1641 = vpop.f32.mrf.mxu0
  %v1642 = vadd.f32 %v1353, %v1641
  %v1643 = vpop.f32.mrf.mxu0
  %1644 = vmatprep.mubr.bf16.mxu0 %v806
  %1645 = vmatmul.mubr.bf16.gmra.mxu0 %v805
  %v1646 = vpop.f32.mrf.mxu0
  %v1647 = vadd.f32 %v1358, %v1646
  %v1648 = vpop.f32.mrf.mxu0
  %v1649 = vpop.f32.mrf.mxu0
  %v1650 = vadd.f32 %v1361, %v1649
  %v1651 = vpop.f32.mrf.mxu0
  %1652 = vmatprep.mubr.bf16.mxu0 %v810
  %1653 = vmatmul.mubr.bf16.gmra.mxu0 %v809
  %v1654 = vpop.f32.mrf.mxu0
  %v1655 = vadd.f32 %v1366, %v1654
  %v1656 = vpop.f32.mrf.mxu0
  %v1657 = vpop.f32.mrf.mxu0
  %v1658 = vadd.f32 %v1369, %v1657
  %v1659 = vpop.f32.mrf.mxu0
  %1660 = vmatprep.mubr.bf16.mxu0 %v814
  %1661 = vmatmul.mubr.bf16.gmra.mxu0 %v813
  %v1662 = vpop.f32.mrf.mxu0
  %v1663 = vadd.f32 %v1374, %v1662
  %v1664 = vpop.f32.mrf.mxu0
  %v1665 = vpop.f32.mrf.mxu0
  %v1666 = vadd.f32 %v1377, %v1665
  %v1667 = vpop.f32.mrf.mxu0
  %1668 = vmatprep.mubr.bf16.mxu0 %v818
  %1669 = vmatmul.mubr.bf16.gmra.mxu0 %v817
  %v1670 = vpop.f32.mrf.mxu0
  %v1671 = vadd.f32 %v1382, %v1670
  %v1672 = vpop.f32.mrf.mxu0
  %v1673 = vpop.f32.mrf.mxu0
  %v1674 = vadd.f32 %v1385, %v1673
  %v1675 = vpop.f32.mrf.mxu0
  %1676 = vmatprep.mubr.bf16.mxu0 %v822
  %1677 = vmatmul.mubr.bf16.gmra.mxu0 %v821
  %v1678 = vpop.f32.mrf.mxu0
  %v1679 = vadd.f32 %v1390, %v1678
  %v1680 = vpop.f32.mrf.mxu0
  %v1681 = vpop.f32.mrf.mxu0
  %v1682 = vadd.f32 %v1393, %v1681
  %v1683 = vpop.f32.mrf.mxu0
  %1684 = vmatprep.mubr.bf16.mxu0 %v826
  %1685 = vmatmul.mubr.bf16.gmra.mxu0 %v825
  %v1686 = vpop.f32.mrf.mxu0
  %v1687 = vadd.f32 %v1398, %v1686
  %v1688 = vpop.f32.mrf.mxu0
  %v1689 = vpop.f32.mrf.mxu0
  %v1690 = vadd.f32 %v1401, %v1689
  %v1691 = vpop.f32.mrf.mxu0
  %1692 = vmatprep.mubr.bf16.mxu0 %v830
  %1693 = vmatmul.mubr.bf16.gmra.mxu0 %v829
  %v1694 = vpop.f32.mrf.mxu0
  %v1695 = vadd.f32 %v1406, %v1694
  %v1696 = vpop.f32.mrf.mxu0
  %v1697 = vpop.f32.mrf.mxu0
  %v1698 = vadd.f32 %v1409, %v1697
  %v1699 = vpop.f32.mrf.mxu0
  %1700 = vmatprep.mubr.bf16.mxu0 %v834
  %1701 = vmatmul.mubr.bf16.gmra.mxu0 %v833
  %v1702 = vpop.f32.mrf.mxu0
  %v1703 = vadd.f32 %v1414, %v1702
  %v1704 = vpop.f32.mrf.mxu0
  %v1705 = vpop.f32.mrf.mxu0
  %v1706 = vadd.f32 %v1417, %v1705
  %v1707 = vpop.f32.mrf.mxu0
  %1708 = vmatprep.mubr.bf16.mxu0 %v838
  %1709 = vmatmul.mubr.bf16.gmra.mxu0 %v837
  %v1710 = vpop.f32.mrf.mxu0
  %v1711 = vadd.f32 %v1422, %v1710
  %v1712 = vpop.f32.mrf.mxu0
  %v1713 = vpop.f32.mrf.mxu0
  %v1714 = vadd.f32 %v1425, %v1713
  %v1715 = vpop.f32.mrf.mxu0
  %1716 = vmatprep.mubr.bf16.mxu0 %v842
  %1717 = vmatmul.mubr.bf16.gmra.mxu0 %v841
  %v1718 = vpop.f32.mrf.mxu0
  %v1719 = vadd.f32 %v1430, %v1718
  %v1720 = vpop.f32.mrf.mxu0
  %v1721 = vpop.f32.mrf.mxu0
  %v1722 = vadd.f32 %v1433, %v1721
  %v1723 = vpop.f32.mrf.mxu0
  %1724 = vmatprep.mubr.bf16.mxu0 %v846
  %1725 = vmatmul.mubr.bf16.gmra.mxu0 %v845
  %v1726 = vpop.f32.mrf.mxu0
  %v1727 = vadd.f32 %v1438, %v1726
  %v1728 = vpop.f32.mrf.mxu0
  %v1729 = vpop.f32.mrf.mxu0
  %v1730 = vadd.f32 %v1441, %v1729
  %v1731 = vpop.f32.mrf.mxu0
  %1732 = vmatprep.mubr.bf16.mxu0 %v850
  %1733 = vmatmul.mubr.bf16.gmra.mxu0 %v849
  %v1734 = vpop.f32.mrf.mxu0
  %v1735 = vadd.f32 %v1446, %v1734
  %v1736 = vpop.f32.mrf.mxu0
  %v1737 = vpop.f32.mrf.mxu0
  %v1738 = vadd.f32 %v1449, %v1737
  %v1739 = vpop.f32.mrf.mxu0
  %1740 = vmatprep.mubr.bf16.mxu0 %v854
  %1741 = vmatmul.mubr.bf16.gmra.mxu0 %v853
  %v1742 = vpop.f32.mrf.mxu0
  %v1743 = vadd.f32 %v1454, %v1742
  %v1744 = vpop.f32.mrf.mxu0
  %v1745 = vpop.f32.mrf.mxu0
  %v1746 = vadd.f32 %v1457, %v1745
  %v1747 = vpop.f32.mrf.mxu0
  %1748 = vmatprep.mubr.bf16.mxu0 %v858
  %1749 = vmatmul.mubr.bf16.gmra.mxu0 %v857
  %v1750 = vpop.f32.mrf.mxu0
  %v1751 = vadd.f32 %v1462, %v1750
  %v1752 = vpop.f32.mrf.mxu0
  %v1753 = vpop.f32.mrf.mxu0
  %v1754 = vadd.f32 %v1465, %v1753
  %v1755 = vpop.f32.mrf.mxu0
  %1756 = vdwg.mxu0
  %v1757 = vadd.f32 %v155, %v1503
  %v1758 = vadd.f32 %v156, %v1506
  %v1759 = vadd.f32 %v157, %v1511
  %v1760 = vadd.f32 %v158, %v1514
  %v1761 = vadd.f32 %v159, %v1519
  %v1762 = vadd.f32 %v160, %v1522
  %v1763 = vadd.f32 %v161, %v1527
  %v1764 = vadd.f32 %v162, %v1530
  %v1765 = vadd.f32 %v163, %v1535
  %v1766 = vadd.f32 %v164, %v1538
  %v1767 = vadd.f32 %v165, %v1543
  %v1768 = vadd.f32 %v166, %v1546
  %v1769 = vadd.f32 %v167, %v1551
  %v1770 = vadd.f32 %v168, %v1554
  %v1771 = vadd.f32 %v169, %v1559
  %v1772 = vadd.f32 %v170, %v1562
  %v1773 = vadd.f32 %v171, %v1567
  %v1774 = vadd.f32 %v172, %v1570
  %v1775 = vadd.f32 %v173, %v1575
  %v1776 = vadd.f32 %v174, %v1578
  %v1777 = vadd.f32 %v175, %v1583
  %v1778 = vadd.f32 %v176, %v1586
  %v1779 = vadd.f32 %v177, %v1591
  %v1780 = vadd.f32 %v178, %v1594
  %v1781 = vadd.f32 %v179, %v1599
  %v1782 = vadd.f32 %v180, %v1602
  %v1783 = vadd.f32 %v181, %v1607
  %v1784 = vadd.f32 %v182, %v1610
  %v1785 = vadd.f32 %v183, %v1615
  %v1786 = vadd.f32 %v184, %v1618
  %v1787 = vadd.f32 %v185, %v1623
  %v1788 = vadd.f32 %v186, %v1626
  %v1789 = vadd.f32 %v187, %v1631
  %v1790 = vadd.f32 %v188, %v1634
  %v1791 = vadd.f32 %v189, %v1639
  %v1792 = vadd.f32 %v190, %v1642
  %v1793 = vadd.f32 %v191, %v1647
  %v1794 = vadd.f32 %v192, %v1650
  %v1795 = vadd.f32 %v193, %v1655
  %v1796 = vadd.f32 %v194, %v1658
  %v1797 = vadd.f32 %v195, %v1663
  %v1798 = vadd.f32 %v196, %v1666
  %v1799 = vadd.f32 %v197, %v1671
  %v1800 = vadd.f32 %v198, %v1674
  %v1801 = vadd.f32 %v199, %v1679
  %v1802 = vadd.f32 %v200, %v1682
  %v1803 = vadd.f32 %v201, %v1687
  %v1804 = vadd.f32 %v202, %v1690
  %v1805 = vadd.f32 %v203, %v1695
  %v1806 = vadd.f32 %v204, %v1698
  %v1807 = vadd.f32 %v205, %v1703
  %v1808 = vadd.f32 %v206, %v1706
  %v1809 = vadd.f32 %v207, %v1711
  %v1810 = vadd.f32 %v208, %v1714
  %v1811 = vadd.f32 %v209, %v1719
  %v1812 = vadd.f32 %v210, %v1722
  %v1813 = vadd.f32 %v211, %v1727
  %v1814 = vadd.f32 %v212, %v1730
  %v1815 = vadd.f32 %v213, %v1735
  %v1816 = vadd.f32 %v214, %v1738
  %v1817 = vadd.f32 %v215, %v1743
  %v1818 = vadd.f32 %v216, %v1746
  %v1819 = vadd.f32 %v217, %v1751
  %v1820 = vadd.f32 %v218, %v1754
  %1821 = vst [vmem:[#allocation2] sm:$0xff] %v1757
  %1822 = vst [vmem:[#allocation2 + $0x8] sm:$0xff] %v1758
  %1823 = vst [vmem:[#allocation2 + $0x10] sm:$0xff] %v1759
  %1824 = vst [vmem:[#allocation2 + $0x18] sm:$0xff] %v1760
  %1825 = vst [vmem:[#allocation2 + $0x20] sm:$0xff] %v1761
  %1826 = vst [vmem:[#allocation2 + $0x28] sm:$0xff] %v1762
  %1827 = vst [vmem:[#allocation2 + $0x30] sm:$0xff] %v1763
  %1828 = vst [vmem:[#allocation2 + $0x38] sm:$0xff] %v1764
  %1829 = vst [vmem:[#allocation2 + $0x40] sm:$0xff] %v1765
  %1830 = vst [vmem:[#allocation2 + $0x48] sm:$0xff] %v1766
  %1831 = vst [vmem:[#allocation2 + $0x50] sm:$0xff] %v1767
  %1832 = vst [vmem:[#allocation2 + $0x58] sm:$0xff] %v1768
  %1833 = vst [vmem:[#allocation2 + $0x60] sm:$0xff] %v1769
  %1834 = vst [vmem:[#allocation2 + $0x68] sm:$0xff] %v1770
  %1835 = vst [vmem:[#allocation2 + $0x70] sm:$0xff] %v1771
  %1836 = vst [vmem:[#allocation2 + $0x78] sm:$0xff] %v1772
  %1837 = vst [vmem:[#allocation2 + $0x80] sm:$0xff] %v1773
  %1838 = vst [vmem:[#allocation2 + $0x88] sm:$0xff] %v1774
  %1839 = vst [vmem:[#allocation2 + $0x90] sm:$0xff] %v1775
  %1840 = vst [vmem:[#allocation2 + $0x98] sm:$0xff] %v1776
  %1841 = vst [vmem:[#allocation2 + $0xa0] sm:$0xff] %v1777
  %1842 = vst [vmem:[#allocation2 + $0xa8] sm:$0xff] %v1778
  %1843 = vst [vmem:[#allocation2 + $0xb0] sm:$0xff] %v1779
  %1844 = vst [vmem:[#allocation2 + $0xb8] sm:$0xff] %v1780
  %1845 = vst [vmem:[#allocation2 + $0xc0] sm:$0xff] %v1781
  %1846 = vst [vmem:[#allocation2 + $0xc8] sm:$0xff] %v1782
  %1847 = vst [vmem:[#allocation2 + $0xd0] sm:$0xff] %v1783
  %1848 = vst [vmem:[#allocation2 + $0xd8] sm:$0xff] %v1784
  %1849 = vst [vmem:[#allocation2 + $0xe0] sm:$0xff] %v1785
  %1850 = vst [vmem:[#allocation2 + $0xe8] sm:$0xff] %v1786
  %1851 = vst [vmem:[#allocation2 + $0xf0] sm:$0xff] %v1787
  %1852 = vst [vmem:[#allocation2 + $0xf8] sm:$0xff] %v1788
  %1853 = vst [vmem:[#allocation2 + $0x100] sm:$0xff] %v1789
  %1854 = vst [vmem:[#allocation2 + $0x108] sm:$0xff] %v1790
  %1855 = vst [vmem:[#allocation2 + $0x110] sm:$0xff] %v1791
  %1856 = vst [vmem:[#allocation2 + $0x118] sm:$0xff] %v1792
  %1857 = vst [vmem:[#allocation2 + $0x120] sm:$0xff] %v1793
  %1858 = vst [vmem:[#allocation2 + $0x128] sm:$0xff] %v1794
  %1859 = vst [vmem:[#allocation2 + $0x130] sm:$0xff] %v1795
  %1860 = vst [vmem:[#allocation2 + $0x138] sm:$0xff] %v1796
  %1861 = vst [vmem:[#allocation2 + $0x140] sm:$0xff] %v1797
  %1862 = vst [vmem:[#allocation2 + $0x148] sm:$0xff] %v1798
  %1863 = vst [vmem:[#allocation2 + $0x150] sm:$0xff] %v1799
  %1864 = vst [vmem:[#allocation2 + $0x158] sm:$0xff] %v1800
  %1865 = vst [vmem:[#allocation2 + $0x160] sm:$0xff] %v1801
  %1866 = vst [vmem:[#allocation2 + $0x168] sm:$0xff] %v1802
  %1867 = vst [vmem:[#allocation2 + $0x170] sm:$0xff] %v1803
  %1868 = vst [vmem:[#allocation2 + $0x178] sm:$0xff] %v1804
  %1869 = vst [vmem:[#allocation2 + $0x180] sm:$0xff] %v1805
  %1870 = vst [vmem:[#allocation2 + $0x188] sm:$0xff] %v1806
  %1871 = vst [vmem:[#allocation2 + $0x190] sm:$0xff] %v1807
  %1872 = vst [vmem:[#allocation2 + $0x198] sm:$0xff] %v1808
  %1873 = vst [vmem:[#allocation2 + $0x1a0] sm:$0xff] %v1809
  %1874 = vst [vmem:[#allocation2 + $0x1a8] sm:$0xff] %v1810
  %1875 = vst [vmem:[#allocation2 + $0x1b0] sm:$0xff] %v1811
  %1876 = vst [vmem:[#allocation2 + $0x1b8] sm:$0xff] %v1812
  %1877 = vst [vmem:[#allocation2 + $0x1c0] sm:$0xff] %v1813
  %1878 = vst [vmem:[#allocation2 + $0x1c8] sm:$0xff] %v1814
  %1879 = vst [vmem:[#allocation2 + $0x1d0] sm:$0xff] %v1815
  %1880 = vst [vmem:[#allocation2 + $0x1d8] sm:$0xff] %v1816
  %1881 = vst [vmem:[#allocation2 + $0x1e0] sm:$0xff] %v1817
  %1882 = vst [vmem:[#allocation2 + $0x1e8] sm:$0xff] %v1818
  %1883 = vst [vmem:[#allocation2 + $0x1f0] sm:$0xff] %v1819
  %1884 = vst [vmem:[#allocation2 + $0x1f8] sm:$0xff] %v1820
  // Predicated region
  $region22: #{gcn_encoder.3} parent=0 // pred_check
    %p1885 = pneg %p18
  $region23: #{gcn_encoder.3} parent=0 // pred_check_branch
    %1887 = sbr.rel (%p1885) target = $region25
  $region24: #{gcn_encoder.3} parent=0 // pred_region
    %v1888 = vld [vmem:[#allocation2] sm:$0xff]
    %v1889 = vld [vmem:[#allocation2 + $0x8] sm:$0xff]
    %v1890 = vld [vmem:[#allocation2 + $0x10] sm:$0xff]
    %v1891 = vld [vmem:[#allocation2 + $0x18] sm:$0xff]
    %v1892 = vld [vmem:[#allocation2 + $0x20] sm:$0xff]
    %v1893 = vld [vmem:[#allocation2 + $0x28] sm:$0xff]
    %v1894 = vld [vmem:[#allocation2 + $0x30] sm:$0xff]
    %v1895 = vld [vmem:[#allocation2 + $0x38] sm:$0xff]
    %v1896 = vld [vmem:[#allocation2 + $0x40] sm:$0xff]
    %v1897 = vld [vmem:[#allocation2 + $0x48] sm:$0xff]
    %v1898 = vld [vmem:[#allocation2 + $0x50] sm:$0xff]
    %v1899 = vld [vmem:[#allocation2 + $0x58] sm:$0xff]
    %v1900 = vld [vmem:[#allocation2 + $0x60] sm:$0xff]
    %v1901 = vld [vmem:[#allocation2 + $0x68] sm:$0xff]
    %v1902 = vld [vmem:[#allocation2 + $0x70] sm:$0xff]
    %v1903 = vld [vmem:[#allocation2 + $0x78] sm:$0xff]
    %v1904 = vld [vmem:[#allocation2 + $0x80] sm:$0xff]
    %v1905 = vld [vmem:[#allocation2 + $0x88] sm:$0xff]
    %v1906 = vld [vmem:[#allocation2 + $0x90] sm:$0xff]
    %v1907 = vld [vmem:[#allocation2 + $0x98] sm:$0xff]
    %v1908 = vld [vmem:[#allocation2 + $0xa0] sm:$0xff]
    %v1909 = vld [vmem:[#allocation2 + $0xa8] sm:$0xff]
    %v1910 = vld [vmem:[#allocation2 + $0xb0] sm:$0xff]
    %v1911 = vld [vmem:[#allocation2 + $0xb8] sm:$0xff]
    %v1912 = vld [vmem:[#allocation2 + $0xc0] sm:$0xff]
    %v1913 = vld [vmem:[#allocation2 + $0xc8] sm:$0xff]
    %v1914 = vld [vmem:[#allocation2 + $0xd0] sm:$0xff]
    %v1915 = vld [vmem:[#allocation2 + $0xd8] sm:$0xff]
    %v1916 = vld [vmem:[#allocation2 + $0xe0] sm:$0xff]
    %v1917 = vld [vmem:[#allocation2 + $0xe8] sm:$0xff]
    %v1918 = vld [vmem:[#allocation2 + $0xf0] sm:$0xff]
    %v1919 = vld [vmem:[#allocation2 + $0xf8] sm:$0xff]
    %v1920 = vld [vmem:[#allocation2 + $0x100] sm:$0xff]
    %v1921 = vld [vmem:[#allocation2 + $0x108] sm:$0xff]
    %v1922 = vld [vmem:[#allocation2 + $0x110] sm:$0xff]
    %v1923 = vld [vmem:[#allocation2 + $0x118] sm:$0xff]
    %v1924 = vld [vmem:[#allocation2 + $0x120] sm:$0xff]
    %v1925 = vld [vmem:[#allocation2 + $0x128] sm:$0xff]
    %v1926 = vld [vmem:[#allocation2 + $0x130] sm:$0xff]
    %v1927 = vld [vmem:[#allocation2 + $0x138] sm:$0xff]
    %v1928 = vld [vmem:[#allocation2 + $0x140] sm:$0xff]
    %v1929 = vld [vmem:[#allocation2 + $0x148] sm:$0xff]
    %v1930 = vld [vmem:[#allocation2 + $0x150] sm:$0xff]
    %v1931 = vld [vmem:[#allocation2 + $0x158] sm:$0xff]
    %v1932 = vld [vmem:[#allocation2 + $0x160] sm:$0xff]
    %v1933 = vld [vmem:[#allocation2 + $0x168] sm:$0xff]
    %v1934 = vld [vmem:[#allocation2 + $0x170] sm:$0xff]
    %v1935 = vld [vmem:[#allocation2 + $0x178] sm:$0xff]
    %v1936 = vld [vmem:[#allocation2 + $0x180] sm:$0xff]
    %v1937 = vld [vmem:[#allocation2 + $0x188] sm:$0xff]
    %v1938 = vld [vmem:[#allocation2 + $0x190] sm:$0xff]
    %v1939 = vld [vmem:[#allocation2 + $0x198] sm:$0xff]
    %v1940 = vld [vmem:[#allocation2 + $0x1a0] sm:$0xff]
    %v1941 = vld [vmem:[#allocation2 + $0x1a8] sm:$0xff]
    %v1942 = vld [vmem:[#allocation2 + $0x1b0] sm:$0xff]
    %v1943 = vld [vmem:[#allocation2 + $0x1b8] sm:$0xff]
    %v1944 = vld [vmem:[#allocation2 + $0x1c0] sm:$0xff]
    %v1945 = vld [vmem:[#allocation2 + $0x1c8] sm:$0xff]
    %v1946 = vld [vmem:[#allocation2 + $0x1d0] sm:$0xff]
    %v1947 = vld [vmem:[#allocation2 + $0x1d8] sm:$0xff]
    %v1948 = vld [vmem:[#allocation2 + $0x1e0] sm:$0xff]
    %v1949 = vld [vmem:[#allocation2 + $0x1e8] sm:$0xff]
    %v1950 = vld [vmem:[#allocation2 + $0x1f0] sm:$0xff]
    %v1951 = vld [vmem:[#allocation2 + $0x1f8] sm:$0xff]
    %v1952 = vpack.c.bf16 %v1889, %v1888
    %v1953 = vpack.c.bf16 %v1891, %v1890
    %v1954 = vpack.c.bf16 %v1893, %v1892
    %v1955 = vpack.c.bf16 %v1895, %v1894
    %v1956 = vpack.c.bf16 %v1897, %v1896
    %v1957 = vpack.c.bf16 %v1899, %v1898
    %v1958 = vpack.c.bf16 %v1901, %v1900
    %v1959 = vpack.c.bf16 %v1903, %v1902
    %v1960 = vpack.c.bf16 %v1905, %v1904
    %v1961 = vpack.c.bf16 %v1907, %v1906
    %v1962 = vpack.c.bf16 %v1909, %v1908
    %v1963 = vpack.c.bf16 %v1911, %v1910
    %v1964 = vpack.c.bf16 %v1913, %v1912
    %v1965 = vpack.c.bf16 %v1915, %v1914
    %v1966 = vpack.c.bf16 %v1917, %v1916
    %v1967 = vpack.c.bf16 %v1919, %v1918
    %v1968 = vpack.c.bf16 %v1921, %v1920
    %v1969 = vpack.c.bf16 %v1923, %v1922
    %v1970 = vpack.c.bf16 %v1925, %v1924
    %v1971 = vpack.c.bf16 %v1927, %v1926
    %v1972 = vpack.c.bf16 %v1929, %v1928
    %v1973 = vpack.c.bf16 %v1931, %v1930
    %v1974 = vpack.c.bf16 %v1933, %v1932
    %v1975 = vpack.c.bf16 %v1935, %v1934
    %v1976 = vpack.c.bf16 %v1937, %v1936
    %v1977 = vpack.c.bf16 %v1939, %v1938
    %v1978 = vpack.c.bf16 %v1941, %v1940
    %v1979 = vpack.c.bf16 %v1943, %v1942
    %v1980 = vpack.c.bf16 %v1945, %v1944
    %v1981 = vpack.c.bf16 %v1947, %v1946
    %v1982 = vpack.c.bf16 %v1949, %v1948
    %v1983 = vpack.c.bf16 %v1951, %v1950
    %v1984 = vld [vmem:[%s2] sm:$0xf]
    %v1985 = vld [vmem:[%s2 + $0x4] sm:$0xf]
    %v1986 = vld [vmem:[%s2 + $0x8] sm:$0xf]
    %v1987 = vld [vmem:[%s2 + $0xc] sm:$0xf]
    %v1988 = vld [vmem:[%s2 + $0x10] sm:$0xf]
    %v1989 = vld [vmem:[%s2 + $0x14] sm:$0xf]
    %v1990 = vld [vmem:[%s2 + $0x18] sm:$0xf]
    %v1991 = vld [vmem:[%s2 + $0x1c] sm:$0xf]
    %v1992 = vld [vmem:[%s2 + $0x20] sm:$0xf]
    %v1993 = vld [vmem:[%s2 + $0x24] sm:$0xf]
    %v1994 = vld [vmem:[%s2 + $0x28] sm:$0xf]
    %v1995 = vld [vmem:[%s2 + $0x2c] sm:$0xf]
    %v1996 = vld [vmem:[%s2 + $0x30] sm:$0xf]
    %v1997 = vld [vmem:[%s2 + $0x34] sm:$0xf]
    %v1998 = vld [vmem:[%s2 + $0x38] sm:$0xf]
    %v1999 = vld [vmem:[%s2 + $0x3c] sm:$0xf]
    %v2000 = vld [vmem:[%s3] sm:$0x1]
    %v2002 = vlaneseq
    %v2003 = vshrl.u32 %v2002, 7
    %v2004 = vsub.s32 0, %v2003
    %v2005 = vrot.slane %v2000, %v2004
    %v2023 = vunpack.c.l.b16 %v1984
    %v2024 = vunpack.c.l.b16 %v1985
    %v2025 = vunpack.c.l.b16 %v1986
    %v2026 = vunpack.c.l.b16 %v1987
    %v2027 = vunpack.c.l.b16 %v1988
    %v2028 = vunpack.c.l.b16 %v1989
    %v2029 = vunpack.c.l.b16 %v1990
    %v2030 = vunpack.c.l.b16 %v1991
    %v2031 = vunpack.c.l.b16 %v1992
    %v2032 = vunpack.c.l.b16 %v1993
    %v2033 = vunpack.c.l.b16 %v1994
    %v2034 = vunpack.c.l.b16 %v1995
    %v2035 = vunpack.c.l.b16 %v1996
    %v2036 = vunpack.c.l.b16 %v1997
    %v2037 = vunpack.c.l.b16 %v1998
    %v2038 = vunpack.c.l.b16 %v1999
    %v2039 = vpack.c.b16 %v2024, %v2023
    %v2040 = vpack.c.b16 %v2026, %v2025
    %v2041 = vpack.c.b16 %v2028, %v2027
    %v2042 = vpack.c.b16 %v2030, %v2029
    %v2043 = vpack.c.b16 %v2032, %v2031
    %v2044 = vpack.c.b16 %v2034, %v2033
    %v2045 = vpack.c.b16 %v2036, %v2035
    %v2046 = vpack.c.b16 %v2038, %v2037
    %2055 = vmatprep.subr.bf16.mxu0 0
    %2056 = vmatpush1.bf16.msra.mxu0 %v2046
    %2057 = vmatprep.subr.bf16.mxu0 0
    %2058 = vmatpush1.bf16.msra.mxu0 %v2045
    %2059 = vmatprep.subr.bf16.mxu0 0
    %2060 = vmatpush1.bf16.msra.mxu0 %v2044
    %2061 = vmatprep.subr.bf16.mxu0 0
    %2062 = vmatpush1.bf16.msra.mxu0 %v2043
    %2063 = vmatprep.subr.bf16.mxu0 0
    %2064 = vmatpush1.bf16.msra.mxu0 %v2042
    %2065 = vmatprep.subr.bf16.mxu0 0
    %2066 = vmatpush1.bf16.msra.mxu0 %v2041
    %2067 = vmatprep.subr.bf16.mxu0 0
    %2068 = vmatpush1.bf16.msra.mxu0 %v2040
    %2069 = vmatprep.subr.bf16.mxu0 0
    %2070 = vmatpush1.bf16.msra.mxu0 %v2039
    %2071 = vmatprep.subr.bf16.mxu0 0
    %2072 = vmatpush2.bf16.msra.mxu0 0
    %2073 = vmatprep.subr.bf16.mxu0 0
    %2074 = vmatpush2.bf16.msra.mxu0 0
    %2075 = vmatprep.subr.bf16.mxu0 0
    %2076 = vmatpush2.bf16.msra.mxu0 0
    %2077 = vmatprep.subr.bf16.mxu0 0
    %2078 = vmatpush2.bf16.msra.mxu0 0
    %2079 = vmatprep.subr.bf16.mxu0 0
    %2080 = vmatpush2.bf16.msra.mxu0 0
    %2081 = vmatprep.subr.bf16.mxu0 0
    %2082 = vmatpush2.bf16.msra.mxu0 0
    %2083 = vmatprep.subr.bf16.mxu0 0
    %2084 = vmatpush2.bf16.msra.mxu0 0
    %2085 = vmatprep.subr.bf16.mxu0 0
    %2086 = vmatpush2.bf16.msra.mxu0 0
    %2087 = vmatprep.mubr.bf16.mxu0 0
    %2088 = vmatmul.mubr.bf16.gmra.mxu0 %v1952
    %v2089 = vpop.f32.mrf.mxu0
    %v2090 = vadd.f32 %v2005, %v2089
    %v2091 = vpop.f32.mrf.mxu0
    %v2092 = vpop.f32.mrf.mxu0
    %v2093 = vadd.f32 %v2005, %v2092
    %v2094 = vpop.f32.mrf.mxu0
    %2095 = vmatprep.mubr.bf16.mxu0 0
    %2096 = vmatmul.mubr.bf16.gmra.mxu0 %v1953
    %v2097 = vpop.f32.mrf.mxu0
    %v2098 = vadd.f32 %v2005, %v2097
    %v2099 = vpop.f32.mrf.mxu0
    %v2100 = vpop.f32.mrf.mxu0
    %v2101 = vadd.f32 %v2005, %v2100
    %v2102 = vpop.f32.mrf.mxu0
    %2103 = vmatprep.mubr.bf16.mxu0 0
    %2104 = vmatmul.mubr.bf16.gmra.mxu0 %v1954
    %v2105 = vpop.f32.mrf.mxu0
    %v2106 = vadd.f32 %v2005, %v2105
    %v2107 = vpop.f32.mrf.mxu0
    %v2108 = vpop.f32.mrf.mxu0
    %v2109 = vadd.f32 %v2005, %v2108
    %v2110 = vpop.f32.mrf.mxu0
    %2111 = vmatprep.mubr.bf16.mxu0 0
    %2112 = vmatmul.mubr.bf16.gmra.mxu0 %v1955
    %v2113 = vpop.f32.mrf.mxu0
    %v2114 = vadd.f32 %v2005, %v2113
    %v2115 = vpop.f32.mrf.mxu0
    %v2116 = vpop.f32.mrf.mxu0
    %v2117 = vadd.f32 %v2005, %v2116
    %v2118 = vpop.f32.mrf.mxu0
    %2119 = vmatprep.mubr.bf16.mxu0 0
    %2120 = vmatmul.mubr.bf16.gmra.mxu0 %v1956
    %v2121 = vpop.f32.mrf.mxu0
    %v2122 = vadd.f32 %v2005, %v2121
    %v2123 = vpop.f32.mrf.mxu0
    %v2124 = vpop.f32.mrf.mxu0
    %v2125 = vadd.f32 %v2005, %v2124
    %v2126 = vpop.f32.mrf.mxu0
    %2127 = vmatprep.mubr.bf16.mxu0 0
    %2128 = vmatmul.mubr.bf16.gmra.mxu0 %v1957
    %v2129 = vpop.f32.mrf.mxu0
    %v2130 = vadd.f32 %v2005, %v2129
    %v2131 = vpop.f32.mrf.mxu0
    %v2132 = vpop.f32.mrf.mxu0
    %v2133 = vadd.f32 %v2005, %v2132
    %v2134 = vpop.f32.mrf.mxu0
    %2135 = vmatprep.mubr.bf16.mxu0 0
    %2136 = vmatmul.mubr.bf16.gmra.mxu0 %v1958
    %v2137 = vpop.f32.mrf.mxu0
    %v2138 = vadd.f32 %v2005, %v2137
    %v2139 = vpop.f32.mrf.mxu0
    %v2140 = vpop.f32.mrf.mxu0
    %v2141 = vadd.f32 %v2005, %v2140
    %v2142 = vpop.f32.mrf.mxu0
    %2143 = vmatprep.mubr.bf16.mxu0 0
    %2144 = vmatmul.mubr.bf16.gmra.mxu0 %v1959
    %v2145 = vpop.f32.mrf.mxu0
    %v2146 = vadd.f32 %v2005, %v2145
    %v2147 = vpop.f32.mrf.mxu0
    %v2148 = vpop.f32.mrf.mxu0
    %v2149 = vadd.f32 %v2005, %v2148
    %v2150 = vpop.f32.mrf.mxu0
    %2151 = vmatprep.mubr.bf16.mxu0 0
    %2152 = vmatmul.mubr.bf16.gmra.mxu0 %v1960
    %v2153 = vpop.f32.mrf.mxu0
    %v2154 = vadd.f32 %v2005, %v2153
    %v2155 = vpop.f32.mrf.mxu0
    %v2156 = vpop.f32.mrf.mxu0
    %v2157 = vadd.f32 %v2005, %v2156
    %v2158 = vpop.f32.mrf.mxu0
    %2159 = vmatprep.mubr.bf16.mxu0 0
    %2160 = vmatmul.mubr.bf16.gmra.mxu0 %v1961
    %v2161 = vpop.f32.mrf.mxu0
    %v2162 = vadd.f32 %v2005, %v2161
    %v2163 = vpop.f32.mrf.mxu0
    %v2164 = vpop.f32.mrf.mxu0
    %v2165 = vadd.f32 %v2005, %v2164
    %v2166 = vpop.f32.mrf.mxu0
    %2167 = vmatprep.mubr.bf16.mxu0 0
    %2168 = vmatmul.mubr.bf16.gmra.mxu0 %v1962
    %v2169 = vpop.f32.mrf.mxu0
    %v2170 = vadd.f32 %v2005, %v2169
    %v2171 = vpop.f32.mrf.mxu0
    %v2172 = vpop.f32.mrf.mxu0
    %v2173 = vadd.f32 %v2005, %v2172
    %v2174 = vpop.f32.mrf.mxu0
    %2175 = vmatprep.mubr.bf16.mxu0 0
    %2176 = vmatmul.mubr.bf16.gmra.mxu0 %v1963
    %v2177 = vpop.f32.mrf.mxu0
    %v2178 = vadd.f32 %v2005, %v2177
    %v2179 = vpop.f32.mrf.mxu0
    %v2180 = vpop.f32.mrf.mxu0
    %v2181 = vadd.f32 %v2005, %v2180
    %v2182 = vpop.f32.mrf.mxu0
    %2183 = vmatprep.mubr.bf16.mxu0 0
    %2184 = vmatmul.mubr.bf16.gmra.mxu0 %v1964
    %v2185 = vpop.f32.mrf.mxu0
    %v2186 = vadd.f32 %v2005, %v2185
    %v2187 = vpop.f32.mrf.mxu0
    %v2188 = vpop.f32.mrf.mxu0
    %v2189 = vadd.f32 %v2005, %v2188
    %v2190 = vpop.f32.mrf.mxu0
    %2191 = vmatprep.mubr.bf16.mxu0 0
    %2192 = vmatmul.mubr.bf16.gmra.mxu0 %v1965
    %v2193 = vpop.f32.mrf.mxu0
    %v2194 = vadd.f32 %v2005, %v2193
    %v2195 = vpop.f32.mrf.mxu0
    %v2196 = vpop.f32.mrf.mxu0
    %v2197 = vadd.f32 %v2005, %v2196
    %v2198 = vpop.f32.mrf.mxu0
    %2199 = vmatprep.mubr.bf16.mxu0 0
    %2200 = vmatmul.mubr.bf16.gmra.mxu0 %v1966
    %v2201 = vpop.f32.mrf.mxu0
    %v2202 = vadd.f32 %v2005, %v2201
    %v2203 = vpop.f32.mrf.mxu0
    %v2204 = vpop.f32.mrf.mxu0
    %v2205 = vadd.f32 %v2005, %v2204
    %v2206 = vpop.f32.mrf.mxu0
    %2207 = vmatprep.mubr.bf16.mxu0 0
    %2208 = vmatmul.mubr.bf16.gmra.mxu0 %v1967
    %v2209 = vpop.f32.mrf.mxu0
    %v2210 = vadd.f32 %v2005, %v2209
    %v2211 = vpop.f32.mrf.mxu0
    %v2212 = vpop.f32.mrf.mxu0
    %v2213 = vadd.f32 %v2005, %v2212
    %v2214 = vpop.f32.mrf.mxu0
    %2215 = vmatprep.mubr.bf16.mxu0 0
    %2216 = vmatmul.mubr.bf16.gmra.mxu0 %v1968
    %v2217 = vpop.f32.mrf.mxu0
    %v2218 = vadd.f32 %v2005, %v2217
    %v2219 = vpop.f32.mrf.mxu0
    %v2220 = vpop.f32.mrf.mxu0
    %v2221 = vadd.f32 %v2005, %v2220
    %v2222 = vpop.f32.mrf.mxu0
    %2223 = vmatprep.mubr.bf16.mxu0 0
    %2224 = vmatmul.mubr.bf16.gmra.mxu0 %v1969
    %v2225 = vpop.f32.mrf.mxu0
    %v2226 = vadd.f32 %v2005, %v2225
    %v2227 = vpop.f32.mrf.mxu0
    %v2228 = vpop.f32.mrf.mxu0
    %v2229 = vadd.f32 %v2005, %v2228
    %v2230 = vpop.f32.mrf.mxu0
    %2231 = vmatprep.mubr.bf16.mxu0 0
    %2232 = vmatmul.mubr.bf16.gmra.mxu0 %v1970
    %v2233 = vpop.f32.mrf.mxu0
    %v2234 = vadd.f32 %v2005, %v2233
    %v2235 = vpop.f32.mrf.mxu0
    %v2236 = vpop.f32.mrf.mxu0
    %v2237 = vadd.f32 %v2005, %v2236
    %v2238 = vpop.f32.mrf.mxu0
    %2239 = vmatprep.mubr.bf16.mxu0 0
    %2240 = vmatmul.mubr.bf16.gmra.mxu0 %v1971
    %v2241 = vpop.f32.mrf.mxu0
    %v2242 = vadd.f32 %v2005, %v2241
    %v2243 = vpop.f32.mrf.mxu0
    %v2244 = vpop.f32.mrf.mxu0
    %v2245 = vadd.f32 %v2005, %v2244
    %v2246 = vpop.f32.mrf.mxu0
    %2247 = vmatprep.mubr.bf16.mxu0 0
    %2248 = vmatmul.mubr.bf16.gmra.mxu0 %v1972
    %v2249 = vpop.f32.mrf.mxu0
    %v2250 = vadd.f32 %v2005, %v2249
    %v2251 = vpop.f32.mrf.mxu0
    %v2252 = vpop.f32.mrf.mxu0
    %v2253 = vadd.f32 %v2005, %v2252
    %v2254 = vpop.f32.mrf.mxu0
    %2255 = vmatprep.mubr.bf16.mxu0 0
    %2256 = vmatmul.mubr.bf16.gmra.mxu0 %v1973
    %v2257 = vpop.f32.mrf.mxu0
    %v2258 = vadd.f32 %v2005, %v2257
    %v2259 = vpop.f32.mrf.mxu0
    %v2260 = vpop.f32.mrf.mxu0
    %v2261 = vadd.f32 %v2005, %v2260
    %v2262 = vpop.f32.mrf.mxu0
    %2263 = vmatprep.mubr.bf16.mxu0 0
    %2264 = vmatmul.mubr.bf16.gmra.mxu0 %v1974
    %v2265 = vpop.f32.mrf.mxu0
    %v2266 = vadd.f32 %v2005, %v2265
    %v2267 = vpop.f32.mrf.mxu0
    %v2268 = vpop.f32.mrf.mxu0
    %v2269 = vadd.f32 %v2005, %v2268
    %v2270 = vpop.f32.mrf.mxu0
    %2271 = vmatprep.mubr.bf16.mxu0 0
    %2272 = vmatmul.mubr.bf16.gmra.mxu0 %v1975
    %v2273 = vpop.f32.mrf.mxu0
    %v2274 = vadd.f32 %v2005, %v2273
    %v2275 = vpop.f32.mrf.mxu0
    %v2276 = vpop.f32.mrf.mxu0
    %v2277 = vadd.f32 %v2005, %v2276
    %v2278 = vpop.f32.mrf.mxu0
    %2279 = vmatprep.mubr.bf16.mxu0 0
    %2280 = vmatmul.mubr.bf16.gmra.mxu0 %v1976
    %v2281 = vpop.f32.mrf.mxu0
    %v2282 = vadd.f32 %v2005, %v2281
    %v2283 = vpop.f32.mrf.mxu0
    %v2284 = vpop.f32.mrf.mxu0
    %v2285 = vadd.f32 %v2005, %v2284
    %v2286 = vpop.f32.mrf.mxu0
    %2287 = vmatprep.mubr.bf16.mxu0 0
    %2288 = vmatmul.mubr.bf16.gmra.mxu0 %v1977
    %v2289 = vpop.f32.mrf.mxu0
    %v2290 = vadd.f32 %v2005, %v2289
    %v2291 = vpop.f32.mrf.mxu0
    %v2292 = vpop.f32.mrf.mxu0
    %v2293 = vadd.f32 %v2005, %v2292
    %v2294 = vpop.f32.mrf.mxu0
    %2295 = vmatprep.mubr.bf16.mxu0 0
    %2296 = vmatmul.mubr.bf16.gmra.mxu0 %v1978
    %v2297 = vpop.f32.mrf.mxu0
    %v2298 = vadd.f32 %v2005, %v2297
    %v2299 = vpop.f32.mrf.mxu0
    %v2300 = vpop.f32.mrf.mxu0
    %v2301 = vadd.f32 %v2005, %v2300
    %v2302 = vpop.f32.mrf.mxu0
    %2303 = vmatprep.mubr.bf16.mxu0 0
    %2304 = vmatmul.mubr.bf16.gmra.mxu0 %v1979
    %v2305 = vpop.f32.mrf.mxu0
    %v2306 = vadd.f32 %v2005, %v2305
    %v2307 = vpop.f32.mrf.mxu0
    %v2308 = vpop.f32.mrf.mxu0
    %v2309 = vadd.f32 %v2005, %v2308
    %v2310 = vpop.f32.mrf.mxu0
    %2311 = vmatprep.mubr.bf16.mxu0 0
    %2312 = vmatmul.mubr.bf16.gmra.mxu0 %v1980
    %v2313 = vpop.f32.mrf.mxu0
    %v2314 = vadd.f32 %v2005, %v2313
    %v2315 = vpop.f32.mrf.mxu0
    %v2316 = vpop.f32.mrf.mxu0
    %v2317 = vadd.f32 %v2005, %v2316
    %v2318 = vpop.f32.mrf.mxu0
    %2319 = vmatprep.mubr.bf16.mxu0 0
    %2320 = vmatmul.mubr.bf16.gmra.mxu0 %v1981
    %v2321 = vpop.f32.mrf.mxu0
    %v2322 = vadd.f32 %v2005, %v2321
    %v2323 = vpop.f32.mrf.mxu0
    %v2324 = vpop.f32.mrf.mxu0
    %v2325 = vadd.f32 %v2005, %v2324
    %v2326 = vpop.f32.mrf.mxu0
    %2327 = vmatprep.mubr.bf16.mxu0 0
    %2328 = vmatmul.mubr.bf16.gmra.mxu0 %v1982
    %v2329 = vpop.f32.mrf.mxu0
    %v2330 = vadd.f32 %v2005, %v2329
    %v2331 = vpop.f32.mrf.mxu0
    %v2332 = vpop.f32.mrf.mxu0
    %v2333 = vadd.f32 %v2005, %v2332
    %v2334 = vpop.f32.mrf.mxu0
    %2335 = vmatprep.mubr.bf16.mxu0 0
    %2336 = vmatmul.mubr.bf16.gmra.mxu0 %v1983
    %v2337 = vpop.f32.mrf.mxu0
    %v2338 = vadd.f32 %v2005, %v2337
    %v2339 = vpop.f32.mrf.mxu0
    %v2340 = vpop.f32.mrf.mxu0
    %v2341 = vadd.f32 %v2005, %v2340
    %v2342 = vpop.f32.mrf.mxu0
    %2343 = vdwg.mxu0
    %2344 = vst [vmem:[%s4] sm:$0xff] %v2090
    %2345 = vst [vmem:[%s4 + $0x8] sm:$0xff] %v2093
    %2346 = vst [vmem:[%s4 + $0x10] sm:$0xff] %v2098
    %2347 = vst [vmem:[%s4 + $0x18] sm:$0xff] %v2101
    %2348 = vst [vmem:[%s4 + $0x20] sm:$0xff] %v2106
    %2349 = vst [vmem:[%s4 + $0x28] sm:$0xff] %v2109
    %2350 = vst [vmem:[%s4 + $0x30] sm:$0xff] %v2114
    %2351 = vst [vmem:[%s4 + $0x38] sm:$0xff] %v2117
    %2352 = vst [vmem:[%s4 + $0x40] sm:$0xff] %v2122
    %2353 = vst [vmem:[%s4 + $0x48] sm:$0xff] %v2125
    %2354 = vst [vmem:[%s4 + $0x50] sm:$0xff] %v2130
    %2355 = vst [vmem:[%s4 + $0x58] sm:$0xff] %v2133
    %2356 = vst [vmem:[%s4 + $0x60] sm:$0xff] %v2138
    %2357 = vst [vmem:[%s4 + $0x68] sm:$0xff] %v2141
    %2358 = vst [vmem:[%s4 + $0x70] sm:$0xff] %v2146
    %2359 = vst [vmem:[%s4 + $0x78] sm:$0xff] %v2149
    %2360 = vst [vmem:[%s4 + $0x80] sm:$0xff] %v2154
    %2361 = vst [vmem:[%s4 + $0x88] sm:$0xff] %v2157
    %2362 = vst [vmem:[%s4 + $0x90] sm:$0xff] %v2162
    %2363 = vst [vmem:[%s4 + $0x98] sm:$0xff] %v2165
    %2364 = vst [vmem:[%s4 + $0xa0] sm:$0xff] %v2170
    %2365 = vst [vmem:[%s4 + $0xa8] sm:$0xff] %v2173
    %2366 = vst [vmem:[%s4 + $0xb0] sm:$0xff] %v2178
    %2367 = vst [vmem:[%s4 + $0xb8] sm:$0xff] %v2181
    %2368 = vst [vmem:[%s4 + $0xc0] sm:$0xff] %v2186
    %2369 = vst [vmem:[%s4 + $0xc8] sm:$0xff] %v2189
    %2370 = vst [vmem:[%s4 + $0xd0] sm:$0xff] %v2194
    %2371 = vst [vmem:[%s4 + $0xd8] sm:$0xff] %v2197
    %2372 = vst [vmem:[%s4 + $0xe0] sm:$0xff] %v2202
    %2373 = vst [vmem:[%s4 + $0xe8] sm:$0xff] %v2205
    %2374 = vst [vmem:[%s4 + $0xf0] sm:$0xff] %v2210
    %2375 = vst [vmem:[%s4 + $0xf8] sm:$0xff] %v2213
    %2376 = vst [vmem:[%s4 + $0x100] sm:$0xff] %v2218
    %2377 = vst [vmem:[%s4 + $0x108] sm:$0xff] %v2221
    %2378 = vst [vmem:[%s4 + $0x110] sm:$0xff] %v2226
    %2379 = vst [vmem:[%s4 + $0x118] sm:$0xff] %v2229
    %2380 = vst [vmem:[%s4 + $0x120] sm:$0xff] %v2234
    %2381 = vst [vmem:[%s4 + $0x128] sm:$0xff] %v2237
    %2382 = vst [vmem:[%s4 + $0x130] sm:$0xff] %v2242
    %2383 = vst [vmem:[%s4 + $0x138] sm:$0xff] %v2245
    %2384 = vst [vmem:[%s4 + $0x140] sm:$0xff] %v2250
    %2385 = vst [vmem:[%s4 + $0x148] sm:$0xff] %v2253
    %2386 = vst [vmem:[%s4 + $0x150] sm:$0xff] %v2258
    %2387 = vst [vmem:[%s4 + $0x158] sm:$0xff] %v2261
    %2388 = vst [vmem:[%s4 + $0x160] sm:$0xff] %v2266
    %2389 = vst [vmem:[%s4 + $0x168] sm:$0xff] %v2269
    %2390 = vst [vmem:[%s4 + $0x170] sm:$0xff] %v2274
    %2391 = vst [vmem:[%s4 + $0x178] sm:$0xff] %v2277
    %2392 = vst [vmem:[%s4 + $0x180] sm:$0xff] %v2282
    %2393 = vst [vmem:[%s4 + $0x188] sm:$0xff] %v2285
    %2394 = vst [vmem:[%s4 + $0x190] sm:$0xff] %v2290
    %2395 = vst [vmem:[%s4 + $0x198] sm:$0xff] %v2293
    %2396 = vst [vmem:[%s4 + $0x1a0] sm:$0xff] %v2298
    %2397 = vst [vmem:[%s4 + $0x1a8] sm:$0xff] %v2301
    %2398 = vst [vmem:[%s4 + $0x1b0] sm:$0xff] %v2306
    %2399 = vst [vmem:[%s4 + $0x1b8] sm:$0xff] %v2309
    %2400 = vst [vmem:[%s4 + $0x1c0] sm:$0xff] %v2314
    %2401 = vst [vmem:[%s4 + $0x1c8] sm:$0xff] %v2317
    %2402 = vst [vmem:[%s4 + $0x1d0] sm:$0xff] %v2322
    %2403 = vst [vmem:[%s4 + $0x1d8] sm:$0xff] %v2325
    %2404 = vst [vmem:[%s4 + $0x1e0] sm:$0xff] %v2330
    %2405 = vst [vmem:[%s4 + $0x1e8] sm:$0xff] %v2333
    %2406 = vst [vmem:[%s4 + $0x1f0] sm:$0xff] %v2338
    %2407 = vst [vmem:[%s4 + $0x1f8] sm:$0xff] %v2341
  $region25: #{gcn_encoder.3} parent=0 // pred_fallthru
    _
  // Predicated region
  $region26: #{gcn_encoder.3} parent=0 // pred_check
    _
  $region27: #{gcn_encoder.3} parent=0 // pred_check_branch
    %2409 = sbr.rel (0) target = $region29
  $region28: #{gcn_encoder.3} parent=0 // pred_region
    _
  $region29: #{gcn_encoder.3} parent=0 // pred_fallthru
    _
  // Predicated region
  $region30: #{gcn_encoder.3} parent=0 // pred_check
    _
  $region31: #{gcn_encoder.3} parent=0 // pred_check_branch
    %2411 = sbr.rel (0) target = $region33
  $region32: #{gcn_encoder.3} parent=0 // pred_region
    _
  $region33: #{gcn_encoder.3} parent=0 // pred_fallthru
    _

// kernel: gcn_encoder.2
$region0: #{gcn_encoder.2}
  #allocation0 [shape = 'u32[]', space=smem, size = 0x4, offset = 0x4, fixed_abs, tag = 'smem constant byte address 0x4 - core index']
  #allocation1 [shape = 'u32[144,128]{1,0:T(1,128)}', space=vmem, size = 0x12000, scoped, tag = 'internal scratch']
  #allocation2 [shape = 'f32[512,128]{1,0:T(8,128)}', space=vmem, size = 0x40000, scoped, tag = 'scratch operand']
  %s0 = inlined_call_operand.hbm [shape: bf16[512,512], index: 0, kind: input, shape index: {}]
  %s1 = inlined_call_operand.vmem [shape: bf16[512,128], index: 1, kind: input, shape index: {}]
  %s2 = inlined_call_operand.vmem [shape: bf16[128,128], index: 2, kind: input, shape index: {}]
  %s3 = inlined_call_operand.vmem [shape: f32[1,128], index: 3, kind: input, shape index: {}]
  %s4 = inlined_call_operand.vmem [shape: bf16[512,128], index: 4, kind: output, shape index: {}]
  %s5 = sld [smem:[#allocation0]]
  $region38: #{gcn_encoder.2} parent=0
    _
  %s7 = ssub.s32 1, %s5
  %s8 = scalar_select 0, %s7, %s5
  $region1: #{gcn_encoder.2} parent=0
    #allocation3 [shape = 'u8[524288]{0}', space=vmem, size = 0x80000, scoped, tag = 'input window, operand 0, single buffered']
    #allocation4 [shape = 's32[1]{0}', space=sflag, size = 0x4, scoped, tag = 'scoped memory for gcn_encoder.2']
    %9 = vsyncpa [#allocation4], 0
    // Predicated region
    $region2: #{gcn_encoder.2} parent=1 // pred_check
      _
    $region3: #{gcn_encoder.2} parent=1 // pred_check_branch
      %11 = sbr.rel (0) target = $region5
    $region4: #{gcn_encoder.2} parent=1 // pred_region
      %s13 = ssub.s32 16384, 16384
      %14 = vsyncadd [#allocation4], %s13
      %s15 = sshll.u32 [#allocation3], 4
      %s16 = int_to_ptr.vmem [resolvable:$true] %s15
      %21 = dma.hbm_to_vmem [thread:$0]  %s0, 16384, %s16, [#allocation4], 256, 256, 16
    $region5: #{gcn_encoder.2} parent=1 // pred_fallthru
      _
    // Predicated region
    $region6: #{gcn_encoder.2} parent=1 // pred_check
      _
    $region7: #{gcn_encoder.2} parent=1 // pred_check_branch
      %23 = sbr.rel (0) target = $region9
    $region8: #{gcn_encoder.2} parent=1 // pred_region
      _
    $region9: #{gcn_encoder.2} parent=1 // pred_fallthru
      _
    // Predicated region
    $region10: #{gcn_encoder.2} parent=1 // pred_check
      _
    $region11: #{gcn_encoder.2} parent=1 // pred_check_branch
      %25 = sbr.rel (0) target = $region13
    $region12: #{gcn_encoder.2} parent=1 // pred_region
      _
    $region13: #{gcn_encoder.2} parent=1 // pred_fallthru
      _
    // Predicated region
    $region14: #{gcn_encoder.2} parent=1 // pred_check
      _
    $region15: #{gcn_encoder.2} parent=1 // pred_check_branch
      %27 = sbr.rel (0) target = $region17
    $region16: #{gcn_encoder.2} parent=1 // pred_region
      _
    $region17: #{gcn_encoder.2} parent=1 // pred_fallthru
      _
    // Predicated region
    $region18: #{gcn_encoder.2} parent=1 // pred_check
      _
    $region19: #{gcn_encoder.2} parent=1 // pred_check_branch
      %29 = sbr.rel (0) target = $region21
    $region20: #{gcn_encoder.2} parent=1 // pred_region
      %30 = dma.done [#allocation4], 16384
    $region21: #{gcn_encoder.2} parent=1 // pred_fallthru
      _
    %p32 = scmp.eq.s32.totalorder 0, 0
    // Predicated region
    $region22: #{gcn_encoder.2} parent=1 // pred_check
      %p33 = pneg %p32
    $region23: #{gcn_encoder.2} parent=1 // pred_check_branch
      %35 = sbr.rel (%p33) target = $region25
    $region24: #{gcn_encoder.2} parent=1 // pred_region
      %36 = vst [vmem:[#allocation2] sm:$0xff] 0.0
      %37 = vst [vmem:[#allocation2 + $0x8] sm:$0xff] 0.0
      %38 = vst [vmem:[#allocation2 + $0x10] sm:$0xff] 0.0
      %39 = vst [vmem:[#allocation2 + $0x18] sm:$0xff] 0.0
      %40 = vst [vmem:[#allocation2 + $0x20] sm:$0xff] 0.0
      %41 = vst [vmem:[#allocation2 + $0x28] sm:$0xff] 0.0
      %42 = vst [vmem:[#allocation2 + $0x30] sm:$0xff] 0.0
      %43 = vst [vmem:[#allocation2 + $0x38] sm:$0xff] 0.0
      %44 = vst [vmem:[#allocation2 + $0x40] sm:$0xff] 0.0
      %45 = vst [vmem:[#allocation2 + $0x48] sm:$0xff] 0.0
      %46 = vst [vmem:[#allocation2 + $0x50] sm:$0xff] 0.0
      %47 = vst [vmem:[#allocation2 + $0x58] sm:$0xff] 0.0
      %48 = vst [vmem:[#allocation2 + $0x60] sm:$0xff] 0.0
      %49 = vst [vmem:[#allocation2 + $0x68] sm:$0xff] 0.0
      %50 = vst [vmem:[#allocation2 + $0x70] sm:$0xff] 0.0
      %51 = vst [vmem:[#allocation2 + $0x78] sm:$0xff] 0.0
      %52 = vst [vmem:[#allocation2 + $0x80] sm:$0xff] 0.0
      %53 = vst [vmem:[#allocation2 + $0x88] sm:$0xff] 0.0
      %54 = vst [vmem:[#allocation2 + $0x90] sm:$0xff] 0.0
      %55 = vst [vmem:[#allocation2 + $0x98] sm:$0xff] 0.0
      %56 = vst [vmem:[#allocation2 + $0xa0] sm:$0xff] 0.0
      %57 = vst [vmem:[#allocation2 + $0xa8] sm:$0xff] 0.0
      %58 = vst [vmem:[#allocation2 + $0xb0] sm:$0xff] 0.0
      %59 = vst [vmem:[#allocation2 + $0xb8] sm:$0xff] 0.0
      %60 = vst [vmem:[#allocation2 + $0xc0] sm:$0xff] 0.0
      %61 = vst [vmem:[#allocation2 + $0xc8] sm:$0xff] 0.0
      %62 = vst [vmem:[#allocation2 + $0xd0] sm:$0xff] 0.0
      %63 = vst [vmem:[#allocation2 + $0xd8] sm:$0xff] 0.0
      %64 = vst [vmem:[#allocation2 + $0xe0] sm:$0xff] 0.0
      %65 = vst [vmem:[#allocation2 + $0xe8] sm:$0xff] 0.0
      %66 = vst [vmem:[#allocation2 + $0xf0] sm:$0xff] 0.0
      %67 = vst [vmem:[#allocation2 + $0xf8] sm:$0xff] 0.0
      %68 = vst [vmem:[#allocation2 + $0x100] sm:$0xff] 0.0
      %69 = vst [vmem:[#allocation2 + $0x108] sm:$0xff] 0.0
      %70 = vst [vmem:[#allocation2 + $0x110] sm:$0xff] 0.0
      %71 = vst [vmem:[#allocation2 + $0x118] sm:$0xff] 0.0
      %72 = vst [vmem:[#allocation2 + $0x120] sm:$0xff] 0.0
      %73 = vst [vmem:[#allocation2 + $0x128] sm:$0xff] 0.0
      %74 = vst [vmem:[#allocation2 + $0x130] sm:$0xff] 0.0
      %75 = vst [vmem:[#allocation2 + $0x138] sm:$0xff] 0.0
      %76 = vst [vmem:[#allocation2 + $0x140] sm:$0xff] 0.0
      %77 = vst [vmem:[#allocation2 + $0x148] sm:$0xff] 0.0
      %78 = vst [vmem:[#allocation2 + $0x150] sm:$0xff] 0.0
      %79 = vst [vmem:[#allocation2 + $0x158] sm:$0xff] 0.0
      %80 = vst [vmem:[#allocation2 + $0x160] sm:$0xff] 0.0
      %81 = vst [vmem:[#allocation2 + $0x168] sm:$0xff] 0.0
      %82 = vst [vmem:[#allocation2 + $0x170] sm:$0xff] 0.0
      %83 = vst [vmem:[#allocation2 + $0x178] sm:$0xff] 0.0
      %84 = vst [vmem:[#allocation2 + $0x180] sm:$0xff] 0.0
      %85 = vst [vmem:[#allocation2 + $0x188] sm:$0xff] 0.0
      %86 = vst [vmem:[#allocation2 + $0x190] sm:$0xff] 0.0
      %87 = vst [vmem:[#allocation2 + $0x198] sm:$0xff] 0.0
      %88 = vst [vmem:[#allocation2 + $0x1a0] sm:$0xff] 0.0
      %89 = vst [vmem:[#allocation2 + $0x1a8] sm:$0xff] 0.0
      %90 = vst [vmem:[#allocation2 + $0x1b0] sm:$0xff] 0.0
      %91 = vst [vmem:[#allocation2 + $0x1b8] sm:$0xff] 0.0
      %92 = vst [vmem:[#allocation2 + $0x1c0] sm:$0xff] 0.0
      %93 = vst [vmem:[#allocation2 + $0x1c8] sm:$0xff] 0.0
      %94 = vst [vmem:[#allocation2 + $0x1d0] sm:$0xff] 0.0
      %95 = vst [vmem:[#allocation2 + $0x1d8] sm:$0xff] 0.0
      %96 = vst [vmem:[#allocation2 + $0x1e0] sm:$0xff] 0.0
      %97 = vst [vmem:[#allocation2 + $0x1e8] sm:$0xff] 0.0
      %98 = vst [vmem:[#allocation2 + $0x1f0] sm:$0xff] 0.0
      %99 = vst [vmem:[#allocation2 + $0x1f8] sm:$0xff] 0.0
    $region25: #{gcn_encoder.2} parent=1 // pred_fallthru
      _
    %s100 = smul.u32 0, 512
    %s101 = sshra.s32 %s100, 3
    %s102 = sand.u32 %s100, 7
    %s103 = smul.addr %s101, 4
    %s104 = scalar_lea.vmem %s1, %s103
    %v105 = vld [vmem:[%s104] sm:$0xf]
    %v106 = vld [vmem:[%s104 + $0x4] sm:$0xf]
    %v107 = vld [vmem:[%s104 + $0x8] sm:$0xf]
    %v108 = vld [vmem:[%s104 + $0xc] sm:$0xf]
    %v109 = vld [vmem:[%s104 + $0x10] sm:$0xf]
    %v110 = vld [vmem:[%s104 + $0x14] sm:$0xf]
    %v111 = vld [vmem:[%s104 + $0x18] sm:$0xf]
    %v112 = vld [vmem:[%s104 + $0x1c] sm:$0xf]
    %v113 = vld [vmem:[%s104 + $0x20] sm:$0xf]
    %v114 = vld [vmem:[%s104 + $0x24] sm:$0xf]
    %v115 = vld [vmem:[%s104 + $0x28] sm:$0xf]
    %v116 = vld [vmem:[%s104 + $0x2c] sm:$0xf]
    %v117 = vld [vmem:[%s104 + $0x30] sm:$0xf]
    %v118 = vld [vmem:[%s104 + $0x34] sm:$0xf]
    %v119 = vld [vmem:[%s104 + $0x38] sm:$0xf]
    %v120 = vld [vmem:[%s104 + $0x3c] sm:$0xf]
    %v121 = vld [vmem:[%s104 + $0x40] sm:$0xf]
    %v122 = vld [vmem:[%s104 + $0x44] sm:$0xf]
    %v123 = vld [vmem:[%s104 + $0x48] sm:$0xf]
    %v124 = vld [vmem:[%s104 + $0x4c] sm:$0xf]
    %v125 = vld [vmem:[%s104 + $0x50] sm:$0xf]
    %v126 = vld [vmem:[%s104 + $0x54] sm:$0xf]
    %v127 = vld [vmem:[%s104 + $0x58] sm:$0xf]
    %v128 = vld [vmem:[%s104 + $0x5c] sm:$0xf]
    %v129 = vld [vmem:[%s104 + $0x60] sm:$0xf]
    %v130 = vld [vmem:[%s104 + $0x64] sm:$0xf]
    %v131 = vld [vmem:[%s104 + $0x68] sm:$0xf]
    %v132 = vld [vmem:[%s104 + $0x6c] sm:$0xf]
    %v133 = vld [vmem:[%s104 + $0x70] sm:$0xf]
    %v134 = vld [vmem:[%s104 + $0x74] sm:$0xf]
    %v135 = vld [vmem:[%s104 + $0x78] sm:$0xf]
    %v136 = vld [vmem:[%s104 + $0x7c] sm:$0xf]
    %v137 = vld [vmem:[%s104 + $0x80] sm:$0xf]
    %v138 = vld [vmem:[%s104 + $0x84] sm:$0xf]
    %v139 = vld [vmem:[%s104 + $0x88] sm:$0xf]
    %v140 = vld [vmem:[%s104 + $0x8c] sm:$0xf]
    %v141 = vld [vmem:[%s104 + $0x90] sm:$0xf]
    %v142 = vld [vmem:[%s104 + $0x94] sm:$0xf]
    %v143 = vld [vmem:[%s104 + $0x98] sm:$0xf]
    %v144 = vld [vmem:[%s104 + $0x9c] sm:$0xf]
    %v145 = vld [vmem:[%s104 + $0xa0] sm:$0xf]
    %v146 = vld [vmem:[%s104 + $0xa4] sm:$0xf]
    %v147 = vld [vmem:[%s104 + $0xa8] sm:$0xf]
    %v148 = vld [vmem:[%s104 + $0xac] sm:$0xf]
    %v149 = vld [vmem:[%s104 + $0xb0] sm:$0xf]
    %v150 = vld [vmem:[%s104 + $0xb4] sm:$0xf]
    %v151 = vld [vmem:[%s104 + $0xb8] sm:$0xf]
    %v152 = vld [vmem:[%s104 + $0xbc] sm:$0xf]
    %v153 = vld [vmem:[%s104 + $0xc0] sm:$0xf]
    %v154 = vld [vmem:[%s104 + $0xc4] sm:$0xf]
    %v155 = vld [vmem:[%s104 + $0xc8] sm:$0xf]
    %v156 = vld [vmem:[%s104 + $0xcc] sm:$0xf]
    %v157 = vld [vmem:[%s104 + $0xd0] sm:$0xf]
    %v158 = vld [vmem:[%s104 + $0xd4] sm:$0xf]
    %v159 = vld [vmem:[%s104 + $0xd8] sm:$0xf]
    %v160 = vld [vmem:[%s104 + $0xdc] sm:$0xf]
    %v161 = vld [vmem:[%s104 + $0xe0] sm:$0xf]
    %v162 = vld [vmem:[%s104 + $0xe4] sm:$0xf]
    %v163 = vld [vmem:[%s104 + $0xe8] sm:$0xf]
    %v164 = vld [vmem:[%s104 + $0xec] sm:$0xf]
    %v165 = vld [vmem:[%s104 + $0xf0] sm:$0xf]
    %v166 = vld [vmem:[%s104 + $0xf4] sm:$0xf]
    %v167 = vld [vmem:[%s104 + $0xf8] sm:$0xf]
    %v168 = vld [vmem:[%s104 + $0xfc] sm:$0xf]
    %v169 = vld [vmem:[#allocation2] sm:$0xff]
    %v170 = vld [vmem:[#allocation2 + $0x8] sm:$0xff]
    %v171 = vld [vmem:[#allocation2 + $0x10] sm:$0xff]
    %v172 = vld [vmem:[#allocation2 + $0x18] sm:$0xff]
    %v173 = vld [vmem:[#allocation2 + $0x20] sm:$0xff]
    %v174 = vld [vmem:[#allocation2 + $0x28] sm:$0xff]
    %v175 = vld [vmem:[#allocation2 + $0x30] sm:$0xff]
    %v176 = vld [vmem:[#allocation2 + $0x38] sm:$0xff]
    %v177 = vld [vmem:[#allocation2 + $0x40] sm:$0xff]
    %v178 = vld [vmem:[#allocation2 + $0x48] sm:$0xff]
    %v179 = vld [vmem:[#allocation2 + $0x50] sm:$0xff]
    %v180 = vld [vmem:[#allocation2 + $0x58] sm:$0xff]
    %v181 = vld [vmem:[#allocation2 + $0x60] sm:$0xff]
    %v182 = vld [vmem:[#allocation2 + $0x68] sm:$0xff]
    %v183 = vld [vmem:[#allocation2 + $0x70] sm:$0xff]
    %v184 = vld [vmem:[#allocation2 + $0x78] sm:$0xff]
    %v185 = vld [vmem:[#allocation2 + $0x80] sm:$0xff]
    %v186 = vld [vmem:[#allocation2 + $0x88] sm:$0xff]
    %v187 = vld [vmem:[#allocation2 + $0x90] sm:$0xff]
    %v188 = vld [vmem:[#allocation2 + $0x98] sm:$0xff]
    %v189 = vld [vmem:[#allocation2 + $0xa0] sm:$0xff]
    %v190 = vld [vmem:[#allocation2 + $0xa8] sm:$0xff]
    %v191 = vld [vmem:[#allocation2 + $0xb0] sm:$0xff]
    %v192 = vld [vmem:[#allocation2 + $0xb8] sm:$0xff]
    %v193 = vld [vmem:[#allocation2 + $0xc0] sm:$0xff]
    %v194 = vld [vmem:[#allocation2 + $0xc8] sm:$0xff]
    %v195 = vld [vmem:[#allocation2 + $0xd0] sm:$0xff]
    %v196 = vld [vmem:[#allocation2 + $0xd8] sm:$0xff]
    %v197 = vld [vmem:[#allocation2 + $0xe0] sm:$0xff]
    %v198 = vld [vmem:[#allocation2 + $0xe8] sm:$0xff]
    %v199 = vld [vmem:[#allocation2 + $0xf0] sm:$0xff]
    %v200 = vld [vmem:[#allocation2 + $0xf8] sm:$0xff]
    %v201 = vld [vmem:[#allocation2 + $0x100] sm:$0xff]
    %v202 = vld [vmem:[#allocation2 + $0x108] sm:$0xff]
    %v203 = vld [vmem:[#allocation2 + $0x110] sm:$0xff]
    %v204 = vld [vmem:[#allocation2 + $0x118] sm:$0xff]
    %v205 = vld [vmem:[#allocation2 + $0x120] sm:$0xff]
    %v206 = vld [vmem:[#allocation2 + $0x128] sm:$0xff]
    %v207 = vld [vmem:[#allocation2 + $0x130] sm:$0xff]
    %v208 = vld [vmem:[#allocation2 + $0x138] sm:$0xff]
    %v209 = vld [vmem:[#allocation2 + $0x140] sm:$0xff]
    %v210 = vld [vmem:[#allocation2 + $0x148] sm:$0xff]
    %v211 = vld [vmem:[#allocation2 + $0x150] sm:$0xff]
    %v212 = vld [vmem:[#allocation2 + $0x158] sm:$0xff]
    %v213 = vld [vmem:[#allocation2 + $0x160] sm:$0xff]
    %v214 = vld [vmem:[#allocation2 + $0x168] sm:$0xff]
    %v215 = vld [vmem:[#allocation2 + $0x170] sm:$0xff]
    %v216 = vld [vmem:[#allocation2 + $0x178] sm:$0xff]
    %v217 = vld [vmem:[#allocation2 + $0x180] sm:$0xff]
    %v218 = vld [vmem:[#allocation2 + $0x188] sm:$0xff]
    %v219 = vld [vmem:[#allocation2 + $0x190] sm:$0xff]
    %v220 = vld [vmem:[#allocation2 + $0x198] sm:$0xff]
    %v221 = vld [vmem:[#allocation2 + $0x1a0] sm:$0xff]
    %v222 = vld [vmem:[#allocation2 + $0x1a8] sm:$0xff]
    %v223 = vld [vmem:[#allocation2 + $0x1b0] sm:$0xff]
    %v224 = vld [vmem:[#allocation2 + $0x1b8] sm:$0xff]
    %v225 = vld [vmem:[#allocation2 + $0x1c0] sm:$0xff]
    %v226 = vld [vmem:[#allocation2 + $0x1c8] sm:$0xff]
    %v227 = vld [vmem:[#allocation2 + $0x1d0] sm:$0xff]
    %v228 = vld [vmem:[#allocation2 + $0x1d8] sm:$0xff]
    %v229 = vld [vmem:[#allocation2 + $0x1e0] sm:$0xff]
    %v230 = vld [vmem:[#allocation2 + $0x1e8] sm:$0xff]
    %v231 = vld [vmem:[#allocation2 + $0x1f0] sm:$0xff]
    %v232 = vld [vmem:[#allocation2 + $0x1f8] sm:$0xff]
    %v233 = vld [vmem:[#allocation3] sm:$0xff]
    %v234 = vld [vmem:[#allocation3 + $0x8] sm:$0xff]
    %v235 = vld [vmem:[#allocation3 + $0x10] sm:$0xff]
    %v236 = vld [vmem:[#allocation3 + $0x18] sm:$0xff]
    %v237 = vld [vmem:[#allocation3 + $0x20] sm:$0xff]
    %v238 = vld [vmem:[#allocation3 + $0x28] sm:$0xff]
    %v239 = vld [vmem:[#allocation3 + $0x30] sm:$0xff]
    %v240 = vld [vmem:[#allocation3 + $0x38] sm:$0xff]
    %v241 = vld [vmem:[#allocation3 + $0x40] sm:$0xff]
    %v242 = vld [vmem:[#allocation3 + $0x48] sm:$0xff]
    %v243 = vld [vmem:[#allocation3 + $0x50] sm:$0xff]
    %v244 = vld [vmem:[#allocation3 + $0x58] sm:$0xff]
    %v245 = vld [vmem:[#allocation3 + $0x60] sm:$0xff]
    %v246 = vld [vmem:[#allocation3 + $0x68] sm:$0xff]
    %v247 = vld [vmem:[#allocation3 + $0x70] sm:$0xff]
    %v248 = vld [vmem:[#allocation3 + $0x78] sm:$0xff]
    %v249 = vld [vmem:[#allocation3 + $0x80] sm:$0xff]
    %v250 = vld [vmem:[#allocation3 + $0x88] sm:$0xff]
    %v251 = vld [vmem:[#allocation3 + $0x90] sm:$0xff]
    %v252 = vld [vmem:[#allocation3 + $0x98] sm:$0xff]
    %v253 = vld [vmem:[#allocation3 + $0xa0] sm:$0xff]
    %v254 = vld [vmem:[#allocation3 + $0xa8] sm:$0xff]
    %v255 = vld [vmem:[#allocation3 + $0xb0] sm:$0xff]
    %v256 = vld [vmem:[#allocation3 + $0xb8] sm:$0xff]
    %v257 = vld [vmem:[#allocation3 + $0xc0] sm:$0xff]
    %v258 = vld [vmem:[#allocation3 + $0xc8] sm:$0xff]
    %v259 = vld [vmem:[#allocation3 + $0xd0] sm:$0xff]
    %v260 = vld [vmem:[#allocation3 + $0xd8] sm:$0xff]
    %v261 = vld [vmem:[#allocation3 + $0xe0] sm:$0xff]
    %v262 = vld [vmem:[#allocation3 + $0xe8] sm:$0xff]
    %v263 = vld [vmem:[#allocation3 + $0xf0] sm:$0xff]
    %v264 = vld [vmem:[#allocation3 + $0xf8] sm:$0xff]
    %v265 = vld [vmem:[#allocation3 + $0x100] sm:$0xff]
    %v266 = vld [vmem:[#allocation3 + $0x108] sm:$0xff]
    %v267 = vld [vmem:[#allocation3 + $0x110] sm:$0xff]
    %v268 = vld [vmem:[#allocation3 + $0x118] sm:$0xff]
    %v269 = vld [vmem:[#allocation3 + $0x120] sm:$0xff]
    %v270 = vld [vmem:[#allocation3 + $0x128] sm:$0xff]
    %v271 = vld [vmem:[#allocation3 + $0x130] sm:$0xff]
    %v272 = vld [vmem:[#allocation3 + $0x138] sm:$0xff]
    %v273 = vld [vmem:[#allocation3 + $0x140] sm:$0xff]
    %v274 = vld [vmem:[#allocation3 + $0x148] sm:$0xff]
    %v275 = vld [vmem:[#allocation3 + $0x150] sm:$0xff]
    %v276 = vld [vmem:[#allocation3 + $0x158] sm:$0xff]
    %v277 = vld [vmem:[#allocation3 + $0x160] sm:$0xff]
    %v278 = vld [vmem:[#allocation3 + $0x168] sm:$0xff]
    %v279 = vld [vmem:[#allocation3 + $0x170] sm:$0xff]
    %v280 = vld [vmem:[#allocation3 + $0x178] sm:$0xff]
    %v281 = vld [vmem:[#allocation3 + $0x180] sm:$0xff]
    %v282 = vld [vmem:[#allocation3 + $0x188] sm:$0xff]
    %v283 = vld [vmem:[#allocation3 + $0x190] sm:$0xff]
    %v284 = vld [vmem:[#allocation3 + $0x198] sm:$0xff]
    %v285 = vld [vmem:[#allocation3 + $0x1a0] sm:$0xff]
    %v286 = vld [vmem:[#allocation3 + $0x1a8] sm:$0xff]
    %v287 = vld [vmem:[#allocation3 + $0x1b0] sm:$0xff]
    %v288 = vld [vmem:[#allocation3 + $0x1b8] sm:$0xff]
    %v289 = vld [vmem:[#allocation3 + $0x1c0] sm:$0xff]
    %v290 = vld [vmem:[#allocation3 + $0x1c8] sm:$0xff]
    %v291 = vld [vmem:[#allocation3 + $0x1d0] sm:$0xff]
    %v292 = vld [vmem:[#allocation3 + $0x1d8] sm:$0xff]
    %v293 = vld [vmem:[#allocation3 + $0x1e0] sm:$0xff]
    %v294 = vld [vmem:[#allocation3 + $0x1e8] sm:$0xff]
    %v295 = vld [vmem:[#allocation3 + $0x1f0] sm:$0xff]
    %v296 = vld [vmem:[#allocation3 + $0x1f8] sm:$0xff]
    %v297 = vld [vmem:[#allocation3 + $0x200] sm:$0xff]
    %v298 = vld [vmem:[#allocation3 + $0x208] sm:$0xff]
    %v299 = vld [vmem:[#allocation3 + $0x210] sm:$0xff]
    %v300 = vld [vmem:[#allocation3 + $0x218] sm:$0xff]
    %v301 = vld [vmem:[#allocation3 + $0x220] sm:$0xff]
    %v302 = vld [vmem:[#allocation3 + $0x228] sm:$0xff]
    %v303 = vld [vmem:[#allocation3 + $0x230] sm:$0xff]
    %v304 = vld [vmem:[#allocation3 + $0x238] sm:$0xff]
    %v305 = vld [vmem:[#allocation3 + $0x240] sm:$0xff]
    %v306 = vld [vmem:[#allocation3 + $0x248] sm:$0xff]
    %v307 = vld [vmem:[#allocation3 + $0x250] sm:$0xff]
    %v308 = vld [vmem:[#allocation3 + $0x258] sm:$0xff]
    %v309 = vld [vmem:[#allocation3 + $0x260] sm:$0xff]
    %v310 = vld [vmem:[#allocation3 + $0x268] sm:$0xff]
    %v311 = vld [vmem:[#allocation3 + $0x270] sm:$0xff]
    %v312 = vld [vmem:[#allocation3 + $0x278] sm:$0xff]
    %v313 = vld [vmem:[#allocation3 + $0x280] sm:$0xff]
    %v314 = vld [vmem:[#allocation3 + $0x288] sm:$0xff]
    %v315 = vld [vmem:[#allocation3 + $0x290] sm:$0xff]
    %v316 = vld [vmem:[#allocation3 + $0x298] sm:$0xff]
    %v317 = vld [vmem:[#allocation3 + $0x2a0] sm:$0xff]
    %v318 = vld [vmem:[#allocation3 + $0x2a8] sm:$0xff]
    %v319 = vld [vmem:[#allocation3 + $0x2b0] sm:$0xff]
    %v320 = vld [vmem:[#allocation3 + $0x2b8] sm:$0xff]
    %v321 = vld [vmem:[#allocation3 + $0x2c0] sm:$0xff]
    %v322 = vld [vmem:[#allocation3 + $0x2c8] sm:$0xff]
    %v323 = vld [vmem:[#allocation3 + $0x2d0] sm:$0xff]
    %v324 = vld [vmem:[#allocation3 + $0x2d8] sm:$0xff]
    %v325 = vld [vmem:[#allocation3 + $0x2e0] sm:$0xff]
    %v326 = vld [vmem:[#allocation3 + $0x2e8] sm:$0xff]
    %v327 = vld [vmem:[#allocation3 + $0x2f0] sm:$0xff]
    %v328 = vld [vmem:[#allocation3 + $0x2f8] sm:$0xff]
    %v329 = vld [vmem:[#allocation3 + $0x300] sm:$0xff]
    %v330 = vld [vmem:[#allocation3 + $0x308] sm:$0xff]
    %v331 = vld [vmem:[#allocation3 + $0x310] sm:$0xff]
    %v332 = vld [vmem:[#allocation3 + $0x318] sm:$0xff]
    %v333 = vld [vmem:[#allocation3 + $0x320] sm:$0xff]
    %v334 = vld [vmem:[#allocation3 + $0x328] sm:$0xff]
    %v335 = vld [vmem:[#allocation3 + $0x330] sm:$0xff]
    %v336 = vld [vmem:[#allocation3 + $0x338] sm:$0xff]
    %v337 = vld [vmem:[#allocation3 + $0x340] sm:$0xff]
    %v338 = vld [vmem:[#allocation3 + $0x348] sm:$0xff]
    %v339 = vld [vmem:[#allocation3 + $0x350] sm:$0xff]
    %v340 = vld [vmem:[#allocation3 + $0x358] sm:$0xff]
    %v341 = vld [vmem:[#allocation3 + $0x360] sm:$0xff]
    %v342 = vld [vmem:[#allocation3 + $0x368] sm:$0xff]
    %v343 = vld [vmem:[#allocation3 + $0x370] sm:$0xff]
    %v344 = vld [vmem:[#allocation3 + $0x378] sm:$0xff]
    %v345 = vld [vmem:[#allocation3 + $0x380] sm:$0xff]
    %v346 = vld [vmem:[#allocation3 + $0x388] sm:$0xff]
    %v347 = vld [vmem:[#allocation3 + $0x390] sm:$0xff]
    %v348 = vld [vmem:[#allocation3 + $0x398] sm:$0xff]
    %v349 = vld [vmem:[#allocation3 + $0x3a0] sm:$0xff]
    %v350 = vld [vmem:[#allocation3 + $0x3a8] sm:$0xff]
    %v351 = vld [vmem:[#allocation3 + $0x3b0] sm:$0xff]
    %v352 = vld [vmem:[#allocation3 + $0x3b8] sm:$0xff]
    %v353 = vld [vmem:[#allocation3 + $0x3c0] sm:$0xff]
    %v354 = vld [vmem:[#allocation3 + $0x3c8] sm:$0xff]
    %v355 = vld [vmem:[#allocation3 + $0x3d0] sm:$0xff]
    %v356 = vld [vmem:[#allocation3 + $0x3d8] sm:$0xff]
    %v357 = vld [vmem:[#allocation3 + $0x3e0] sm:$0xff]
    %v358 = vld [vmem:[#allocation3 + $0x3e8] sm:$0xff]
    %v359 = vld [vmem:[#allocation3 + $0x3f0] sm:$0xff]
    %v360 = vld [vmem:[#allocation3 + $0x3f8] sm:$0xff]
    %v489 = vunpack.c.l.b16 %v233
    %v490 = vunpack.c.h.b16 %v233
    %v491 = vunpack.c.l.b16 %v234
    %v492 = vunpack.c.h.b16 %v234
    %v493 = vunpack.c.l.b16 %v235
    %v494 = vunpack.c.h.b16 %v235
    %v495 = vunpack.c.l.b16 %v236
    %v496 = vunpack.c.h.b16 %v236
    %v497 = vunpack.c.l.b16 %v237
    %v498 = vunpack.c.h.b16 %v237
    %v499 = vunpack.c.l.b16 %v238
    %v500 = vunpack.c.h.b16 %v238
    %v501 = vunpack.c.l.b16 %v239
    %v502 = vunpack.c.h.b16 %v239
    %v503 = vunpack.c.l.b16 %v240
    %v504 = vunpack.c.h.b16 %v240
    %v505 = vunpack.c.l.b16 %v241
    %v506 = vunpack.c.h.b16 %v241
    %v507 = vunpack.c.l.b16 %v242
    %v508 = vunpack.c.h.b16 %v242
    %v509 = vunpack.c.l.b16 %v243
    %v510 = vunpack.c.h.b16 %v243
    %v511 = vunpack.c.l.b16 %v244
    %v512 = vunpack.c.h.b16 %v244
    %v513 = vunpack.c.l.b16 %v245
    %v514 = vunpack.c.h.b16 %v245
    %v515 = vunpack.c.l.b16 %v246
    %v516 = vunpack.c.h.b16 %v246
    %v517 = vunpack.c.l.b16 %v247
    %v518 = vunpack.c.h.b16 %v247
    %v519 = vunpack.c.l.b16 %v248
    %v520 = vunpack.c.h.b16 %v248
    %v521 = vunpack.c.l.b16 %v249
    %v522 = vunpack.c.h.b16 %v249
    %v523 = vunpack.c.l.b16 %v250
    %v524 = vunpack.c.h.b16 %v250
    %v525 = vunpack.c.l.b16 %v251
    %v526 = vunpack.c.h.b16 %v251
    %v527 = vunpack.c.l.b16 %v252
    %v528 = vunpack.c.h.b16 %v252
    %v529 = vunpack.c.l.b16 %v253
    %v530 = vunpack.c.h.b16 %v253
    %v531 = vunpack.c.l.b16 %v254
    %v532 = vunpack.c.h.b16 %v254
    %v533 = vunpack.c.l.b16 %v255
    %v534 = vunpack.c.h.b16 %v255
    %v535 = vunpack.c.l.b16 %v256
    %v536 = vunpack.c.h.b16 %v256
    %v537 = vunpack.c.l.b16 %v257
    %v538 = vunpack.c.h.b16 %v257
    %v539 = vunpack.c.l.b16 %v258
    %v540 = vunpack.c.h.b16 %v258
    %v541 = vunpack.c.l.b16 %v259
    %v542 = vunpack.c.h.b16 %v259
    %v543 = vunpack.c.l.b16 %v260
    %v544 = vunpack.c.h.b16 %v260
    %v545 = vunpack.c.l.b16 %v261
    %v546 = vunpack.c.h.b16 %v261
    %v547 = vunpack.c.l.b16 %v262
    %v548 = vunpack.c.h.b16 %v262
    %v549 = vunpack.c.l.b16 %v263
    %v550 = vunpack.c.h.b16 %v263
    %v551 = vunpack.c.l.b16 %v264
    %v552 = vunpack.c.h.b16 %v264
    %v553 = vunpack.c.l.b16 %v265
    %v554 = vunpack.c.h.b16 %v265
    %v555 = vunpack.c.l.b16 %v266
    %v556 = vunpack.c.h.b16 %v266
    %v557 = vunpack.c.l.b16 %v267
    %v558 = vunpack.c.h.b16 %v267
    %v559 = vunpack.c.l.b16 %v268
    %v560 = vunpack.c.h.b16 %v268
    %v561 = vunpack.c.l.b16 %v269
    %v562 = vunpack.c.h.b16 %v269
    %v563 = vunpack.c.l.b16 %v270
    %v564 = vunpack.c.h.b16 %v270
    %v565 = vunpack.c.l.b16 %v271
    %v566 = vunpack.c.h.b16 %v271
    %v567 = vunpack.c.l.b16 %v272
    %v568 = vunpack.c.h.b16 %v272
    %v569 = vunpack.c.l.b16 %v273
    %v570 = vunpack.c.h.b16 %v273
    %v571 = vunpack.c.l.b16 %v274
    %v572 = vunpack.c.h.b16 %v274
    %v573 = vunpack.c.l.b16 %v275
    %v574 = vunpack.c.h.b16 %v275
    %v575 = vunpack.c.l.b16 %v276
    %v576 = vunpack.c.h.b16 %v276
    %v577 = vunpack.c.l.b16 %v277
    %v578 = vunpack.c.h.b16 %v277
    %v579 = vunpack.c.l.b16 %v278
    %v580 = vunpack.c.h.b16 %v278
    %v581 = vunpack.c.l.b16 %v279
    %v582 = vunpack.c.h.b16 %v279
    %v583 = vunpack.c.l.b16 %v280
    %v584 = vunpack.c.h.b16 %v280
    %v585 = vunpack.c.l.b16 %v281
    %v586 = vunpack.c.h.b16 %v281
    %v587 = vunpack.c.l.b16 %v282
    %v588 = vunpack.c.h.b16 %v282
    %v589 = vunpack.c.l.b16 %v283
    %v590 = vunpack.c.h.b16 %v283
    %v591 = vunpack.c.l.b16 %v284
    %v592 = vunpack.c.h.b16 %v284
    %v593 = vunpack.c.l.b16 %v285
    %v594 = vunpack.c.h.b16 %v285
    %v595 = vunpack.c.l.b16 %v286
    %v596 = vunpack.c.h.b16 %v286
    %v597 = vunpack.c.l.b16 %v287
    %v598 = vunpack.c.h.b16 %v287
    %v599 = vunpack.c.l.b16 %v288
    %v600 = vunpack.c.h.b16 %v288
    %v601 = vunpack.c.l.b16 %v289
    %v602 = vunpack.c.h.b16 %v289
    %v603 = vunpack.c.l.b16 %v290
    %v604 = vunpack.c.h.b16 %v290
    %v605 = vunpack.c.l.b16 %v291
    %v606 = vunpack.c.h.b16 %v291
    %v607 = vunpack.c.l.b16 %v292
    %v608 = vunpack.c.h.b16 %v292
    %v609 = vunpack.c.l.b16 %v293
    %v610 = vunpack.c.h.b16 %v293
    %v611 = vunpack.c.l.b16 %v294
    %v612 = vunpack.c.h.b16 %v294
    %v613 = vunpack.c.l.b16 %v295
    %v614 = vunpack.c.h.b16 %v295
    %v615 = vunpack.c.l.b16 %v296
    %v616 = vunpack.c.h.b16 %v296
    %v617 = vunpack.c.l.b16 %v297
    %v618 = vunpack.c.h.b16 %v297
    %v619 = vunpack.c.l.b16 %v298
    %v620 = vunpack.c.h.b16 %v298
    %v621 = vunpack.c.l.b16 %v299
    %v622 = vunpack.c.h.b16 %v299
    %v623 = vunpack.c.l.b16 %v300
    %v624 = vunpack.c.h.b16 %v300
    %v625 = vunpack.c.l.b16 %v301
    %v626 = vunpack.c.h.b16 %v301
    %v627 = vunpack.c.l.b16 %v302
    %v628 = vunpack.c.h.b16 %v302
    %v629 = vunpack.c.l.b16 %v303
    %v630 = vunpack.c.h.b16 %v303
    %v631 = vunpack.c.l.b16 %v304
    %v632 = vunpack.c.h.b16 %v304
    %v633 = vunpack.c.l.b16 %v305
    %v634 = vunpack.c.h.b16 %v305
    %v635 = vunpack.c.l.b16 %v306
    %v636 = vunpack.c.h.b16 %v306
    %v637 = vunpack.c.l.b16 %v307
    %v638 = vunpack.c.h.b16 %v307
    %v639 = vunpack.c.l.b16 %v308
    %v640 = vunpack.c.h.b16 %v308
    %v641 = vunpack.c.l.b16 %v309
    %v642 = vunpack.c.h.b16 %v309
    %v643 = vunpack.c.l.b16 %v310
    %v644 = vunpack.c.h.b16 %v310
    %v645 = vunpack.c.l.b16 %v311
    %v646 = vunpack.c.h.b16 %v311
    %v647 = vunpack.c.l.b16 %v312
    %v648 = vunpack.c.h.b16 %v312
    %v649 = vunpack.c.l.b16 %v313
    %v650 = vunpack.c.h.b16 %v313
    %v651 = vunpack.c.l.b16 %v314
    %v652 = vunpack.c.h.b16 %v314
    %v653 = vunpack.c.l.b16 %v315
    %v654 = vunpack.c.h.b16 %v315
    %v655 = vunpack.c.l.b16 %v316
    %v656 = vunpack.c.h.b16 %v316
    %v657 = vunpack.c.l.b16 %v317
    %v658 = vunpack.c.h.b16 %v317
    %v659 = vunpack.c.l.b16 %v318
    %v660 = vunpack.c.h.b16 %v318
    %v661 = vunpack.c.l.b16 %v319
    %v662 = vunpack.c.h.b16 %v319
    %v663 = vunpack.c.l.b16 %v320
    %v664 = vunpack.c.h.b16 %v320
    %v665 = vunpack.c.l.b16 %v321
    %v666 = vunpack.c.h.b16 %v321
    %v667 = vunpack.c.l.b16 %v322
    %v668 = vunpack.c.h.b16 %v322
    %v669 = vunpack.c.l.b16 %v323
    %v670 = vunpack.c.h.b16 %v323
    %v671 = vunpack.c.l.b16 %v324
    %v672 = vunpack.c.h.b16 %v324
    %v673 = vunpack.c.l.b16 %v325
    %v674 = vunpack.c.h.b16 %v325
    %v675 = vunpack.c.l.b16 %v326
    %v676 = vunpack.c.h.b16 %v326
    %v677 = vunpack.c.l.b16 %v327
    %v678 = vunpack.c.h.b16 %v327
    %v679 = vunpack.c.l.b16 %v328
    %v680 = vunpack.c.h.b16 %v328
    %v681 = vunpack.c.l.b16 %v329
    %v682 = vunpack.c.h.b16 %v329
    %v683 = vunpack.c.l.b16 %v330
    %v684 = vunpack.c.h.b16 %v330
    %v685 = vunpack.c.l.b16 %v331
    %v686 = vunpack.c.h.b16 %v331
    %v687 = vunpack.c.l.b16 %v332
    %v688 = vunpack.c.h.b16 %v332
    %v689 = vunpack.c.l.b16 %v333
    %v690 = vunpack.c.h.b16 %v333
    %v691 = vunpack.c.l.b16 %v334
    %v692 = vunpack.c.h.b16 %v334
    %v693 = vunpack.c.l.b16 %v335
    %v694 = vunpack.c.h.b16 %v335
    %v695 = vunpack.c.l.b16 %v336
    %v696 = vunpack.c.h.b16 %v336
    %v697 = vunpack.c.l.b16 %v337
    %v698 = vunpack.c.h.b16 %v337
    %v699 = vunpack.c.l.b16 %v338
    %v700 = vunpack.c.h.b16 %v338
    %v701 = vunpack.c.l.b16 %v339
    %v702 = vunpack.c.h.b16 %v339
    %v703 = vunpack.c.l.b16 %v340
    %v704 = vunpack.c.h.b16 %v340
    %v705 = vunpack.c.l.b16 %v341
    %v706 = vunpack.c.h.b16 %v341
    %v707 = vunpack.c.l.b16 %v342
    %v708 = vunpack.c.h.b16 %v342
    %v709 = vunpack.c.l.b16 %v343
    %v710 = vunpack.c.h.b16 %v343
    %v711 = vunpack.c.l.b16 %v344
    %v712 = vunpack.c.h.b16 %v344
    %v713 = vunpack.c.l.b16 %v345
    %v714 = vunpack.c.h.b16 %v345
    %v715 = vunpack.c.l.b16 %v346
    %v716 = vunpack.c.h.b16 %v346
    %v717 = vunpack.c.l.b16 %v347
    %v718 = vunpack.c.h.b16 %v347
    %v719 = vunpack.c.l.b16 %v348
    %v720 = vunpack.c.h.b16 %v348
    %v721 = vunpack.c.l.b16 %v349
    %v722 = vunpack.c.h.b16 %v349
    %v723 = vunpack.c.l.b16 %v350
    %v724 = vunpack.c.h.b16 %v350
    %v725 = vunpack.c.l.b16 %v351
    %v726 = vunpack.c.h.b16 %v351
    %v727 = vunpack.c.l.b16 %v352
    %v728 = vunpack.c.h.b16 %v352
    %v729 = vunpack.c.l.b16 %v353
    %v730 = vunpack.c.h.b16 %v353
    %v731 = vunpack.c.l.b16 %v354
    %v732 = vunpack.c.h.b16 %v354
    %v733 = vunpack.c.l.b16 %v355
    %v734 = vunpack.c.h.b16 %v355
    %v735 = vunpack.c.l.b16 %v356
    %v736 = vunpack.c.h.b16 %v356
    %v737 = vunpack.c.l.b16 %v357
    %v738 = vunpack.c.h.b16 %v357
    %v739 = vunpack.c.l.b16 %v358
    %v740 = vunpack.c.h.b16 %v358
    %v741 = vunpack.c.l.b16 %v359
    %v742 = vunpack.c.h.b16 %v359
    %v743 = vunpack.c.l.b16 %v360
    %v744 = vunpack.c.h.b16 %v360
    %v745 = vpack.c.b16 %v493, %v489
    %v746 = vpack.c.b16 %v494, %v490
    %v747 = vpack.c.b16 %v495, %v491
    %v748 = vpack.c.b16 %v496, %v492
    %v749 = vpack.c.b16 %v501, %v497
    %v750 = vpack.c.b16 %v502, %v498
    %v751 = vpack.c.b16 %v503, %v499
    %v752 = vpack.c.b16 %v504, %v500
    %v753 = vpack.c.b16 %v509, %v505
    %v754 = vpack.c.b16 %v510, %v506
    %v755 = vpack.c.b16 %v511, %v507
    %v756 = vpack.c.b16 %v512, %v508
    %v757 = vpack.c.b16 %v517, %v513
    %v758 = vpack.c.b16 %v518, %v514
    %v759 = vpack.c.b16 %v519, %v515
    %v760 = vpack.c.b16 %v520, %v516
    %v761 = vpack.c.b16 %v525, %v521
    %v762 = vpack.c.b16 %v526, %v522
    %v763 = vpack.c.b16 %v527, %v523
    %v764 = vpack.c.b16 %v528, %v524
    %v765 = vpack.c.b16 %v533, %v529
    %v766 = vpack.c.b16 %v534, %v530
    %v767 = vpack.c.b16 %v535, %v531
    %v768 = vpack.c.b16 %v536, %v532
    %v769 = vpack.c.b16 %v541, %v537
    %v770 = vpack.c.b16 %v542, %v538
    %v771 = vpack.c.b16 %v543, %v539
    %v772 = vpack.c.b16 %v544, %v540
    %v773 = vpack.c.b16 %v549, %v545
    %v774 = vpack.c.b16 %v550, %v546
    %v775 = vpack.c.b16 %v551, %v547
    %v776 = vpack.c.b16 %v552, %v548
    %v777 = vpack.c.b16 %v557, %v553
    %v778 = vpack.c.b16 %v558, %v554
    %v779 = vpack.c.b16 %v559, %v555
    %v780 = vpack.c.b16 %v560, %v556
    %v781 = vpack.c.b16 %v565, %v561
    %v782 = vpack.c.b16 %v566, %v562
    %v783 = vpack.c.b16 %v567, %v563
    %v784 = vpack.c.b16 %v568, %v564
    %v785 = vpack.c.b16 %v573, %v569
    %v786 = vpack.c.b16 %v574, %v570
    %v787 = vpack.c.b16 %v575, %v571
    %v788 = vpack.c.b16 %v576, %v572
    %v789 = vpack.c.b16 %v581, %v577
    %v790 = vpack.c.b16 %v582, %v578
    %v791 = vpack.c.b16 %v583, %v579
    %v792 = vpack.c.b16 %v584, %v580
    %v793 = vpack.c.b16 %v589, %v585
    %v794 = vpack.c.b16 %v590, %v586
    %v795 = vpack.c.b16 %v591, %v587
    %v796 = vpack.c.b16 %v592, %v588
    %v797 = vpack.c.b16 %v597, %v593
    %v798 = vpack.c.b16 %v598, %v594
    %v799 = vpack.c.b16 %v599, %v595
    %v800 = vpack.c.b16 %v600, %v596
    %v801 = vpack.c.b16 %v605, %v601
    %v802 = vpack.c.b16 %v606, %v602
    %v803 = vpack.c.b16 %v607, %v603
    %v804 = vpack.c.b16 %v608, %v604
    %v805 = vpack.c.b16 %v613, %v609
    %v806 = vpack.c.b16 %v614, %v610
    %v807 = vpack.c.b16 %v615, %v611
    %v808 = vpack.c.b16 %v616, %v612
    %v809 = vpack.c.b16 %v621, %v617
    %v810 = vpack.c.b16 %v622, %v618
    %v811 = vpack.c.b16 %v623, %v619
    %v812 = vpack.c.b16 %v624, %v620
    %v813 = vpack.c.b16 %v629, %v625
    %v814 = vpack.c.b16 %v630, %v626
    %v815 = vpack.c.b16 %v631, %v627
    %v816 = vpack.c.b16 %v632, %v628
    %v817 = vpack.c.b16 %v637, %v633
    %v818 = vpack.c.b16 %v638, %v634
    %v819 = vpack.c.b16 %v639, %v635
    %v820 = vpack.c.b16 %v640, %v636
    %v821 = vpack.c.b16 %v645, %v641
    %v822 = vpack.c.b16 %v646, %v642
    %v823 = vpack.c.b16 %v647, %v643
    %v824 = vpack.c.b16 %v648, %v644
    %v825 = vpack.c.b16 %v653, %v649
    %v826 = vpack.c.b16 %v654, %v650
    %v827 = vpack.c.b16 %v655, %v651
    %v828 = vpack.c.b16 %v656, %v652
    %v829 = vpack.c.b16 %v661, %v657
    %v830 = vpack.c.b16 %v662, %v658
    %v831 = vpack.c.b16 %v663, %v659
    %v832 = vpack.c.b16 %v664, %v660
    %v833 = vpack.c.b16 %v669, %v665
    %v834 = vpack.c.b16 %v670, %v666
    %v835 = vpack.c.b16 %v671, %v667
    %v836 = vpack.c.b16 %v672, %v668
    %v837 = vpack.c.b16 %v677, %v673
    %v838 = vpack.c.b16 %v678, %v674
    %v839 = vpack.c.b16 %v679, %v675
    %v840 = vpack.c.b16 %v680, %v676
    %v841 = vpack.c.b16 %v685, %v681
    %v842 = vpack.c.b16 %v686, %v682
    %v843 = vpack.c.b16 %v687, %v683
    %v844 = vpack.c.b16 %v688, %v684
    %v845 = vpack.c.b16 %v693, %v689
    %v846 = vpack.c.b16 %v694, %v690
    %v847 = vpack.c.b16 %v695, %v691
    %v848 = vpack.c.b16 %v696, %v692
    %v849 = vpack.c.b16 %v701, %v697
    %v850 = vpack.c.b16 %v702, %v698
    %v851 = vpack.c.b16 %v703, %v699
    %v852 = vpack.c.b16 %v704, %v700
    %v853 = vpack.c.b16 %v709, %v705
    %v854 = vpack.c.b16 %v710, %v706
    %v855 = vpack.c.b16 %v711, %v707
    %v856 = vpack.c.b16 %v712, %v708
    %v857 = vpack.c.b16 %v717, %v713
    %v858 = vpack.c.b16 %v718, %v714
    %v859 = vpack.c.b16 %v719, %v715
    %v860 = vpack.c.b16 %v720, %v716
    %v861 = vpack.c.b16 %v725, %v721
    %v862 = vpack.c.b16 %v726, %v722
    %v863 = vpack.c.b16 %v727, %v723
    %v864 = vpack.c.b16 %v728, %v724
    %v865 = vpack.c.b16 %v733, %v729
    %v866 = vpack.c.b16 %v734, %v730
    %v867 = vpack.c.b16 %v735, %v731
    %v868 = vpack.c.b16 %v736, %v732
    %v869 = vpack.c.b16 %v741, %v737
    %v870 = vpack.c.b16 %v742, %v738
    %v871 = vpack.c.b16 %v743, %v739
    %v872 = vpack.c.b16 %v744, %v740
    %v1065 = vunpack.c.l.b16 %v105
    %v1066 = vunpack.c.l.b16 %v106
    %v1067 = vunpack.c.l.b16 %v107
    %v1068 = vunpack.c.l.b16 %v108
    %v1069 = vunpack.c.l.b16 %v109
    %v1070 = vunpack.c.l.b16 %v110
    %v1071 = vunpack.c.l.b16 %v111
    %v1072 = vunpack.c.l.b16 %v112
    %v1073 = vunpack.c.l.b16 %v113
    %v1074 = vunpack.c.l.b16 %v114
    %v1075 = vunpack.c.l.b16 %v115
    %v1076 = vunpack.c.l.b16 %v116
    %v1077 = vunpack.c.l.b16 %v117
    %v1078 = vunpack.c.l.b16 %v118
    %v1079 = vunpack.c.l.b16 %v119
    %v1080 = vunpack.c.l.b16 %v120
    %v1081 = vunpack.c.l.b16 %v121
    %v1082 = vunpack.c.l.b16 %v122
    %v1083 = vunpack.c.l.b16 %v123
    %v1084 = vunpack.c.l.b16 %v124
    %v1085 = vunpack.c.l.b16 %v125
    %v1086 = vunpack.c.l.b16 %v126
    %v1087 = vunpack.c.l.b16 %v127
    %v1088 = vunpack.c.l.b16 %v128
    %v1089 = vunpack.c.l.b16 %v129
    %v1090 = vunpack.c.l.b16 %v130
    %v1091 = vunpack.c.l.b16 %v131
    %v1092 = vunpack.c.l.b16 %v132
    %v1093 = vunpack.c.l.b16 %v133
    %v1094 = vunpack.c.l.b16 %v134
    %v1095 = vunpack.c.l.b16 %v135
    %v1096 = vunpack.c.l.b16 %v136
    %v1097 = vunpack.c.l.b16 %v137
    %v1098 = vunpack.c.l.b16 %v138
    %v1099 = vunpack.c.l.b16 %v139
    %v1100 = vunpack.c.l.b16 %v140
    %v1101 = vunpack.c.l.b16 %v141
    %v1102 = vunpack.c.l.b16 %v142
    %v1103 = vunpack.c.l.b16 %v143
    %v1104 = vunpack.c.l.b16 %v144
    %v1105 = vunpack.c.l.b16 %v145
    %v1106 = vunpack.c.l.b16 %v146
    %v1107 = vunpack.c.l.b16 %v147
    %v1108 = vunpack.c.l.b16 %v148
    %v1109 = vunpack.c.l.b16 %v149
    %v1110 = vunpack.c.l.b16 %v150
    %v1111 = vunpack.c.l.b16 %v151
    %v1112 = vunpack.c.l.b16 %v152
    %v1113 = vunpack.c.l.b16 %v153
    %v1114 = vunpack.c.l.b16 %v154
    %v1115 = vunpack.c.l.b16 %v155
    %v1116 = vunpack.c.l.b16 %v156
    %v1117 = vunpack.c.l.b16 %v157
    %v1118 = vunpack.c.l.b16 %v158
    %v1119 = vunpack.c.l.b16 %v159
    %v1120 = vunpack.c.l.b16 %v160
    %v1121 = vunpack.c.l.b16 %v161
    %v1122 = vunpack.c.l.b16 %v162
    %v1123 = vunpack.c.l.b16 %v163
    %v1124 = vunpack.c.l.b16 %v164
    %v1125 = vunpack.c.l.b16 %v165
    %v1126 = vunpack.c.l.b16 %v166
    %v1127 = vunpack.c.l.b16 %v167
    %v1128 = vunpack.c.l.b16 %v168
    %v1129 = vpack.c.b16 %v1066, %v1065
    %v1130 = vpack.c.b16 %v1068, %v1067
    %v1131 = vpack.c.b16 %v1070, %v1069
    %v1132 = vpack.c.b16 %v1072, %v1071
    %v1133 = vpack.c.b16 %v1074, %v1073
    %v1134 = vpack.c.b16 %v1076, %v1075
    %v1135 = vpack.c.b16 %v1078, %v1077
    %v1136 = vpack.c.b16 %v1080, %v1079
    %v1137 = vpack.c.b16 %v1082, %v1081
    %v1138 = vpack.c.b16 %v1084, %v1083
    %v1139 = vpack.c.b16 %v1086, %v1085
    %v1140 = vpack.c.b16 %v1088, %v1087
    %v1141 = vpack.c.b16 %v1090, %v1089
    %v1142 = vpack.c.b16 %v1092, %v1091
    %v1143 = vpack.c.b16 %v1094, %v1093
    %v1144 = vpack.c.b16 %v1096, %v1095
    %v1145 = vpack.c.b16 %v1098, %v1097
    %v1146 = vpack.c.b16 %v1100, %v1099
    %v1147 = vpack.c.b16 %v1102, %v1101
    %v1148 = vpack.c.b16 %v1104, %v1103
    %v1149 = vpack.c.b16 %v1106, %v1105
    %v1150 = vpack.c.b16 %v1108, %v1107
    %v1151 = vpack.c.b16 %v1110, %v1109
    %v1152 = vpack.c.b16 %v1112, %v1111
    %v1153 = vpack.c.b16 %v1114, %v1113
    %v1154 = vpack.c.b16 %v1116, %v1115
    %v1155 = vpack.c.b16 %v1118, %v1117
    %v1156 = vpack.c.b16 %v1120, %v1119
    %v1157 = vpack.c.b16 %v1122, %v1121
    %v1158 = vpack.c.b16 %v1124, %v1123
    %v1159 = vpack.c.b16 %v1126, %v1125
    %v1160 = vpack.c.b16 %v1128, %v1127
    %1193 = vmatprep.subr.bf16.mxu0 0
    %1194 = vmatpush1.bf16.msra.mxu0 %v1136
    %1195 = vmatprep.subr.bf16.mxu0 0
    %1196 = vmatpush1.bf16.msra.mxu0 %v1135
    %1197 = vmatprep.subr.bf16.mxu0 0
    %1198 = vmatpush1.bf16.msra.mxu0 %v1134
    %1199 = vmatprep.subr.bf16.mxu0 0
    %1200 = vmatpush1.bf16.msra.mxu0 %v1133
    %1201 = vmatprep.subr.bf16.mxu0 0
    %1202 = vmatpush1.bf16.msra.mxu0 %v1132
    %1203 = vmatprep.subr.bf16.mxu0 0
    %1204 = vmatpush1.bf16.msra.mxu0 %v1131
    %1205 = vmatprep.subr.bf16.mxu0 0
    %1206 = vmatpush1.bf16.msra.mxu0 %v1130
    %1207 = vmatprep.subr.bf16.mxu0 0
    %1208 = vmatpush1.bf16.msra.mxu0 %v1129
    %1209 = vmatprep.subr.bf16.mxu0 0
    %1210 = vmatpush2.bf16.msra.mxu0 %v1144
    %1211 = vmatprep.subr.bf16.mxu0 0
    %1212 = vmatpush2.bf16.msra.mxu0 %v1143
    %1213 = vmatprep.subr.bf16.mxu0 0
    %1214 = vmatpush2.bf16.msra.mxu0 %v1142
    %1215 = vmatprep.subr.bf16.mxu0 0
    %1216 = vmatpush2.bf16.msra.mxu0 %v1141
    %1217 = vmatprep.subr.bf16.mxu0 0
    %1218 = vmatpush2.bf16.msra.mxu0 %v1140
    %1219 = vmatprep.subr.bf16.mxu0 0
    %1220 = vmatpush2.bf16.msra.mxu0 %v1139
    %1221 = vmatprep.subr.bf16.mxu0 0
    %1222 = vmatpush2.bf16.msra.mxu0 %v1138
    %1223 = vmatprep.subr.bf16.mxu0 0
    %1224 = vmatpush2.bf16.msra.mxu0 %v1137
    %1225 = vmatprep.mubr.bf16.mxu0 %v746
    %1226 = vmatmul.mubr.bf16.gmra.mxu0 %v745
    %v1227 = vpop.f32.mrf.mxu0
    %v1228 = vadd.f32 0.0, %v1227
    %v1229 = vpop.f32.mrf.mxu0
    %v1230 = vpop.f32.mrf.mxu0
    %v1231 = vadd.f32 0.0, %v1230
    %v1232 = vpop.f32.mrf.mxu0
    %1233 = vmatprep.mubr.bf16.mxu0 %v750
    %1234 = vmatmul.mubr.bf16.gmra.mxu0 %v749
    %v1235 = vpop.f32.mrf.mxu0
    %v1236 = vadd.f32 0.0, %v1235
    %v1237 = vpop.f32.mrf.mxu0
    %v1238 = vpop.f32.mrf.mxu0
    %v1239 = vadd.f32 0.0, %v1238
    %v1240 = vpop.f32.mrf.mxu0
    %1241 = vmatprep.mubr.bf16.mxu0 %v754
    %1242 = vmatmul.mubr.bf16.gmra.mxu0 %v753
    %v1243 = vpop.f32.mrf.mxu0
    %v1244 = vadd.f32 0.0, %v1243
    %v1245 = vpop.f32.mrf.mxu0
    %v1246 = vpop.f32.mrf.mxu0
    %v1247 = vadd.f32 0.0, %v1246
    %v1248 = vpop.f32.mrf.mxu0
    %1249 = vmatprep.mubr.bf16.mxu0 %v758
    %1250 = vmatmul.mubr.bf16.gmra.mxu0 %v757
    %v1251 = vpop.f32.mrf.mxu0
    %v1252 = vadd.f32 0.0, %v1251
    %v1253 = vpop.f32.mrf.mxu0
    %v1254 = vpop.f32.mrf.mxu0
    %v1255 = vadd.f32 0.0, %v1254
    %v1256 = vpop.f32.mrf.mxu0
    %1257 = vmatprep.mubr.bf16.mxu0 %v762
    %1258 = vmatmul.mubr.bf16.gmra.mxu0 %v761
    %v1259 = vpop.f32.mrf.mxu0
    %v1260 = vadd.f32 0.0, %v1259
    %v1261 = vpop.f32.mrf.mxu0
    %v1262 = vpop.f32.mrf.mxu0
    %v1263 = vadd.f32 0.0, %v1262
    %v1264 = vpop.f32.mrf.mxu0
    %1265 = vmatprep.mubr.bf16.mxu0 %v766
    %1266 = vmatmul.mubr.bf16.gmra.mxu0 %v765
    %v1267 = vpop.f32.mrf.mxu0
    %v1268 = vadd.f32 0.0, %v1267
    %v1269 = vpop.f32.mrf.mxu0
    %v1270 = vpop.f32.mrf.mxu0
    %v1271 = vadd.f32 0.0, %v1270
    %v1272 = vpop.f32.mrf.mxu0
    %1273 = vmatprep.mubr.bf16.mxu0 %v770
    %1274 = vmatmul.mubr.bf16.gmra.mxu0 %v769
    %v1275 = vpop.f32.mrf.mxu0
    %v1276 = vadd.f32 0.0, %v1275
    %v1277 = vpop.f32.mrf.mxu0
    %v1278 = vpop.f32.mrf.mxu0
    %v1279 = vadd.f32 0.0, %v1278
    %v1280 = vpop.f32.mrf.mxu0
    %1281 = vmatprep.mubr.bf16.mxu0 %v774
    %1282 = vmatmul.mubr.bf16.gmra.mxu0 %v773
    %v1283 = vpop.f32.mrf.mxu0
    %v1284 = vadd.f32 0.0, %v1283
    %v1285 = vpop.f32.mrf.mxu0
    %v1286 = vpop.f32.mrf.mxu0
    %v1287 = vadd.f32 0.0, %v1286
    %v1288 = vpop.f32.mrf.mxu0
    %1289 = vmatprep.mubr.bf16.mxu0 %v778
    %1290 = vmatmul.mubr.bf16.gmra.mxu0 %v777
    %v1291 = vpop.f32.mrf.mxu0
    %v1292 = vadd.f32 0.0, %v1291
    %v1293 = vpop.f32.mrf.mxu0
    %v1294 = vpop.f32.mrf.mxu0
    %v1295 = vadd.f32 0.0, %v1294
    %v1296 = vpop.f32.mrf.mxu0
    %1297 = vmatprep.mubr.bf16.mxu0 %v782
    %1298 = vmatmul.mubr.bf16.gmra.mxu0 %v781
    %v1299 = vpop.f32.mrf.mxu0
    %v1300 = vadd.f32 0.0, %v1299
    %v1301 = vpop.f32.mrf.mxu0
    %v1302 = vpop.f32.mrf.mxu0
    %v1303 = vadd.f32 0.0, %v1302
    %v1304 = vpop.f32.mrf.mxu0
    %1305 = vmatprep.mubr.bf16.mxu0 %v786
    %1306 = vmatmul.mubr.bf16.gmra.mxu0 %v785
    %v1307 = vpop.f32.mrf.mxu0
    %v1308 = vadd.f32 0.0, %v1307
    %v1309 = vpop.f32.mrf.mxu0
    %v1310 = vpop.f32.mrf.mxu0
    %v1311 = vadd.f32 0.0, %v1310
    %v1312 = vpop.f32.mrf.mxu0
    %1313 = vmatprep.mubr.bf16.mxu0 %v790
    %1314 = vmatmul.mubr.bf16.gmra.mxu0 %v789
    %v1315 = vpop.f32.mrf.mxu0
    %v1316 = vadd.f32 0.0, %v1315
    %v1317 = vpop.f32.mrf.mxu0
    %v1318 = vpop.f32.mrf.mxu0
    %v1319 = vadd.f32 0.0, %v1318
    %v1320 = vpop.f32.mrf.mxu0
    %1321 = vmatprep.mubr.bf16.mxu0 %v794
    %1322 = vmatmul.mubr.bf16.gmra.mxu0 %v793
    %v1323 = vpop.f32.mrf.mxu0
    %v1324 = vadd.f32 0.0, %v1323
    %v1325 = vpop.f32.mrf.mxu0
    %v1326 = vpop.f32.mrf.mxu0
    %v1327 = vadd.f32 0.0, %v1326
    %v1328 = vpop.f32.mrf.mxu0
    %1329 = vmatprep.mubr.bf16.mxu0 %v798
    %1330 = vmatmul.mubr.bf16.gmra.mxu0 %v797
    %v1331 = vpop.f32.mrf.mxu0
    %v1332 = vadd.f32 0.0, %v1331
    %v1333 = vpop.f32.mrf.mxu0
    %v1334 = vpop.f32.mrf.mxu0
    %v1335 = vadd.f32 0.0, %v1334
    %v1336 = vpop.f32.mrf.mxu0
    %1337 = vmatprep.mubr.bf16.mxu0 %v802
    %1338 = vmatmul.mubr.bf16.gmra.mxu0 %v801
    %v1339 = vpop.f32.mrf.mxu0
    %v1340 = vadd.f32 0.0, %v1339
    %v1341 = vpop.f32.mrf.mxu0
    %v1342 = vpop.f32.mrf.mxu0
    %v1343 = vadd.f32 0.0, %v1342
    %v1344 = vpop.f32.mrf.mxu0
    %1345 = vmatprep.mubr.bf16.mxu0 %v806
    %1346 = vmatmul.mubr.bf16.gmra.mxu0 %v805
    %v1347 = vpop.f32.mrf.mxu0
    %v1348 = vadd.f32 0.0, %v1347
    %v1349 = vpop.f32.mrf.mxu0
    %v1350 = vpop.f32.mrf.mxu0
    %v1351 = vadd.f32 0.0, %v1350
    %v1352 = vpop.f32.mrf.mxu0
    %1353 = vmatprep.mubr.bf16.mxu0 %v810
    %1354 = vmatmul.mubr.bf16.gmra.mxu0 %v809
    %v1355 = vpop.f32.mrf.mxu0
    %v1356 = vadd.f32 0.0, %v1355
    %v1357 = vpop.f32.mrf.mxu0
    %v1358 = vpop.f32.mrf.mxu0
    %v1359 = vadd.f32 0.0, %v1358
    %v1360 = vpop.f32.mrf.mxu0
    %1361 = vmatprep.mubr.bf16.mxu0 %v814
    %1362 = vmatmul.mubr.bf16.gmra.mxu0 %v813
    %v1363 = vpop.f32.mrf.mxu0
    %v1364 = vadd.f32 0.0, %v1363
    %v1365 = vpop.f32.mrf.mxu0
    %v1366 = vpop.f32.mrf.mxu0
    %v1367 = vadd.f32 0.0, %v1366
    %v1368 = vpop.f32.mrf.mxu0
    %1369 = vmatprep.mubr.bf16.mxu0 %v818
    %1370 = vmatmul.mubr.bf16.gmra.mxu0 %v817
    %v1371 = vpop.f32.mrf.mxu0
    %v1372 = vadd.f32 0.0, %v1371
    %v1373 = vpop.f32.mrf.mxu0
    %v1374 = vpop.f32.mrf.mxu0
    %v1375 = vadd.f32 0.0, %v1374
    %v1376 = vpop.f32.mrf.mxu0
    %1377 = vmatprep.mubr.bf16.mxu0 %v822
    %1378 = vmatmul.mubr.bf16.gmra.mxu0 %v821
    %v1379 = vpop.f32.mrf.mxu0
    %v1380 = vadd.f32 0.0, %v1379
    %v1381 = vpop.f32.mrf.mxu0
    %v1382 = vpop.f32.mrf.mxu0
    %v1383 = vadd.f32 0.0, %v1382
    %v1384 = vpop.f32.mrf.mxu0
    %1385 = vmatprep.mubr.bf16.mxu0 %v826
    %1386 = vmatmul.mubr.bf16.gmra.mxu0 %v825
    %v1387 = vpop.f32.mrf.mxu0
    %v1388 = vadd.f32 0.0, %v1387
    %v1389 = vpop.f32.mrf.mxu0
    %v1390 = vpop.f32.mrf.mxu0
    %v1391 = vadd.f32 0.0, %v1390
    %v1392 = vpop.f32.mrf.mxu0
    %1393 = vmatprep.mubr.bf16.mxu0 %v830
    %1394 = vmatmul.mubr.bf16.gmra.mxu0 %v829
    %v1395 = vpop.f32.mrf.mxu0
    %v1396 = vadd.f32 0.0, %v1395
    %v1397 = vpop.f32.mrf.mxu0
    %v1398 = vpop.f32.mrf.mxu0
    %v1399 = vadd.f32 0.0, %v1398
    %v1400 = vpop.f32.mrf.mxu0
    %1401 = vmatprep.mubr.bf16.mxu0 %v834
    %1402 = vmatmul.mubr.bf16.gmra.mxu0 %v833
    %v1403 = vpop.f32.mrf.mxu0
    %v1404 = vadd.f32 0.0, %v1403
    %v1405 = vpop.f32.mrf.mxu0
    %v1406 = vpop.f32.mrf.mxu0
    %v1407 = vadd.f32 0.0, %v1406
    %v1408 = vpop.f32.mrf.mxu0
    %1409 = vmatprep.mubr.bf16.mxu0 %v838
    %1410 = vmatmul.mubr.bf16.gmra.mxu0 %v837
    %v1411 = vpop.f32.mrf.mxu0
    %v1412 = vadd.f32 0.0, %v1411
    %v1413 = vpop.f32.mrf.mxu0
    %v1414 = vpop.f32.mrf.mxu0
    %v1415 = vadd.f32 0.0, %v1414
    %v1416 = vpop.f32.mrf.mxu0
    %1417 = vmatprep.mubr.bf16.mxu0 %v842
    %1418 = vmatmul.mubr.bf16.gmra.mxu0 %v841
    %v1419 = vpop.f32.mrf.mxu0
    %v1420 = vadd.f32 0.0, %v1419
    %v1421 = vpop.f32.mrf.mxu0
    %v1422 = vpop.f32.mrf.mxu0
    %v1423 = vadd.f32 0.0, %v1422
    %v1424 = vpop.f32.mrf.mxu0
    %1425 = vmatprep.mubr.bf16.mxu0 %v846
    %1426 = vmatmul.mubr.bf16.gmra.mxu0 %v845
    %v1427 = vpop.f32.mrf.mxu0
    %v1428 = vadd.f32 0.0, %v1427
    %v1429 = vpop.f32.mrf.mxu0
    %v1430 = vpop.f32.mrf.mxu0
    %v1431 = vadd.f32 0.0, %v1430
    %v1432 = vpop.f32.mrf.mxu0
    %1433 = vmatprep.mubr.bf16.mxu0 %v850
    %1434 = vmatmul.mubr.bf16.gmra.mxu0 %v849
    %v1435 = vpop.f32.mrf.mxu0
    %v1436 = vadd.f32 0.0, %v1435
    %v1437 = vpop.f32.mrf.mxu0
    %v1438 = vpop.f32.mrf.mxu0
    %v1439 = vadd.f32 0.0, %v1438
    %v1440 = vpop.f32.mrf.mxu0
    %1441 = vmatprep.mubr.bf16.mxu0 %v854
    %1442 = vmatmul.mubr.bf16.gmra.mxu0 %v853
    %v1443 = vpop.f32.mrf.mxu0
    %v1444 = vadd.f32 0.0, %v1443
    %v1445 = vpop.f32.mrf.mxu0
    %v1446 = vpop.f32.mrf.mxu0
    %v1447 = vadd.f32 0.0, %v1446
    %v1448 = vpop.f32.mrf.mxu0
    %1449 = vmatprep.mubr.bf16.mxu0 %v858
    %1450 = vmatmul.mubr.bf16.gmra.mxu0 %v857
    %v1451 = vpop.f32.mrf.mxu0
    %v1452 = vadd.f32 0.0, %v1451
    %v1453 = vpop.f32.mrf.mxu0
    %v1454 = vpop.f32.mrf.mxu0
    %v1455 = vadd.f32 0.0, %v1454
    %v1456 = vpop.f32.mrf.mxu0
    %1457 = vmatprep.mubr.bf16.mxu0 %v862
    %1458 = vmatmul.mubr.bf16.gmra.mxu0 %v861
    %v1459 = vpop.f32.mrf.mxu0
    %v1460 = vadd.f32 0.0, %v1459
    %v1461 = vpop.f32.mrf.mxu0
    %v1462 = vpop.f32.mrf.mxu0
    %v1463 = vadd.f32 0.0, %v1462
    %v1464 = vpop.f32.mrf.mxu0
    %1465 = vmatprep.mubr.bf16.mxu0 %v866
    %1466 = vmatmul.mubr.bf16.gmra.mxu0 %v865
    %v1467 = vpop.f32.mrf.mxu0
    %v1468 = vadd.f32 0.0, %v1467
    %v1469 = vpop.f32.mrf.mxu0
    %v1470 = vpop.f32.mrf.mxu0
    %v1471 = vadd.f32 0.0, %v1470
    %v1472 = vpop.f32.mrf.mxu0
    %1473 = vmatprep.mubr.bf16.mxu0 %v870
    %1474 = vmatmul.mubr.bf16.gmra.mxu0 %v869
    %v1475 = vpop.f32.mrf.mxu0
    %v1476 = vadd.f32 0.0, %v1475
    %v1477 = vpop.f32.mrf.mxu0
    %v1478 = vpop.f32.mrf.mxu0
    %v1479 = vadd.f32 0.0, %v1478
    %v1480 = vpop.f32.mrf.mxu0
    %1481 = vdwg.mxu0
    %1482 = vmatprep.subr.bf16.mxu0 0
    %1483 = vmatpush1.bf16.msra.mxu0 %v1152
    %1484 = vmatprep.subr.bf16.mxu0 0
    %1485 = vmatpush1.bf16.msra.mxu0 %v1151
    %1486 = vmatprep.subr.bf16.mxu0 0
    %1487 = vmatpush1.bf16.msra.mxu0 %v1150
    %1488 = vmatprep.subr.bf16.mxu0 0
    %1489 = vmatpush1.bf16.msra.mxu0 %v1149
    %1490 = vmatprep.subr.bf16.mxu0 0
    %1491 = vmatpush1.bf16.msra.mxu0 %v1148
    %1492 = vmatprep.subr.bf16.mxu0 0
    %1493 = vmatpush1.bf16.msra.mxu0 %v1147
    %1494 = vmatprep.subr.bf16.mxu0 0
    %1495 = vmatpush1.bf16.msra.mxu0 %v1146
    %1496 = vmatprep.subr.bf16.mxu0 0
    %1497 = vmatpush1.bf16.msra.mxu0 %v1145
    %1498 = vmatprep.subr.bf16.mxu0 0
    %1499 = vmatpush2.bf16.msra.mxu0 %v1160
    %1500 = vmatprep.subr.bf16.mxu0 0
    %1501 = vmatpush2.bf16.msra.mxu0 %v1159
    %1502 = vmatprep.subr.bf16.mxu0 0
    %1503 = vmatpush2.bf16.msra.mxu0 %v1158
    %1504 = vmatprep.subr.bf16.mxu0 0
    %1505 = vmatpush2.bf16.msra.mxu0 %v1157
    %1506 = vmatprep.subr.bf16.mxu0 0
    %1507 = vmatpush2.bf16.msra.mxu0 %v1156
    %1508 = vmatprep.subr.bf16.mxu0 0
    %1509 = vmatpush2.bf16.msra.mxu0 %v1155
    %1510 = vmatprep.subr.bf16.mxu0 0
    %1511 = vmatpush2.bf16.msra.mxu0 %v1154
    %1512 = vmatprep.subr.bf16.mxu0 0
    %1513 = vmatpush2.bf16.msra.mxu0 %v1153
    %1514 = vmatprep.mubr.bf16.mxu0 %v748
    %1515 = vmatmul.mubr.bf16.gmra.mxu0 %v747
    %v1516 = vpop.f32.mrf.mxu0
    %v1517 = vadd.f32 %v1228, %v1516
    %v1518 = vpop.f32.mrf.mxu0
    %v1519 = vpop.f32.mrf.mxu0
    %v1520 = vadd.f32 %v1231, %v1519
    %v1521 = vpop.f32.mrf.mxu0
    %1522 = vmatprep.mubr.bf16.mxu0 %v752
    %1523 = vmatmul.mubr.bf16.gmra.mxu0 %v751
    %v1524 = vpop.f32.mrf.mxu0
    %v1525 = vadd.f32 %v1236, %v1524
    %v1526 = vpop.f32.mrf.mxu0
    %v1527 = vpop.f32.mrf.mxu0
    %v1528 = vadd.f32 %v1239, %v1527
    %v1529 = vpop.f32.mrf.mxu0
    %1530 = vmatprep.mubr.bf16.mxu0 %v756
    %1531 = vmatmul.mubr.bf16.gmra.mxu0 %v755
    %v1532 = vpop.f32.mrf.mxu0
    %v1533 = vadd.f32 %v1244, %v1532
    %v1534 = vpop.f32.mrf.mxu0
    %v1535 = vpop.f32.mrf.mxu0
    %v1536 = vadd.f32 %v1247, %v1535
    %v1537 = vpop.f32.mrf.mxu0
    %1538 = vmatprep.mubr.bf16.mxu0 %v760
    %1539 = vmatmul.mubr.bf16.gmra.mxu0 %v759
    %v1540 = vpop.f32.mrf.mxu0
    %v1541 = vadd.f32 %v1252, %v1540
    %v1542 = vpop.f32.mrf.mxu0
    %v1543 = vpop.f32.mrf.mxu0
    %v1544 = vadd.f32 %v1255, %v1543
    %v1545 = vpop.f32.mrf.mxu0
    %1546 = vmatprep.mubr.bf16.mxu0 %v764
    %1547 = vmatmul.mubr.bf16.gmra.mxu0 %v763
    %v1548 = vpop.f32.mrf.mxu0
    %v1549 = vadd.f32 %v1260, %v1548
    %v1550 = vpop.f32.mrf.mxu0
    %v1551 = vpop.f32.mrf.mxu0
    %v1552 = vadd.f32 %v1263, %v1551
    %v1553 = vpop.f32.mrf.mxu0
    %1554 = vmatprep.mubr.bf16.mxu0 %v768
    %1555 = vmatmul.mubr.bf16.gmra.mxu0 %v767
    %v1556 = vpop.f32.mrf.mxu0
    %v1557 = vadd.f32 %v1268, %v1556
    %v1558 = vpop.f32.mrf.mxu0
    %v1559 = vpop.f32.mrf.mxu0
    %v1560 = vadd.f32 %v1271, %v1559
    %v1561 = vpop.f32.mrf.mxu0
    %1562 = vmatprep.mubr.bf16.mxu0 %v772
    %1563 = vmatmul.mubr.bf16.gmra.mxu0 %v771
    %v1564 = vpop.f32.mrf.mxu0
    %v1565 = vadd.f32 %v1276, %v1564
    %v1566 = vpop.f32.mrf.mxu0
    %v1567 = vpop.f32.mrf.mxu0
    %v1568 = vadd.f32 %v1279, %v1567
    %v1569 = vpop.f32.mrf.mxu0
    %1570 = vmatprep.mubr.bf16.mxu0 %v776
    %1571 = vmatmul.mubr.bf16.gmra.mxu0 %v775
    %v1572 = vpop.f32.mrf.mxu0
    %v1573 = vadd.f32 %v1284, %v1572
    %v1574 = vpop.f32.mrf.mxu0
    %v1575 = vpop.f32.mrf.mxu0
    %v1576 = vadd.f32 %v1287, %v1575
    %v1577 = vpop.f32.mrf.mxu0
    %1578 = vmatprep.mubr.bf16.mxu0 %v780
    %1579 = vmatmul.mubr.bf16.gmra.mxu0 %v779
    %v1580 = vpop.f32.mrf.mxu0
    %v1581 = vadd.f32 %v1292, %v1580
    %v1582 = vpop.f32.mrf.mxu0
    %v1583 = vpop.f32.mrf.mxu0
    %v1584 = vadd.f32 %v1295, %v1583
    %v1585 = vpop.f32.mrf.mxu0
    %1586 = vmatprep.mubr.bf16.mxu0 %v784
    %1587 = vmatmul.mubr.bf16.gmra.mxu0 %v783
    %v1588 = vpop.f32.mrf.mxu0
    %v1589 = vadd.f32 %v1300, %v1588
    %v1590 = vpop.f32.mrf.mxu0
    %v1591 = vpop.f32.mrf.mxu0
    %v1592 = vadd.f32 %v1303, %v1591
    %v1593 = vpop.f32.mrf.mxu0
    %1594 = vmatprep.mubr.bf16.mxu0 %v788
    %1595 = vmatmul.mubr.bf16.gmra.mxu0 %v787
    %v1596 = vpop.f32.mrf.mxu0
    %v1597 = vadd.f32 %v1308, %v1596
    %v1598 = vpop.f32.mrf.mxu0
    %v1599 = vpop.f32.mrf.mxu0
    %v1600 = vadd.f32 %v1311, %v1599
    %v1601 = vpop.f32.mrf.mxu0
    %1602 = vmatprep.mubr.bf16.mxu0 %v792
    %1603 = vmatmul.mubr.bf16.gmra.mxu0 %v791
    %v1604 = vpop.f32.mrf.mxu0
    %v1605 = vadd.f32 %v1316, %v1604
    %v1606 = vpop.f32.mrf.mxu0
    %v1607 = vpop.f32.mrf.mxu0
    %v1608 = vadd.f32 %v1319, %v1607
    %v1609 = vpop.f32.mrf.mxu0
    %1610 = vmatprep.mubr.bf16.mxu0 %v796
    %1611 = vmatmul.mubr.bf16.gmra.mxu0 %v795
    %v1612 = vpop.f32.mrf.mxu0
    %v1613 = vadd.f32 %v1324, %v1612
    %v1614 = vpop.f32.mrf.mxu0
    %v1615 = vpop.f32.mrf.mxu0
    %v1616 = vadd.f32 %v1327, %v1615
    %v1617 = vpop.f32.mrf.mxu0
    %1618 = vmatprep.mubr.bf16.mxu0 %v800
    %1619 = vmatmul.mubr.bf16.gmra.mxu0 %v799
    %v1620 = vpop.f32.mrf.mxu0
    %v1621 = vadd.f32 %v1332, %v1620
    %v1622 = vpop.f32.mrf.mxu0
    %v1623 = vpop.f32.mrf.mxu0
    %v1624 = vadd.f32 %v1335, %v1623
    %v1625 = vpop.f32.mrf.mxu0
    %1626 = vmatprep.mubr.bf16.mxu0 %v804
    %1627 = vmatmul.mubr.bf16.gmra.mxu0 %v803
    %v1628 = vpop.f32.mrf.mxu0
    %v1629 = vadd.f32 %v1340, %v1628
    %v1630 = vpop.f32.mrf.mxu0
    %v1631 = vpop.f32.mrf.mxu0
    %v1632 = vadd.f32 %v1343, %v1631
    %v1633 = vpop.f32.mrf.mxu0
    %1634 = vmatprep.mubr.bf16.mxu0 %v808
    %1635 = vmatmul.mubr.bf16.gmra.mxu0 %v807
    %v1636 = vpop.f32.mrf.mxu0
    %v1637 = vadd.f32 %v1348, %v1636
    %v1638 = vpop.f32.mrf.mxu0
    %v1639 = vpop.f32.mrf.mxu0
    %v1640 = vadd.f32 %v1351, %v1639
    %v1641 = vpop.f32.mrf.mxu0
    %1642 = vmatprep.mubr.bf16.mxu0 %v812
    %1643 = vmatmul.mubr.bf16.gmra.mxu0 %v811
    %v1644 = vpop.f32.mrf.mxu0
    %v1645 = vadd.f32 %v1356, %v1644
    %v1646 = vpop.f32.mrf.mxu0
    %v1647 = vpop.f32.mrf.mxu0
    %v1648 = vadd.f32 %v1359, %v1647
    %v1649 = vpop.f32.mrf.mxu0
    %1650 = vmatprep.mubr.bf16.mxu0 %v816
    %1651 = vmatmul.mubr.bf16.gmra.mxu0 %v815
    %v1652 = vpop.f32.mrf.mxu0
    %v1653 = vadd.f32 %v1364, %v1652
    %v1654 = vpop.f32.mrf.mxu0
    %v1655 = vpop.f32.mrf.mxu0
    %v1656 = vadd.f32 %v1367, %v1655
    %v1657 = vpop.f32.mrf.mxu0
    %1658 = vmatprep.mubr.bf16.mxu0 %v820
    %1659 = vmatmul.mubr.bf16.gmra.mxu0 %v819
    %v1660 = vpop.f32.mrf.mxu0
    %v1661 = vadd.f32 %v1372, %v1660
    %v1662 = vpop.f32.mrf.mxu0
    %v1663 = vpop.f32.mrf.mxu0
    %v1664 = vadd.f32 %v1375, %v1663
    %v1665 = vpop.f32.mrf.mxu0
    %1666 = vmatprep.mubr.bf16.mxu0 %v824
    %1667 = vmatmul.mubr.bf16.gmra.mxu0 %v823
    %v1668 = vpop.f32.mrf.mxu0
    %v1669 = vadd.f32 %v1380, %v1668
    %v1670 = vpop.f32.mrf.mxu0
    %v1671 = vpop.f32.mrf.mxu0
    %v1672 = vadd.f32 %v1383, %v1671
    %v1673 = vpop.f32.mrf.mxu0
    %1674 = vmatprep.mubr.bf16.mxu0 %v828
    %1675 = vmatmul.mubr.bf16.gmra.mxu0 %v827
    %v1676 = vpop.f32.mrf.mxu0
    %v1677 = vadd.f32 %v1388, %v1676
    %v1678 = vpop.f32.mrf.mxu0
    %v1679 = vpop.f32.mrf.mxu0
    %v1680 = vadd.f32 %v1391, %v1679
    %v1681 = vpop.f32.mrf.mxu0
    %1682 = vmatprep.mubr.bf16.mxu0 %v832
    %1683 = vmatmul.mubr.bf16.gmra.mxu0 %v831
    %v1684 = vpop.f32.mrf.mxu0
    %v1685 = vadd.f32 %v1396, %v1684
    %v1686 = vpop.f32.mrf.mxu0
    %v1687 = vpop.f32.mrf.mxu0
    %v1688 = vadd.f32 %v1399, %v1687
    %v1689 = vpop.f32.mrf.mxu0
    %1690 = vmatprep.mubr.bf16.mxu0 %v836
    %1691 = vmatmul.mubr.bf16.gmra.mxu0 %v835
    %v1692 = vpop.f32.mrf.mxu0
    %v1693 = vadd.f32 %v1404, %v1692
    %v1694 = vpop.f32.mrf.mxu0
    %v1695 = vpop.f32.mrf.mxu0
    %v1696 = vadd.f32 %v1407, %v1695
    %v1697 = vpop.f32.mrf.mxu0
    %1698 = vmatprep.mubr.bf16.mxu0 %v840
    %1699 = vmatmul.mubr.bf16.gmra.mxu0 %v839
    %v1700 = vpop.f32.mrf.mxu0
    %v1701 = vadd.f32 %v1412, %v1700
    %v1702 = vpop.f32.mrf.mxu0
    %v1703 = vpop.f32.mrf.mxu0
    %v1704 = vadd.f32 %v1415, %v1703
    %v1705 = vpop.f32.mrf.mxu0
    %1706 = vmatprep.mubr.bf16.mxu0 %v844
    %1707 = vmatmul.mubr.bf16.gmra.mxu0 %v843
    %v1708 = vpop.f32.mrf.mxu0
    %v1709 = vadd.f32 %v1420, %v1708
    %v1710 = vpop.f32.mrf.mxu0
    %v1711 = vpop.f32.mrf.mxu0
    %v1712 = vadd.f32 %v1423, %v1711
    %v1713 = vpop.f32.mrf.mxu0
    %1714 = vmatprep.mubr.bf16.mxu0 %v848
    %1715 = vmatmul.mubr.bf16.gmra.mxu0 %v847
    %v1716 = vpop.f32.mrf.mxu0
    %v1717 = vadd.f32 %v1428, %v1716
    %v1718 = vpop.f32.mrf.mxu0
    %v1719 = vpop.f32.mrf.mxu0
    %v1720 = vadd.f32 %v1431, %v1719
    %v1721 = vpop.f32.mrf.mxu0
    %1722 = vmatprep.mubr.bf16.mxu0 %v852
    %1723 = vmatmul.mubr.bf16.gmra.mxu0 %v851
    %v1724 = vpop.f32.mrf.mxu0
    %v1725 = vadd.f32 %v1436, %v1724
    %v1726 = vpop.f32.mrf.mxu0
    %v1727 = vpop.f32.mrf.mxu0
    %v1728 = vadd.f32 %v1439, %v1727
    %v1729 = vpop.f32.mrf.mxu0
    %1730 = vmatprep.mubr.bf16.mxu0 %v856
    %1731 = vmatmul.mubr.bf16.gmra.mxu0 %v855
    %v1732 = vpop.f32.mrf.mxu0
    %v1733 = vadd.f32 %v1444, %v1732
    %v1734 = vpop.f32.mrf.mxu0
    %v1735 = vpop.f32.mrf.mxu0
    %v1736 = vadd.f32 %v1447, %v1735
    %v1737 = vpop.f32.mrf.mxu0
    %1738 = vmatprep.mubr.bf16.mxu0 %v860
    %1739 = vmatmul.mubr.bf16.gmra.mxu0 %v859
    %v1740 = vpop.f32.mrf.mxu0
    %v1741 = vadd.f32 %v1452, %v1740
    %v1742 = vpop.f32.mrf.mxu0
    %v1743 = vpop.f32.mrf.mxu0
    %v1744 = vadd.f32 %v1455, %v1743
    %v1745 = vpop.f32.mrf.mxu0
    %1746 = vmatprep.mubr.bf16.mxu0 %v864
    %1747 = vmatmul.mubr.bf16.gmra.mxu0 %v863
    %v1748 = vpop.f32.mrf.mxu0
    %v1749 = vadd.f32 %v1460, %v1748
    %v1750 = vpop.f32.mrf.mxu0
    %v1751 = vpop.f32.mrf.mxu0
    %v1752 = vadd.f32 %v1463, %v1751
    %v1753 = vpop.f32.mrf.mxu0
    %1754 = vmatprep.mubr.bf16.mxu0 %v868
    %1755 = vmatmul.mubr.bf16.gmra.mxu0 %v867
    %v1756 = vpop.f32.mrf.mxu0
    %v1757 = vadd.f32 %v1468, %v1756
    %v1758 = vpop.f32.mrf.mxu0
    %v1759 = vpop.f32.mrf.mxu0
    %v1760 = vadd.f32 %v1471, %v1759
    %v1761 = vpop.f32.mrf.mxu0
    %1762 = vmatprep.mubr.bf16.mxu0 %v872
    %1763 = vmatmul.mubr.bf16.gmra.mxu0 %v871
    %v1764 = vpop.f32.mrf.mxu0
    %v1765 = vadd.f32 %v1476, %v1764
    %v1766 = vpop.f32.mrf.mxu0
    %v1767 = vpop.f32.mrf.mxu0
    %v1768 = vadd.f32 %v1479, %v1767
    %v1769 = vpop.f32.mrf.mxu0
    %1770 = vdwg.mxu0
    %v1771 = vadd.f32 %v169, %v1517
    %v1772 = vadd.f32 %v170, %v1520
    %v1773 = vadd.f32 %v171, %v1525
    %v1774 = vadd.f32 %v172, %v1528
    %v1775 = vadd.f32 %v173, %v1533
    %v1776 = vadd.f32 %v174, %v1536
    %v1777 = vadd.f32 %v175, %v1541
    %v1778 = vadd.f32 %v176, %v1544
    %v1779 = vadd.f32 %v177, %v1549
    %v1780 = vadd.f32 %v178, %v1552
    %v1781 = vadd.f32 %v179, %v1557
    %v1782 = vadd.f32 %v180, %v1560
    %v1783 = vadd.f32 %v181, %v1565
    %v1784 = vadd.f32 %v182, %v1568
    %v1785 = vadd.f32 %v183, %v1573
    %v1786 = vadd.f32 %v184, %v1576
    %v1787 = vadd.f32 %v185, %v1581
    %v1788 = vadd.f32 %v186, %v1584
    %v1789 = vadd.f32 %v187, %v1589
    %v1790 = vadd.f32 %v188, %v1592
    %v1791 = vadd.f32 %v189, %v1597
    %v1792 = vadd.f32 %v190, %v1600
    %v1793 = vadd.f32 %v191, %v1605
    %v1794 = vadd.f32 %v192, %v1608
    %v1795 = vadd.f32 %v193, %v1613
    %v1796 = vadd.f32 %v194, %v1616
    %v1797 = vadd.f32 %v195, %v1621
    %v1798 = vadd.f32 %v196, %v1624
    %v1799 = vadd.f32 %v197, %v1629
    %v1800 = vadd.f32 %v198, %v1632
    %v1801 = vadd.f32 %v199, %v1637
    %v1802 = vadd.f32 %v200, %v1640
    %v1803 = vadd.f32 %v201, %v1645
    %v1804 = vadd.f32 %v202, %v1648
    %v1805 = vadd.f32 %v203, %v1653
    %v1806 = vadd.f32 %v204, %v1656
    %v1807 = vadd.f32 %v205, %v1661
    %v1808 = vadd.f32 %v206, %v1664
    %v1809 = vadd.f32 %v207, %v1669
    %v1810 = vadd.f32 %v208, %v1672
    %v1811 = vadd.f32 %v209, %v1677
    %v1812 = vadd.f32 %v210, %v1680
    %v1813 = vadd.f32 %v211, %v1685
    %v1814 = vadd.f32 %v212, %v1688
    %v1815 = vadd.f32 %v213, %v1693
    %v1816 = vadd.f32 %v214, %v1696
    %v1817 = vadd.f32 %v215, %v1701
    %v1818 = vadd.f32 %v216, %v1704
    %v1819 = vadd.f32 %v217, %v1709
    %v1820 = vadd.f32 %v218, %v1712
    %v1821 = vadd.f32 %v219, %v1717
    %v1822 = vadd.f32 %v220, %v1720
    %v1823 = vadd.f32 %v221, %v1725
    %v1824 = vadd.f32 %v222, %v1728
    %v1825 = vadd.f32 %v223, %v1733
    %v1826 = vadd.f32 %v224, %v1736
    %v1827 = vadd.f32 %v225, %v1741
    %v1828 = vadd.f32 %v226, %v1744
    %v1829 = vadd.f32 %v227, %v1749
    %v1830 = vadd.f32 %v228, %v1752
    %v1831 = vadd.f32 %v229, %v1757
    %v1832 = vadd.f32 %v230, %v1760
    %v1833 = vadd.f32 %v231, %v1765
    %v1834 = vadd.f32 %v232, %v1768
    %1835 = vst [vmem:[#allocation2] sm:$0xff] %v1771
    %1836 = vst [vmem:[#allocation2 + $0x8] sm:$0xff] %v1772
    %1837 = vst [vmem:[#allocation2 + $0x10] sm:$0xff] %v1773
    %1838 = vst [vmem:[#allocation2 + $0x18] sm:$0xff] %v1774
    %1839 = vst [vmem:[#allocation2 + $0x20] sm:$0xff] %v1775
    %1840 = vst [vmem:[#allocation2 + $0x28] sm:$0xff] %v1776
    %1841 = vst [vmem:[#allocation2 + $0x30] sm:$0xff] %v1777
    %1842 = vst [vmem:[#allocation2 + $0x38] sm:$0xff] %v1778
    %1843 = vst [vmem:[#allocation2 + $0x40] sm:$0xff] %v1779
    %1844 = vst [vmem:[#allocation2 + $0x48] sm:$0xff] %v1780
    %1845 = vst [vmem:[#allocation2 + $0x50] sm:$0xff] %v1781
    %1846 = vst [vmem:[#allocation2 + $0x58] sm:$0xff] %v1782
    %1847 = vst [vmem:[#allocation2 + $0x60] sm:$0xff] %v1783
    %1848 = vst [vmem:[#allocation2 + $0x68] sm:$0xff] %v1784
    %1849 = vst [vmem:[#allocation2 + $0x70] sm:$0xff] %v1785
    %1850 = vst [vmem:[#allocation2 + $0x78] sm:$0xff] %v1786
    %1851 = vst [vmem:[#allocation2 + $0x80] sm:$0xff] %v1787
    %1852 = vst [vmem:[#allocation2 + $0x88] sm:$0xff] %v1788
    %1853 = vst [vmem:[#allocation2 + $0x90] sm:$0xff] %v1789
    %1854 = vst [vmem:[#allocation2 + $0x98] sm:$0xff] %v1790
    %1855 = vst [vmem:[#allocation2 + $0xa0] sm:$0xff] %v1791
    %1856 = vst [vmem:[#allocation2 + $0xa8] sm:$0xff] %v1792
    %1857 = vst [vmem:[#allocation2 + $0xb0] sm:$0xff] %v1793
    %1858 = vst [vmem:[#allocation2 + $0xb8] sm:$0xff] %v1794
    %1859 = vst [vmem:[#allocation2 + $0xc0] sm:$0xff] %v1795
    %1860 = vst [vmem:[#allocation2 + $0xc8] sm:$0xff] %v1796
    %1861 = vst [vmem:[#allocation2 + $0xd0] sm:$0xff] %v1797
    %1862 = vst [vmem:[#allocation2 + $0xd8] sm:$0xff] %v1798
    %1863 = vst [vmem:[#allocation2 + $0xe0] sm:$0xff] %v1799
    %1864 = vst [vmem:[#allocation2 + $0xe8] sm:$0xff] %v1800
    %1865 = vst [vmem:[#allocation2 + $0xf0] sm:$0xff] %v1801
    %1866 = vst [vmem:[#allocation2 + $0xf8] sm:$0xff] %v1802
    %1867 = vst [vmem:[#allocation2 + $0x100] sm:$0xff] %v1803
    %1868 = vst [vmem:[#allocation2 + $0x108] sm:$0xff] %v1804
    %1869 = vst [vmem:[#allocation2 + $0x110] sm:$0xff] %v1805
    %1870 = vst [vmem:[#allocation2 + $0x118] sm:$0xff] %v1806
    %1871 = vst [vmem:[#allocation2 + $0x120] sm:$0xff] %v1807
    %1872 = vst [vmem:[#allocation2 + $0x128] sm:$0xff] %v1808
    %1873 = vst [vmem:[#allocation2 + $0x130] sm:$0xff] %v1809
    %1874 = vst [vmem:[#allocation2 + $0x138] sm:$0xff] %v1810
    %1875 = vst [vmem:[#allocation2 + $0x140] sm:$0xff] %v1811
    %1876 = vst [vmem:[#allocation2 + $0x148] sm:$0xff] %v1812
    %1877 = vst [vmem:[#allocation2 + $0x150] sm:$0xff] %v1813
    %1878 = vst [vmem:[#allocation2 + $0x158] sm:$0xff] %v1814
    %1879 = vst [vmem:[#allocation2 + $0x160] sm:$0xff] %v1815
    %1880 = vst [vmem:[#allocation2 + $0x168] sm:$0xff] %v1816
    %1881 = vst [vmem:[#allocation2 + $0x170] sm:$0xff] %v1817
    %1882 = vst [vmem:[#allocation2 + $0x178] sm:$0xff] %v1818
    %1883 = vst [vmem:[#allocation2 + $0x180] sm:$0xff] %v1819
    %1884 = vst [vmem:[#allocation2 + $0x188] sm:$0xff] %v1820
    %1885 = vst [vmem:[#allocation2 + $0x190] sm:$0xff] %v1821
    %1886 = vst [vmem:[#allocation2 + $0x198] sm:$0xff] %v1822
    %1887 = vst [vmem:[#allocation2 + $0x1a0] sm:$0xff] %v1823
    %1888 = vst [vmem:[#allocation2 + $0x1a8] sm:$0xff] %v1824
    %1889 = vst [vmem:[#allocation2 + $0x1b0] sm:$0xff] %v1825
    %1890 = vst [vmem:[#allocation2 + $0x1b8] sm:$0xff] %v1826
    %1891 = vst [vmem:[#allocation2 + $0x1c0] sm:$0xff] %v1827
    %1892 = vst [vmem:[#allocation2 + $0x1c8] sm:$0xff] %v1828
    %1893 = vst [vmem:[#allocation2 + $0x1d0] sm:$0xff] %v1829
    %1894 = vst [vmem:[#allocation2 + $0x1d8] sm:$0xff] %v1830
    %1895 = vst [vmem:[#allocation2 + $0x1e0] sm:$0xff] %v1831
    %1896 = vst [vmem:[#allocation2 + $0x1e8] sm:$0xff] %v1832
    %1897 = vst [vmem:[#allocation2 + $0x1f0] sm:$0xff] %v1833
    %1898 = vst [vmem:[#allocation2 + $0x1f8] sm:$0xff] %v1834
    // Predicated region
    $region26: #{gcn_encoder.2} parent=1 // pred_check
      %p1899 = pneg %p32
    $region27: #{gcn_encoder.2} parent=1 // pred_check_branch
      %1901 = sbr.rel (%p1899) target = $region29
    $region28: #{gcn_encoder.2} parent=1 // pred_region
      %v1902 = vld [vmem:[#allocation2] sm:$0xff]
      %v1903 = vld [vmem:[#allocation2 + $0x8] sm:$0xff]
      %v1904 = vld [vmem:[#allocation2 + $0x10] sm:$0xff]
      %v1905 = vld [vmem:[#allocation2 + $0x18] sm:$0xff]
      %v1906 = vld [vmem:[#allocation2 + $0x20] sm:$0xff]
      %v1907 = vld [vmem:[#allocation2 + $0x28] sm:$0xff]
      %v1908 = vld [vmem:[#allocation2 + $0x30] sm:$0xff]
      %v1909 = vld [vmem:[#allocation2 + $0x38] sm:$0xff]
      %v1910 = vld [vmem:[#allocation2 + $0x40] sm:$0xff]
      %v1911 = vld [vmem:[#allocation2 + $0x48] sm:$0xff]
      %v1912 = vld [vmem:[#allocation2 + $0x50] sm:$0xff]
      %v1913 = vld [vmem:[#allocation2 + $0x58] sm:$0xff]
      %v1914 = vld [vmem:[#allocation2 + $0x60] sm:$0xff]
      %v1915 = vld [vmem:[#allocation2 + $0x68] sm:$0xff]
      %v1916 = vld [vmem:[#allocation2 + $0x70] sm:$0xff]
      %v1917 = vld [vmem:[#allocation2 + $0x78] sm:$0xff]
      %v1918 = vld [vmem:[#allocation2 + $0x80] sm:$0xff]
      %v1919 = vld [vmem:[#allocation2 + $0x88] sm:$0xff]
      %v1920 = vld [vmem:[#allocation2 + $0x90] sm:$0xff]
      %v1921 = vld [vmem:[#allocation2 + $0x98] sm:$0xff]
      %v1922 = vld [vmem:[#allocation2 + $0xa0] sm:$0xff]
      %v1923 = vld [vmem:[#allocation2 + $0xa8] sm:$0xff]
      %v1924 = vld [vmem:[#allocation2 + $0xb0] sm:$0xff]
      %v1925 = vld [vmem:[#allocation2 + $0xb8] sm:$0xff]
      %v1926 = vld [vmem:[#allocation2 + $0xc0] sm:$0xff]
      %v1927 = vld [vmem:[#allocation2 + $0xc8] sm:$0xff]
      %v1928 = vld [vmem:[#allocation2 + $0xd0] sm:$0xff]
      %v1929 = vld [vmem:[#allocation2 + $0xd8] sm:$0xff]
      %v1930 = vld [vmem:[#allocation2 + $0xe0] sm:$0xff]
      %v1931 = vld [vmem:[#allocation2 + $0xe8] sm:$0xff]
      %v1932 = vld [vmem:[#allocation2 + $0xf0] sm:$0xff]
      %v1933 = vld [vmem:[#allocation2 + $0xf8] sm:$0xff]
      %v1934 = vld [vmem:[#allocation2 + $0x100] sm:$0xff]
      %v1935 = vld [vmem:[#allocation2 + $0x108] sm:$0xff]
      %v1936 = vld [vmem:[#allocation2 + $0x110] sm:$0xff]
      %v1937 = vld [vmem:[#allocation2 + $0x118] sm:$0xff]
      %v1938 = vld [vmem:[#allocation2 + $0x120] sm:$0xff]
      %v1939 = vld [vmem:[#allocation2 + $0x128] sm:$0xff]
      %v1940 = vld [vmem:[#allocation2 + $0x130] sm:$0xff]
      %v1941 = vld [vmem:[#allocation2 + $0x138] sm:$0xff]
      %v1942 = vld [vmem:[#allocation2 + $0x140] sm:$0xff]
      %v1943 = vld [vmem:[#allocation2 + $0x148] sm:$0xff]
      %v1944 = vld [vmem:[#allocation2 + $0x150] sm:$0xff]
      %v1945 = vld [vmem:[#allocation2 + $0x158] sm:$0xff]
      %v1946 = vld [vmem:[#allocation2 + $0x160] sm:$0xff]
      %v1947 = vld [vmem:[#allocation2 + $0x168] sm:$0xff]
      %v1948 = vld [vmem:[#allocation2 + $0x170] sm:$0xff]
      %v1949 = vld [vmem:[#allocation2 + $0x178] sm:$0xff]
      %v1950 = vld [vmem:[#allocation2 + $0x180] sm:$0xff]
      %v1951 = vld [vmem:[#allocation2 + $0x188] sm:$0xff]
      %v1952 = vld [vmem:[#allocation2 + $0x190] sm:$0xff]
      %v1953 = vld [vmem:[#allocation2 + $0x198] sm:$0xff]
      %v1954 = vld [vmem:[#allocation2 + $0x1a0] sm:$0xff]
      %v1955 = vld [vmem:[#allocation2 + $0x1a8] sm:$0xff]
      %v1956 = vld [vmem:[#allocation2 + $0x1b0] sm:$0xff]
      %v1957 = vld [vmem:[#allocation2 + $0x1b8] sm:$0xff]
      %v1958 = vld [vmem:[#allocation2 + $0x1c0] sm:$0xff]
      %v1959 = vld [vmem:[#allocation2 + $0x1c8] sm:$0xff]
      %v1960 = vld [vmem:[#allocation2 + $0x1d0] sm:$0xff]
      %v1961 = vld [vmem:[#allocation2 + $0x1d8] sm:$0xff]
      %v1962 = vld [vmem:[#allocation2 + $0x1e0] sm:$0xff]
      %v1963 = vld [vmem:[#allocation2 + $0x1e8] sm:$0xff]
      %v1964 = vld [vmem:[#allocation2 + $0x1f0] sm:$0xff]
      %v1965 = vld [vmem:[#allocation2 + $0x1f8] sm:$0xff]
      %v1966 = vpack.c.bf16 %v1903, %v1902
      %v1967 = vpack.c.bf16 %v1905, %v1904
      %v1968 = vpack.c.bf16 %v1907, %v1906
      %v1969 = vpack.c.bf16 %v1909, %v1908
      %v1970 = vpack.c.bf16 %v1911, %v1910
      %v1971 = vpack.c.bf16 %v1913, %v1912
      %v1972 = vpack.c.bf16 %v1915, %v1914
      %v1973 = vpack.c.bf16 %v1917, %v1916
      %v1974 = vpack.c.bf16 %v1919, %v1918
      %v1975 = vpack.c.bf16 %v1921, %v1920
      %v1976 = vpack.c.bf16 %v1923, %v1922
      %v1977 = vpack.c.bf16 %v1925, %v1924
      %v1978 = vpack.c.bf16 %v1927, %v1926
      %v1979 = vpack.c.bf16 %v1929, %v1928
      %v1980 = vpack.c.bf16 %v1931, %v1930
      %v1981 = vpack.c.bf16 %v1933, %v1932
      %v1982 = vpack.c.bf16 %v1935, %v1934
      %v1983 = vpack.c.bf16 %v1937, %v1936
      %v1984 = vpack.c.bf16 %v1939, %v1938
      %v1985 = vpack.c.bf16 %v1941, %v1940
      %v1986 = vpack.c.bf16 %v1943, %v1942
      %v1987 = vpack.c.bf16 %v1945, %v1944
      %v1988 = vpack.c.bf16 %v1947, %v1946
      %v1989 = vpack.c.bf16 %v1949, %v1948
      %v1990 = vpack.c.bf16 %v1951, %v1950
      %v1991 = vpack.c.bf16 %v1953, %v1952
      %v1992 = vpack.c.bf16 %v1955, %v1954
      %v1993 = vpack.c.bf16 %v1957, %v1956
      %v1994 = vpack.c.bf16 %v1959, %v1958
      %v1995 = vpack.c.bf16 %v1961, %v1960
      %v1996 = vpack.c.bf16 %v1963, %v1962
      %v1997 = vpack.c.bf16 %v1965, %v1964
      %v1998 = vld [vmem:[%s2] sm:$0xf]
      %v1999 = vld [vmem:[%s2 + $0x4] sm:$0xf]
      %v2000 = vld [vmem:[%s2 + $0x8] sm:$0xf]
      %v2001 = vld [vmem:[%s2 + $0xc] sm:$0xf]
      %v2002 = vld [vmem:[%s2 + $0x10] sm:$0xf]
      %v2003 = vld [vmem:[%s2 + $0x14] sm:$0xf]
      %v2004 = vld [vmem:[%s2 + $0x18] sm:$0xf]
      %v2005 = vld [vmem:[%s2 + $0x1c] sm:$0xf]
      %v2006 = vld [vmem:[%s2 + $0x20] sm:$0xf]
      %v2007 = vld [vmem:[%s2 + $0x24] sm:$0xf]
      %v2008 = vld [vmem:[%s2 + $0x28] sm:$0xf]
      %v2009 = vld [vmem:[%s2 + $0x2c] sm:$0xf]
      %v2010 = vld [vmem:[%s2 + $0x30] sm:$0xf]
      %v2011 = vld [vmem:[%s2 + $0x34] sm:$0xf]
      %v2012 = vld [vmem:[%s2 + $0x38] sm:$0xf]
      %v2013 = vld [vmem:[%s2 + $0x3c] sm:$0xf]
      %v2014 = vld [vmem:[%s3] sm:$0x1]
      %v2016 = vlaneseq
      %v2017 = vshrl.u32 %v2016, 7
      %v2018 = vsub.s32 0, %v2017
      %v2019 = vrot.slane %v2014, %v2018
      %v2037 = vunpack.c.l.b16 %v1998
      %v2038 = vunpack.c.l.b16 %v1999
      %v2039 = vunpack.c.l.b16 %v2000
      %v2040 = vunpack.c.l.b16 %v2001
      %v2041 = vunpack.c.l.b16 %v2002
      %v2042 = vunpack.c.l.b16 %v2003
      %v2043 = vunpack.c.l.b16 %v2004
      %v2044 = vunpack.c.l.b16 %v2005
      %v2045 = vunpack.c.l.b16 %v2006
      %v2046 = vunpack.c.l.b16 %v2007
      %v2047 = vunpack.c.l.b16 %v2008
      %v2048 = vunpack.c.l.b16 %v2009
      %v2049 = vunpack.c.l.b16 %v2010
      %v2050 = vunpack.c.l.b16 %v2011
      %v2051 = vunpack.c.l.b16 %v2012
      %v2052 = vunpack.c.l.b16 %v2013
      %v2053 = vpack.c.b16 %v2038, %v2037
      %v2054 = vpack.c.b16 %v2040, %v2039
      %v2055 = vpack.c.b16 %v2042, %v2041
      %v2056 = vpack.c.b16 %v2044, %v2043
      %v2057 = vpack.c.b16 %v2046, %v2045
      %v2058 = vpack.c.b16 %v2048, %v2047
      %v2059 = vpack.c.b16 %v2050, %v2049
      %v2060 = vpack.c.b16 %v2052, %v2051
      %2069 = vmatprep.subr.bf16.mxu0 0
      %2070 = vmatpush1.bf16.msra.mxu0 %v2060
      %2071 = vmatprep.subr.bf16.mxu0 0
      %2072 = vmatpush1.bf16.msra.mxu0 %v2059
      %2073 = vmatprep.subr.bf16.mxu0 0
      %2074 = vmatpush1.bf16.msra.mxu0 %v2058
      %2075 = vmatprep.subr.bf16.mxu0 0
      %2076 = vmatpush1.bf16.msra.mxu0 %v2057
      %2077 = vmatprep.subr.bf16.mxu0 0
      %2078 = vmatpush1.bf16.msra.mxu0 %v2056
      %2079 = vmatprep.subr.bf16.mxu0 0
      %2080 = vmatpush1.bf16.msra.mxu0 %v2055
      %2081 = vmatprep.subr.bf16.mxu0 0
      %2082 = vmatpush1.bf16.msra.mxu0 %v2054
      %2083 = vmatprep.subr.bf16.mxu0 0
      %2084 = vmatpush1.bf16.msra.mxu0 %v2053
      %2085 = vmatprep.subr.bf16.mxu0 0
      %2086 = vmatpush2.bf16.msra.mxu0 0
      %2087 = vmatprep.subr.bf16.mxu0 0
      %2088 = vmatpush2.bf16.msra.mxu0 0
      %2089 = vmatprep.subr.bf16.mxu0 0
      %2090 = vmatpush2.bf16.msra.mxu0 0
      %2091 = vmatprep.subr.bf16.mxu0 0
      %2092 = vmatpush2.bf16.msra.mxu0 0
      %2093 = vmatprep.subr.bf16.mxu0 0
      %2094 = vmatpush2.bf16.msra.mxu0 0
      %2095 = vmatprep.subr.bf16.mxu0 0
      %2096 = vmatpush2.bf16.msra.mxu0 0
      %2097 = vmatprep.subr.bf16.mxu0 0
      %2098 = vmatpush2.bf16.msra.mxu0 0
      %2099 = vmatprep.subr.bf16.mxu0 0
      %2100 = vmatpush2.bf16.msra.mxu0 0
      %2101 = vmatprep.mubr.bf16.mxu0 0
      %2102 = vmatmul.mubr.bf16.gmra.mxu0 %v1966
      %v2103 = vpop.f32.mrf.mxu0
      %v2104 = vadd.f32 %v2019, %v2103
      %v2105 = vpop.f32.mrf.mxu0
      %v2106 = vpop.f32.mrf.mxu0
      %v2107 = vadd.f32 %v2019, %v2106
      %v2108 = vpop.f32.mrf.mxu0
      %2109 = vmatprep.mubr.bf16.mxu0 0
      %2110 = vmatmul.mubr.bf16.gmra.mxu0 %v1967
      %v2111 = vpop.f32.mrf.mxu0
      %v2112 = vadd.f32 %v2019, %v2111
      %v2113 = vpop.f32.mrf.mxu0
      %v2114 = vpop.f32.mrf.mxu0
      %v2115 = vadd.f32 %v2019, %v2114
      %v2116 = vpop.f32.mrf.mxu0
      %2117 = vmatprep.mubr.bf16.mxu0 0
      %2118 = vmatmul.mubr.bf16.gmra.mxu0 %v1968
      %v2119 = vpop.f32.mrf.mxu0
      %v2120 = vadd.f32 %v2019, %v2119
      %v2121 = vpop.f32.mrf.mxu0
      %v2122 = vpop.f32.mrf.mxu0
      %v2123 = vadd.f32 %v2019, %v2122
      %v2124 = vpop.f32.mrf.mxu0
      %2125 = vmatprep.mubr.bf16.mxu0 0
      %2126 = vmatmul.mubr.bf16.gmra.mxu0 %v1969
      %v2127 = vpop.f32.mrf.mxu0
      %v2128 = vadd.f32 %v2019, %v2127
      %v2129 = vpop.f32.mrf.mxu0
      %v2130 = vpop.f32.mrf.mxu0
      %v2131 = vadd.f32 %v2019, %v2130
      %v2132 = vpop.f32.mrf.mxu0
      %2133 = vmatprep.mubr.bf16.mxu0 0
      %2134 = vmatmul.mubr.bf16.gmra.mxu0 %v1970
      %v2135 = vpop.f32.mrf.mxu0
      %v2136 = vadd.f32 %v2019, %v2135
      %v2137 = vpop.f32.mrf.mxu0
      %v2138 = vpop.f32.mrf.mxu0
      %v2139 = vadd.f32 %v2019, %v2138
      %v2140 = vpop.f32.mrf.mxu0
      %2141 = vmatprep.mubr.bf16.mxu0 0
      %2142 = vmatmul.mubr.bf16.gmra.mxu0 %v1971
      %v2143 = vpop.f32.mrf.mxu0
      %v2144 = vadd.f32 %v2019, %v2143
      %v2145 = vpop.f32.mrf.mxu0
      %v2146 = vpop.f32.mrf.mxu0
      %v2147 = vadd.f32 %v2019, %v2146
      %v2148 = vpop.f32.mrf.mxu0
      %2149 = vmatprep.mubr.bf16.mxu0 0
      %2150 = vmatmul.mubr.bf16.gmra.mxu0 %v1972
      %v2151 = vpop.f32.mrf.mxu0
      %v2152 = vadd.f32 %v2019, %v2151
      %v2153 = vpop.f32.mrf.mxu0
      %v2154 = vpop.f32.mrf.mxu0
      %v2155 = vadd.f32 %v2019, %v2154
      %v2156 = vpop.f32.mrf.mxu0
      %2157 = vmatprep.mubr.bf16.mxu0 0
      %2158 = vmatmul.mubr.bf16.gmra.mxu0 %v1973
      %v2159 = vpop.f32.mrf.mxu0
      %v2160 = vadd.f32 %v2019, %v2159
      %v2161 = vpop.f32.mrf.mxu0
      %v2162 = vpop.f32.mrf.mxu0
      %v2163 = vadd.f32 %v2019, %v2162
      %v2164 = vpop.f32.mrf.mxu0
      %2165 = vmatprep.mubr.bf16.mxu0 0
      %2166 = vmatmul.mubr.bf16.gmra.mxu0 %v1974
      %v2167 = vpop.f32.mrf.mxu0
      %v2168 = vadd.f32 %v2019, %v2167
      %v2169 = vpop.f32.mrf.mxu0
      %v2170 = vpop.f32.mrf.mxu0
      %v2171 = vadd.f32 %v2019, %v2170
      %v2172 = vpop.f32.mrf.mxu0
      %2173 = vmatprep.mubr.bf16.mxu0 0
      %2174 = vmatmul.mubr.bf16.gmra.mxu0 %v1975
      %v2175 = vpop.f32.mrf.mxu0
      %v2176 = vadd.f32 %v2019, %v2175
      %v2177 = vpop.f32.mrf.mxu0
      %v2178 = vpop.f32.mrf.mxu0
      %v2179 = vadd.f32 %v2019, %v2178
      %v2180 = vpop.f32.mrf.mxu0
      %2181 = vmatprep.mubr.bf16.mxu0 0
      %2182 = vmatmul.mubr.bf16.gmra.mxu0 %v1976
      %v2183 = vpop.f32.mrf.mxu0
      %v2184 = vadd.f32 %v2019, %v2183
      %v2185 = vpop.f32.mrf.mxu0
      %v2186 = vpop.f32.mrf.mxu0
      %v2187 = vadd.f32 %v2019, %v2186
      %v2188 = vpop.f32.mrf.mxu0
      %2189 = vmatprep.mubr.bf16.mxu0 0
      %2190 = vmatmul.mubr.bf16.gmra.mxu0 %v1977
      %v2191 = vpop.f32.mrf.mxu0
      %v2192 = vadd.f32 %v2019, %v2191
      %v2193 = vpop.f32.mrf.mxu0
      %v2194 = vpop.f32.mrf.mxu0
      %v2195 = vadd.f32 %v2019, %v2194
      %v2196 = vpop.f32.mrf.mxu0
      %2197 = vmatprep.mubr.bf16.mxu0 0
      %2198 = vmatmul.mubr.bf16.gmra.mxu0 %v1978
      %v2199 = vpop.f32.mrf.mxu0
      %v2200 = vadd.f32 %v2019, %v2199
      %v2201 = vpop.f32.mrf.mxu0
      %v2202 = vpop.f32.mrf.mxu0
      %v2203 = vadd.f32 %v2019, %v2202
      %v2204 = vpop.f32.mrf.mxu0
      %2205 = vmatprep.mubr.bf16.mxu0 0
      %2206 = vmatmul.mubr.bf16.gmra.mxu0 %v1979
      %v2207 = vpop.f32.mrf.mxu0
      %v2208 = vadd.f32 %v2019, %v2207
      %v2209 = vpop.f32.mrf.mxu0
      %v2210 = vpop.f32.mrf.mxu0
      %v2211 = vadd.f32 %v2019, %v2210
      %v2212 = vpop.f32.mrf.mxu0
      %2213 = vmatprep.mubr.bf16.mxu0 0
      %2214 = vmatmul.mubr.bf16.gmra.mxu0 %v1980
      %v2215 = vpop.f32.mrf.mxu0
      %v2216 = vadd.f32 %v2019, %v2215
      %v2217 = vpop.f32.mrf.mxu0
      %v2218 = vpop.f32.mrf.mxu0
      %v2219 = vadd.f32 %v2019, %v2218
      %v2220 = vpop.f32.mrf.mxu0
      %2221 = vmatprep.mubr.bf16.mxu0 0
      %2222 = vmatmul.mubr.bf16.gmra.mxu0 %v1981
      %v2223 = vpop.f32.mrf.mxu0
      %v2224 = vadd.f32 %v2019, %v2223
      %v2225 = vpop.f32.mrf.mxu0
      %v2226 = vpop.f32.mrf.mxu0
      %v2227 = vadd.f32 %v2019, %v2226
      %v2228 = vpop.f32.mrf.mxu0
      %2229 = vmatprep.mubr.bf16.mxu0 0
      %2230 = vmatmul.mubr.bf16.gmra.mxu0 %v1982
      %v2231 = vpop.f32.mrf.mxu0
      %v2232 = vadd.f32 %v2019, %v2231
      %v2233 = vpop.f32.mrf.mxu0
      %v2234 = vpop.f32.mrf.mxu0
      %v2235 = vadd.f32 %v2019, %v2234
      %v2236 = vpop.f32.mrf.mxu0
      %2237 = vmatprep.mubr.bf16.mxu0 0
      %2238 = vmatmul.mubr.bf16.gmra.mxu0 %v1983
      %v2239 = vpop.f32.mrf.mxu0
      %v2240 = vadd.f32 %v2019, %v2239
      %v2241 = vpop.f32.mrf.mxu0
      %v2242 = vpop.f32.mrf.mxu0
      %v2243 = vadd.f32 %v2019, %v2242
      %v2244 = vpop.f32.mrf.mxu0
      %2245 = vmatprep.mubr.bf16.mxu0 0
      %2246 = vmatmul.mubr.bf16.gmra.mxu0 %v1984
      %v2247 = vpop.f32.mrf.mxu0
      %v2248 = vadd.f32 %v2019, %v2247
      %v2249 = vpop.f32.mrf.mxu0
      %v2250 = vpop.f32.mrf.mxu0
      %v2251 = vadd.f32 %v2019, %v2250
      %v2252 = vpop.f32.mrf.mxu0
      %2253 = vmatprep.mubr.bf16.mxu0 0
      %2254 = vmatmul.mubr.bf16.gmra.mxu0 %v1985
      %v2255 = vpop.f32.mrf.mxu0
      %v2256 = vadd.f32 %v2019, %v2255
      %v2257 = vpop.f32.mrf.mxu0
      %v2258 = vpop.f32.mrf.mxu0
      %v2259 = vadd.f32 %v2019, %v2258
      %v2260 = vpop.f32.mrf.mxu0
      %2261 = vmatprep.mubr.bf16.mxu0 0
      %2262 = vmatmul.mubr.bf16.gmra.mxu0 %v1986
      %v2263 = vpop.f32.mrf.mxu0
      %v2264 = vadd.f32 %v2019, %v2263
      %v2265 = vpop.f32.mrf.mxu0
      %v2266 = vpop.f32.mrf.mxu0
      %v2267 = vadd.f32 %v2019, %v2266
      %v2268 = vpop.f32.mrf.mxu0
      %2269 = vmatprep.mubr.bf16.mxu0 0
      %2270 = vmatmul.mubr.bf16.gmra.mxu0 %v1987
      %v2271 = vpop.f32.mrf.mxu0
      %v2272 = vadd.f32 %v2019, %v2271
      %v2273 = vpop.f32.mrf.mxu0
      %v2274 = vpop.f32.mrf.mxu0
      %v2275 = vadd.f32 %v2019, %v2274
      %v2276 = vpop.f32.mrf.mxu0
      %2277 = vmatprep.mubr.bf16.mxu0 0
      %2278 = vmatmul.mubr.bf16.gmra.mxu0 %v1988
      %v2279 = vpop.f32.mrf.mxu0
      %v2280 = vadd.f32 %v2019, %v2279
      %v2281 = vpop.f32.mrf.mxu0
      %v2282 = vpop.f32.mrf.mxu0
      %v2283 = vadd.f32 %v2019, %v2282
      %v2284 = vpop.f32.mrf.mxu0
      %2285 = vmatprep.mubr.bf16.mxu0 0
      %2286 = vmatmul.mubr.bf16.gmra.mxu0 %v1989
      %v2287 = vpop.f32.mrf.mxu0
      %v2288 = vadd.f32 %v2019, %v2287
      %v2289 = vpop.f32.mrf.mxu0
      %v2290 = vpop.f32.mrf.mxu0
      %v2291 = vadd.f32 %v2019, %v2290
      %v2292 = vpop.f32.mrf.mxu0
      %2293 = vmatprep.mubr.bf16.mxu0 0
      %2294 = vmatmul.mubr.bf16.gmra.mxu0 %v1990
      %v2295 = vpop.f32.mrf.mxu0
      %v2296 = vadd.f32 %v2019, %v2295
      %v2297 = vpop.f32.mrf.mxu0
      %v2298 = vpop.f32.mrf.mxu0
      %v2299 = vadd.f32 %v2019, %v2298
      %v2300 = vpop.f32.mrf.mxu0
      %2301 = vmatprep.mubr.bf16.mxu0 0
      %2302 = vmatmul.mubr.bf16.gmra.mxu0 %v1991
      %v2303 = vpop.f32.mrf.mxu0
      %v2304 = vadd.f32 %v2019, %v2303
      %v2305 = vpop.f32.mrf.mxu0
      %v2306 = vpop.f32.mrf.mxu0
      %v2307 = vadd.f32 %v2019, %v2306
      %v2308 = vpop.f32.mrf.mxu0
      %2309 = vmatprep.mubr.bf16.mxu0 0
      %2310 = vmatmul.mubr.bf16.gmra.mxu0 %v1992
      %v2311 = vpop.f32.mrf.mxu0
      %v2312 = vadd.f32 %v2019, %v2311
      %v2313 = vpop.f32.mrf.mxu0
      %v2314 = vpop.f32.mrf.mxu0
      %v2315 = vadd.f32 %v2019, %v2314
      %v2316 = vpop.f32.mrf.mxu0
      %2317 = vmatprep.mubr.bf16.mxu0 0
      %2318 = vmatmul.mubr.bf16.gmra.mxu0 %v1993
      %v2319 = vpop.f32.mrf.mxu0
      %v2320 = vadd.f32 %v2019, %v2319
      %v2321 = vpop.f32.mrf.mxu0
      %v2322 = vpop.f32.mrf.mxu0
      %v2323 = vadd.f32 %v2019, %v2322
      %v2324 = vpop.f32.mrf.mxu0
      %2325 = vmatprep.mubr.bf16.mxu0 0
      %2326 = vmatmul.mubr.bf16.gmra.mxu0 %v1994
      %v2327 = vpop.f32.mrf.mxu0
      %v2328 = vadd.f32 %v2019, %v2327
      %v2329 = vpop.f32.mrf.mxu0
      %v2330 = vpop.f32.mrf.mxu0
      %v2331 = vadd.f32 %v2019, %v2330
      %v2332 = vpop.f32.mrf.mxu0
      %2333 = vmatprep.mubr.bf16.mxu0 0
      %2334 = vmatmul.mubr.bf16.gmra.mxu0 %v1995
      %v2335 = vpop.f32.mrf.mxu0
      %v2336 = vadd.f32 %v2019, %v2335
      %v2337 = vpop.f32.mrf.mxu0
      %v2338 = vpop.f32.mrf.mxu0
      %v2339 = vadd.f32 %v2019, %v2338
      %v2340 = vpop.f32.mrf.mxu0
      %2341 = vmatprep.mubr.bf16.mxu0 0
      %2342 = vmatmul.mubr.bf16.gmra.mxu0 %v1996
      %v2343 = vpop.f32.mrf.mxu0
      %v2344 = vadd.f32 %v2019, %v2343
      %v2345 = vpop.f32.mrf.mxu0
      %v2346 = vpop.f32.mrf.mxu0
      %v2347 = vadd.f32 %v2019, %v2346
      %v2348 = vpop.f32.mrf.mxu0
      %2349 = vmatprep.mubr.bf16.mxu0 0
      %2350 = vmatmul.mubr.bf16.gmra.mxu0 %v1997
      %v2351 = vpop.f32.mrf.mxu0
      %v2352 = vadd.f32 %v2019, %v2351
      %v2353 = vpop.f32.mrf.mxu0
      %v2354 = vpop.f32.mrf.mxu0
      %v2355 = vadd.f32 %v2019, %v2354
      %v2356 = vpop.f32.mrf.mxu0
      %2357 = vdwg.mxu0
      %v2358 = vmax.f32 %v2104, 0.0
      %v2359 = vmax.f32 %v2107, 0.0
      %v2360 = vmax.f32 %v2112, 0.0
      %v2361 = vmax.f32 %v2115, 0.0
      %v2362 = vmax.f32 %v2120, 0.0
      %v2363 = vmax.f32 %v2123, 0.0
      %v2364 = vmax.f32 %v2128, 0.0
      %v2365 = vmax.f32 %v2131, 0.0
      %v2366 = vmax.f32 %v2136, 0.0
      %v2367 = vmax.f32 %v2139, 0.0
      %v2368 = vmax.f32 %v2144, 0.0
      %v2369 = vmax.f32 %v2147, 0.0
      %v2370 = vmax.f32 %v2152, 0.0
      %v2371 = vmax.f32 %v2155, 0.0
      %v2372 = vmax.f32 %v2160, 0.0
      %v2373 = vmax.f32 %v2163, 0.0
      %v2374 = vmax.f32 %v2168, 0.0
      %v2375 = vmax.f32 %v2171, 0.0
      %v2376 = vmax.f32 %v2176, 0.0
      %v2377 = vmax.f32 %v2179, 0.0
      %v2378 = vmax.f32 %v2184, 0.0
      %v2379 = vmax.f32 %v2187, 0.0
      %v2380 = vmax.f32 %v2192, 0.0
      %v2381 = vmax.f32 %v2195, 0.0
      %v2382 = vmax.f32 %v2200, 0.0
      %v2383 = vmax.f32 %v2203, 0.0
      %v2384 = vmax.f32 %v2208, 0.0
      %v2385 = vmax.f32 %v2211, 0.0
      %v2386 = vmax.f32 %v2216, 0.0
      %v2387 = vmax.f32 %v2219, 0.0
      %v2388 = vmax.f32 %v2224, 0.0
      %v2389 = vmax.f32 %v2227, 0.0
      %v2390 = vmax.f32 %v2232, 0.0
      %v2391 = vmax.f32 %v2235, 0.0
      %v2392 = vmax.f32 %v2240, 0.0
      %v2393 = vmax.f32 %v2243, 0.0
      %v2394 = vmax.f32 %v2248, 0.0
      %v2395 = vmax.f32 %v2251, 0.0
      %v2396 = vmax.f32 %v2256, 0.0
      %v2397 = vmax.f32 %v2259, 0.0
      %v2398 = vmax.f32 %v2264, 0.0
      %v2399 = vmax.f32 %v2267, 0.0
      %v2400 = vmax.f32 %v2272, 0.0
      %v2401 = vmax.f32 %v2275, 0.0
      %v2402 = vmax.f32 %v2280, 0.0
      %v2403 = vmax.f32 %v2283, 0.0
      %v2404 = vmax.f32 %v2288, 0.0
      %v2405 = vmax.f32 %v2291, 0.0
      %v2406 = vmax.f32 %v2296, 0.0
      %v2407 = vmax.f32 %v2299, 0.0
      %v2408 = vmax.f32 %v2304, 0.0
      %v2409 = vmax.f32 %v2307, 0.0
      %v2410 = vmax.f32 %v2312, 0.0
      %v2411 = vmax.f32 %v2315, 0.0
      %v2412 = vmax.f32 %v2320, 0.0
      %v2413 = vmax.f32 %v2323, 0.0
      %v2414 = vmax.f32 %v2328, 0.0
      %v2415 = vmax.f32 %v2331, 0.0
      %v2416 = vmax.f32 %v2336, 0.0
      %v2417 = vmax.f32 %v2339, 0.0
      %v2418 = vmax.f32 %v2344, 0.0
      %v2419 = vmax.f32 %v2347, 0.0
      %v2420 = vmax.f32 %v2352, 0.0
      %v2421 = vmax.f32 %v2355, 0.0
      %v2422 = vpack.c.bf16 %v2359, %v2358
      %v2423 = vpack.c.bf16 %v2361, %v2360
      %v2424 = vpack.c.bf16 %v2363, %v2362
      %v2425 = vpack.c.bf16 %v2365, %v2364
      %v2426 = vpack.c.bf16 %v2367, %v2366
      %v2427 = vpack.c.bf16 %v2369, %v2368
      %v2428 = vpack.c.bf16 %v2371, %v2370
      %v2429 = vpack.c.bf16 %v2373, %v2372
      %v2430 = vpack.c.bf16 %v2375, %v2374
      %v2431 = vpack.c.bf16 %v2377, %v2376
      %v2432 = vpack.c.bf16 %v2379, %v2378
      %v2433 = vpack.c.bf16 %v2381, %v2380
      %v2434 = vpack.c.bf16 %v2383, %v2382
      %v2435 = vpack.c.bf16 %v2385, %v2384
      %v2436 = vpack.c.bf16 %v2387, %v2386
      %v2437 = vpack.c.bf16 %v2389, %v2388
      %v2438 = vpack.c.bf16 %v2391, %v2390
      %v2439 = vpack.c.bf16 %v2393, %v2392
      %v2440 = vpack.c.bf16 %v2395, %v2394
      %v2441 = vpack.c.bf16 %v2397, %v2396
      %v2442 = vpack.c.bf16 %v2399, %v2398
      %v2443 = vpack.c.bf16 %v2401, %v2400
      %v2444 = vpack.c.bf16 %v2403, %v2402
      %v2445 = vpack.c.bf16 %v2405, %v2404
      %v2446 = vpack.c.bf16 %v2407, %v2406
      %v2447 = vpack.c.bf16 %v2409, %v2408
      %v2448 = vpack.c.bf16 %v2411, %v2410
      %v2449 = vpack.c.bf16 %v2413, %v2412
      %v2450 = vpack.c.bf16 %v2415, %v2414
      %v2451 = vpack.c.bf16 %v2417, %v2416
      %v2452 = vpack.c.bf16 %v2419, %v2418
      %v2453 = vpack.c.bf16 %v2421, %v2420
      %v2486 = vunpack.c.l.b16 %v2422
      %v2487 = vunpack.c.h.b16 %v2422
      %v2488 = vunpack.c.l.b16 %v2423
      %v2489 = vunpack.c.h.b16 %v2423
      %v2490 = vunpack.c.l.b16 %v2424
      %v2491 = vunpack.c.h.b16 %v2424
      %v2492 = vunpack.c.l.b16 %v2425
      %v2493 = vunpack.c.h.b16 %v2425
      %v2494 = vunpack.c.l.b16 %v2426
      %v2495 = vunpack.c.h.b16 %v2426
      %v2496 = vunpack.c.l.b16 %v2427
      %v2497 = vunpack.c.h.b16 %v2427
      %v2498 = vunpack.c.l.b16 %v2428
      %v2499 = vunpack.c.h.b16 %v2428
      %v2500 = vunpack.c.l.b16 %v2429
      %v2501 = vunpack.c.h.b16 %v2429
      %v2502 = vunpack.c.l.b16 %v2430
      %v2503 = vunpack.c.h.b16 %v2430
      %v2504 = vunpack.c.l.b16 %v2431
      %v2505 = vunpack.c.h.b16 %v2431
      %v2506 = vunpack.c.l.b16 %v2432
      %v2507 = vunpack.c.h.b16 %v2432
      %v2508 = vunpack.c.l.b16 %v2433
      %v2509 = vunpack.c.h.b16 %v2433
      %v2510 = vunpack.c.l.b16 %v2434
      %v2511 = vunpack.c.h.b16 %v2434
      %v2512 = vunpack.c.l.b16 %v2435
      %v2513 = vunpack.c.h.b16 %v2435
      %v2514 = vunpack.c.l.b16 %v2436
      %v2515 = vunpack.c.h.b16 %v2436
      %v2516 = vunpack.c.l.b16 %v2437
      %v2517 = vunpack.c.h.b16 %v2437
      %v2518 = vunpack.c.l.b16 %v2438
      %v2519 = vunpack.c.h.b16 %v2438
      %v2520 = vunpack.c.l.b16 %v2439
      %v2521 = vunpack.c.h.b16 %v2439
      %v2522 = vunpack.c.l.b16 %v2440
      %v2523 = vunpack.c.h.b16 %v2440
      %v2524 = vunpack.c.l.b16 %v2441
      %v2525 = vunpack.c.h.b16 %v2441
      %v2526 = vunpack.c.l.b16 %v2442
      %v2527 = vunpack.c.h.b16 %v2442
      %v2528 = vunpack.c.l.b16 %v2443
      %v2529 = vunpack.c.h.b16 %v2443
      %v2530 = vunpack.c.l.b16 %v2444
      %v2531 = vunpack.c.h.b16 %v2444
      %v2532 = vunpack.c.l.b16 %v2445
      %v2533 = vunpack.c.h.b16 %v2445
      %v2534 = vunpack.c.l.b16 %v2446
      %v2535 = vunpack.c.h.b16 %v2446
      %v2536 = vunpack.c.l.b16 %v2447
      %v2537 = vunpack.c.h.b16 %v2447
      %v2538 = vunpack.c.l.b16 %v2448
      %v2539 = vunpack.c.h.b16 %v2448
      %v2540 = vunpack.c.l.b16 %v2449
      %v2541 = vunpack.c.h.b16 %v2449
      %v2542 = vunpack.c.l.b16 %v2450
      %v2543 = vunpack.c.h.b16 %v2450
      %v2544 = vunpack.c.l.b16 %v2451
      %v2545 = vunpack.c.h.b16 %v2451
      %v2546 = vunpack.c.l.b16 %v2452
      %v2547 = vunpack.c.h.b16 %v2452
      %v2548 = vunpack.c.l.b16 %v2453
      %v2549 = vunpack.c.h.b16 %v2453
      %v2550 = vpack.c.b16 %v2486, %v2486
      %v2551 = vpack.c.b16 %v2487, %v2487
      %v2552 = vpack.c.b16 %v2488, %v2488
      %v2553 = vpack.c.b16 %v2489, %v2489
      %v2554 = vpack.c.b16 %v2490, %v2490
      %v2555 = vpack.c.b16 %v2491, %v2491
      %v2556 = vpack.c.b16 %v2492, %v2492
      %v2557 = vpack.c.b16 %v2493, %v2493
      %v2558 = vpack.c.b16 %v2494, %v2494
      %v2559 = vpack.c.b16 %v2495, %v2495
      %v2560 = vpack.c.b16 %v2496, %v2496
      %v2561 = vpack.c.b16 %v2497, %v2497
      %v2562 = vpack.c.b16 %v2498, %v2498
      %v2563 = vpack.c.b16 %v2499, %v2499
      %v2564 = vpack.c.b16 %v2500, %v2500
      %v2565 = vpack.c.b16 %v2501, %v2501
      %v2566 = vpack.c.b16 %v2502, %v2502
      %v2567 = vpack.c.b16 %v2503, %v2503
      %v2568 = vpack.c.b16 %v2504, %v2504
      %v2569 = vpack.c.b16 %v2505, %v2505
      %v2570 = vpack.c.b16 %v2506, %v2506
      %v2571 = vpack.c.b16 %v2507, %v2507
      %v2572 = vpack.c.b16 %v2508, %v2508
      %v2573 = vpack.c.b16 %v2509, %v2509
      %v2574 = vpack.c.b16 %v2510, %v2510
      %v2575 = vpack.c.b16 %v2511, %v2511
      %v2576 = vpack.c.b16 %v2512, %v2512
      %v2577 = vpack.c.b16 %v2513, %v2513
      %v2578 = vpack.c.b16 %v2514, %v2514
      %v2579 = vpack.c.b16 %v2515, %v2515
      %v2580 = vpack.c.b16 %v2516, %v2516
      %v2581 = vpack.c.b16 %v2517, %v2517
      %v2582 = vpack.c.b16 %v2518, %v2518
      %v2583 = vpack.c.b16 %v2519, %v2519
      %v2584 = vpack.c.b16 %v2520, %v2520
      %v2585 = vpack.c.b16 %v2521, %v2521
      %v2586 = vpack.c.b16 %v2522, %v2522
      %v2587 = vpack.c.b16 %v2523, %v2523
      %v2588 = vpack.c.b16 %v2524, %v2524
      %v2589 = vpack.c.b16 %v2525, %v2525
      %v2590 = vpack.c.b16 %v2526, %v2526
      %v2591 = vpack.c.b16 %v2527, %v2527
      %v2592 = vpack.c.b16 %v2528, %v2528
      %v2593 = vpack.c.b16 %v2529, %v2529
      %v2594 = vpack.c.b16 %v2530, %v2530
      %v2595 = vpack.c.b16 %v2531, %v2531
      %v2596 = vpack.c.b16 %v2532, %v2532
      %v2597 = vpack.c.b16 %v2533, %v2533
      %v2598 = vpack.c.b16 %v2534, %v2534
      %v2599 = vpack.c.b16 %v2535, %v2535
      %v2600 = vpack.c.b16 %v2536, %v2536
      %v2601 = vpack.c.b16 %v2537, %v2537
      %v2602 = vpack.c.b16 %v2538, %v2538
      %v2603 = vpack.c.b16 %v2539, %v2539
      %v2604 = vpack.c.b16 %v2540, %v2540
      %v2605 = vpack.c.b16 %v2541, %v2541
      %v2606 = vpack.c.b16 %v2542, %v2542
      %v2607 = vpack.c.b16 %v2543, %v2543
      %v2608 = vpack.c.b16 %v2544, %v2544
      %v2609 = vpack.c.b16 %v2545, %v2545
      %v2610 = vpack.c.b16 %v2546, %v2546
      %v2611 = vpack.c.b16 %v2547, %v2547
      %v2612 = vpack.c.b16 %v2548, %v2548
      %v2613 = vpack.c.b16 %v2549, %v2549
      %2678 = vst [vmem:[%s4] sm:$0xf] %v2550
      %2679 = vst [vmem:[%s4 + $0x4] sm:$0xf] %v2551
      %2680 = vst [vmem:[%s4 + $0x8] sm:$0xf] %v2552
      %2681 = vst [vmem:[%s4 + $0xc] sm:$0xf] %v2553
      %2682 = vst [vmem:[%s4 + $0x10] sm:$0xf] %v2554
      %2683 = vst [vmem:[%s4 + $0x14] sm:$0xf] %v2555
      %2684 = vst [vmem:[%s4 + $0x18] sm:$0xf] %v2556
      %2685 = vst [vmem:[%s4 + $0x1c] sm:$0xf] %v2557
      %2686 = vst [vmem:[%s4 + $0x20] sm:$0xf] %v2558
      %2687 = vst [vmem:[%s4 + $0x24] sm:$0xf] %v2559
      %2688 = vst [vmem:[%s4 + $0x28] sm:$0xf] %v2560
      %2689 = vst [vmem:[%s4 + $0x2c] sm:$0xf] %v2561
      %2690 = vst [vmem:[%s4 + $0x30] sm:$0xf] %v2562
      %2691 = vst [vmem:[%s4 + $0x34] sm:$0xf] %v2563
      %2692 = vst [vmem:[%s4 + $0x38] sm:$0xf] %v2564
      %2693 = vst [vmem:[%s4 + $0x3c] sm:$0xf] %v2565
      %2694 = vst [vmem:[%s4 + $0x40] sm:$0xf] %v2566
      %2695 = vst [vmem:[%s4 + $0x44] sm:$0xf] %v2567
      %2696 = vst [vmem:[%s4 + $0x48] sm:$0xf] %v2568
      %2697 = vst [vmem:[%s4 + $0x4c] sm:$0xf] %v2569
      %2698 = vst [vmem:[%s4 + $0x50] sm:$0xf] %v2570
      %2699 = vst [vmem:[%s4 + $0x54] sm:$0xf] %v2571
      %2700 = vst [vmem:[%s4 + $0x58] sm:$0xf] %v2572
      %2701 = vst [vmem:[%s4 + $0x5c] sm:$0xf] %v2573
      %2702 = vst [vmem:[%s4 + $0x60] sm:$0xf] %v2574
      %2703 = vst [vmem:[%s4 + $0x64] sm:$0xf] %v2575
      %2704 = vst [vmem:[%s4 + $0x68] sm:$0xf] %v2576
      %2705 = vst [vmem:[%s4 + $0x6c] sm:$0xf] %v2577
      %2706 = vst [vmem:[%s4 + $0x70] sm:$0xf] %v2578
      %2707 = vst [vmem:[%s4 + $0x74] sm:$0xf] %v2579
      %2708 = vst [vmem:[%s4 + $0x78] sm:$0xf] %v2580
      %2709 = vst [vmem:[%s4 + $0x7c] sm:$0xf] %v2581
      %2710 = vst [vmem:[%s4 + $0x80] sm:$0xf] %v2582
      %2711 = vst [vmem:[%s4 + $0x84] sm:$0xf] %v2583
      %2712 = vst [vmem:[%s4 + $0x88] sm:$0xf] %v2584
      %2713 = vst [vmem:[%s4 + $0x8c] sm:$0xf] %v2585
      %2714 = vst [vmem:[%s4 + $0x90] sm:$0xf] %v2586
      %2715 = vst [vmem:[%s4 + $0x94] sm:$0xf] %v2587
      %2716 = vst [vmem:[%s4 + $0x98] sm:$0xf] %v2588
      %2717 = vst [vmem:[%s4 + $0x9c] sm:$0xf] %v2589
      %2718 = vst [vmem:[%s4 + $0xa0] sm:$0xf] %v2590
      %2719 = vst [vmem:[%s4 + $0xa4] sm:$0xf] %v2591
      %2720 = vst [vmem:[%s4 + $0xa8] sm:$0xf] %v2592
      %2721 = vst [vmem:[%s4 + $0xac] sm:$0xf] %v2593
      %2722 = vst [vmem:[%s4 + $0xb0] sm:$0xf] %v2594
      %2723 = vst [vmem:[%s4 + $0xb4] sm:$0xf] %v2595
      %2724 = vst [vmem:[%s4 + $0xb8] sm:$0xf] %v2596
      %2725 = vst [vmem:[%s4 + $0xbc] sm:$0xf] %v2597
      %2726 = vst [vmem:[%s4 + $0xc0] sm:$0xf] %v2598
      %2727 = vst [vmem:[%s4 + $0xc4] sm:$0xf] %v2599
      %2728 = vst [vmem:[%s4 + $0xc8] sm:$0xf] %v2600
      %2729 = vst [vmem:[%s4 + $0xcc] sm:$0xf] %v2601
      %2730 = vst [vmem:[%s4 + $0xd0] sm:$0xf] %v2602
      %2731 = vst [vmem:[%s4 + $0xd4] sm:$0xf] %v2603
      %2732 = vst [vmem:[%s4 + $0xd8] sm:$0xf] %v2604
      %2733 = vst [vmem:[%s4 + $0xdc] sm:$0xf] %v2605
      %2734 = vst [vmem:[%s4 + $0xe0] sm:$0xf] %v2606
      %2735 = vst [vmem:[%s4 + $0xe4] sm:$0xf] %v2607
      %2736 = vst [vmem:[%s4 + $0xe8] sm:$0xf] %v2608
      %2737 = vst [vmem:[%s4 + $0xec] sm:$0xf] %v2609
      %2738 = vst [vmem:[%s4 + $0xf0] sm:$0xf] %v2610
      %2739 = vst [vmem:[%s4 + $0xf4] sm:$0xf] %v2611
      %2740 = vst [vmem:[%s4 + $0xf8] sm:$0xf] %v2612
      %2741 = vst [vmem:[%s4 + $0xfc] sm:$0xf] %v2613
    $region29: #{gcn_encoder.2} parent=1 // pred_fallthru
      _
    // Predicated region
    $region30: #{gcn_encoder.2} parent=1 // pred_check
      _
    $region31: #{gcn_encoder.2} parent=1 // pred_check_branch
      %2743 = sbr.rel (0) target = $region33
    $region32: #{gcn_encoder.2} parent=1 // pred_region
      _
    $region33: #{gcn_encoder.2} parent=1 // pred_fallthru
      _
    // Predicated region
    $region34: #{gcn_encoder.2} parent=1 // pred_check
      _
    $region35: #{gcn_encoder.2} parent=1 // pred_check_branch
      %2745 = sbr.rel (0) target = $region37
    $region36: #{gcn_encoder.2} parent=1 // pred_region
      _
    $region37: #{gcn_encoder.2} parent=1 // pred_fallthru
      _
    %2746 = vsyncpa [#allocation4], 1

</llo_original>
